<compile_context>
chip_gen: v5e
topology: v5e:2x2
jax: 0.10.0
libtpu: 0.0.40
codegen_flags: <defaults>
</compile_context>

<pallas_src>
import functools

import jax
import jax.numpy as jnp
from jax.experimental import pallas as pl
from jax.experimental.pallas import tpu as pltpu

LANES = 128  # TPU lane width; head outputs are packed into one 128-wide slab


# ----------------------------------------------------------------------------
# Fused kernel: conv3x3 + ReLU + global-avg-pool (accumulated) + heads
# ----------------------------------------------------------------------------
def _fused_kernel(x_ref, cw_ref, cb_ref, m_ref,
                  wc_ref, bc_ref, w1_ref, b1_ref, w2_ref, b2_ref,
                  w3_ref, b3_ref, o_ref, acc_ref,
                  *, th, w_pad, inv_hw):
    j = pl.program_id(1)                      # row-tile index within the image
    rows = th * w_pad                         # flattened rows in this tile
    F = cw_ref.shape[-1]

    @pl.when(j == 0)
    def _init():
        acc_ref[...] = jnp.zeros_like(acc_ref)

    # 3x3 conv (pad=1, stride=1) as 9 shift-and-matmul accumulations on the
    # MXU.  x_ref is the flattened padded image (resident in VMEM for all j).
    base = j * rows
    acc = jnp.zeros((rows, F), jnp.float32)
    for k in range(9):                        # static unroll: 9 MXU pushes
        kh, kw = k // 3, k % 3
        off = base + kh * w_pad + kw
        slab = x_ref[pl.ds(off, rows), :].astype(jnp.bfloat16)   # (rows, C)
        acc = acc + jnp.dot(slab, cw_ref[k],
                            preferred_element_type=jnp.float32)

    # f32 epilogue (v5e-safe): bias + ReLU, mask the (w_pad - W) junk columns
    # introduced by the flattened layout, then accumulate per-image GAP sums.
    act = jnp.maximum(acc + cb_ref[...], 0.0)
    act = act * m_ref[...]                                       # (rows, 1) mask
    acc_ref[...] += jnp.sum(act, axis=0, keepdims=True)

    @pl.when(j == pl.num_programs(1) - 1)
    def _finalize():
        feat = acc_ref[...] * inv_hw                             # (1, F) GAP
        # classifier head -> lanes [0, num_classes)
        y = jnp.dot(feat, wc_ref[...],
                    preferred_element_type=jnp.float32) + bc_ref[...]
        # discriminator head (GRL == identity in forward) -> lane 127
        h1 = jnp.maximum(jnp.dot(feat, w1_ref[...],
                                 preferred_element_type=jnp.float32)
                         + b1_ref[...], 0.0)
        h2 = jnp.maximum(jnp.dot(h1, w2_ref[...],
                                 preferred_element_type=jnp.float32)
                         + b2_ref[...], 0.0)
        z = jnp.dot(h2, w3_ref[...],
                    preferred_element_type=jnp.float32) + b3_ref[...]
        o_ref[...] = y + z        # disjoint lanes -> one lane-dense (1,128) store


def _largest_divisor_leq(n, cap):
    cap = max(1, min(n, cap))
    for t in range(cap, 0, -1):
        if n % t == 0:
            return t
    return 1


# ----------------------------------------------------------------------------
# Forward:  (y, z) = AdversarialModel(x)   with use_discriminator=True
# ----------------------------------------------------------------------------
@functools.partial(jax.jit, static_argnames=("num_classes",))
def adversarial_forward(x_nchw, conv_w, conv_b, head_params, *, num_classes):
    wc, bc, w1, b1, w2, b2, w3, b3 = head_params
    N, C, H, W = x_nchw.shape
    F = conv_w.shape[-1]
    assert num_classes <= LANES - 2, "classifier logits + disc logit share 128 lanes"

    # NCHW -> NHWC, zero-pad spatially for the 3x3/pad=1 conv (+1 extra bottom
    # row so the flattened shifted windows stay in-bounds), flatten (H, W).
    x = jnp.transpose(x_nchw, (0, 2, 3, 1))
    xp = jnp.pad(x, ((0, 0), (1, 2), (1, 1), (0, 0)))
    w_pad = W + 2
    flat = (H + 3) * w_pad
    xflat = xp.reshape(N, flat, C).astype(jnp.float32)

    # conv weight rows ordered (kh*3 + kw) outer, input-channel inner
    cw = conv_w.reshape(9, C, F).astype(jnp.bfloat16)
    cb = conv_b.reshape(1, F).astype(jnp.float32)

    # row tile: largest divisor of H keeping the f32 conv-activation tile small
    budget_rows = max(1, (1 << 20) // (w_pad * F * 4))
    th = _largest_divisor_leq(H, budget_rows)
    n_j = H // th
    rows = th * w_pad

    # column-validity mask (hoisted out of the kernel body; constant over grid)
    col = jnp.arange(rows, dtype=jnp.int32) % w_pad
    colmask = (col < W).astype(jnp.float32).reshape(rows, 1)

    # zero-padded, lane-dense (128-wide) head parameters
    def pad2(a, r, c, r0=0, c0=0):
        a = a.astype(jnp.float32)
        return jnp.zeros((r, c), jnp.float32).at[
            r0:r0 + a.shape[0], c0:c0 + a.shape[1]].set(a)

    wc_p = pad2(wc, F, LANES)
    bc_p = pad2(bc.reshape(1, -1), 1, LANES)
    w1_p = pad2(w1, F, LANES)
    b1_p = pad2(b1.reshape(1, -1), 1, LANES)
    w2_p = pad2(w2, LANES, LANES)
    b2_p = pad2(b2.reshape(1, -1), 1, LANES)
    w3_p = pad2(w3, LANES, LANES, c0=LANES - 1)          # disc logit -> lane 127
    b3_p = pad2(b3.reshape(1, -1), 1, LANES, c0=LANES - 1)

    def const_spec(shape):
        nd = len(shape)
        return pl.BlockSpec(shape, lambda n, j, _nd=nd: (0,) * _nd)

    kernel = functools.partial(_fused_kernel, th=th, w_pad=w_pad,
                               inv_hw=1.0 / float(H * W))

    out = pl.pallas_call(
        kernel,
        out_shape=jax.ShapeDtypeStruct((N, 1, LANES), jnp.float32),
        grid=(N, n_j),
        in_specs=[
            # padded, flattened image: resident across all row tiles of image n
            pl.BlockSpec((None, flat, C), lambda n, j: (n, 0, 0)),
            const_spec((9, C, F)),          # conv weight (bf16)
            const_spec((1, F)),             # conv bias
            const_spec((rows, 1)),          # column mask
            const_spec((F, LANES)),         # classifier W (padded)
            const_spec((1, LANES)),         # classifier b
            const_spec((F, LANES)),         # disc W1 (padded)
            const_spec((1, LANES)),         # disc b1
            const_spec((LANES, LANES)),     # disc W2 (padded)
            const_spec((1, LANES)),         # disc b2
            const_spec((LANES, LANES)),     # disc W3 (padded, col 127)
            const_spec((1, LANES)),         # disc b3
        ],
        out_specs=pl.BlockSpec((None, 1, LANES), lambda n, j: (n, 0, 0)),
        scratch_shapes=[pltpu.VMEM((1, F), jnp.float32)],
        compiler_params=pltpu.CompilerParams(
            dimension_semantics=("parallel", "arbitrary"),
            vmem_limit_bytes=32 * 1024 * 1024),
    )(xflat, cw, cb, colmask, wc_p, bc_p, w1_p, b1_p, w2_p, b2_p, w3_p, b3_p)

    slab = out.reshape(N, LANES)
    y = slab[:, :num_classes]          # classifier logits
    z = slab[:, LANES - 1:]            # discriminator logit (use_discriminator=True)
    return y, z


# ----------------------------------------------------------------------------
# Pure-JAX reference (f32, HIGHEST precision) for correctness validation
# ----------------------------------------------------------------------------
def adversarial_reference(x_nchw, conv_w, conv_b, head_params, *, num_classes):
    wc, bc, w1, b1, w2, b2, w3, b3 = head_params
    N, C, H, W = x_nchw.shape
    F = conv_w.shape[-1]
    hi = jax.lax.Precision.HIGHEST
    x = jnp.transpose(x_nchw, (0, 2, 3, 1)).astype(jnp.float32)          # NHWC
    w_hwio = conv_w.reshape(3, 3, C, F).astype(jnp.float32)
    conv = jax.lax.conv_general_dilated(
        x, w_hwio, window_strides=(1, 1), padding="SAME",
        dimension_numbers=("NHWC", "HWIO", "NHWC"), precision=hi)
    act = jnp.maximum(conv + conv_b.reshape(1, 1, 1, F), 0.0)
    feat = jnp.mean(act, axis=(1, 2))                                     # (N, F)
    y = jnp.dot(feat, wc, precision=hi) + bc
    h1 = jnp.maximum(jnp.dot(feat, w1, precision=hi) + b1, 0.0)
    h2 = jnp.maximum(jnp.dot(h1, w2, precision=hi) + b2, 0.0)
    z = jnp.dot(h2, w3, precision=hi) + b3
    return y, z


if __name__ == "__main__":
    # Small, module-consistent shapes
    N, C_in, S = 2, 4, 16              # batch, in channels, spatial
    num_ftrs = 32                      # full_classifier.fc.in_features
    num_classes = 10

    key = jax.random.PRNGKey(0)
    keys = jax.random.split(key, 12)

    # Input (NCHW like PyTorch)
    x = jax.random.normal(keys[0], (N, C_in, S, S), dtype=jnp.float32)

    # Synthetic feature-extractor conv params, rows ordered ((kh,kw) outer, C inner)
    conv_w = jax.random.normal(keys[1], (9 * C_in, num_ftrs),
                               dtype=jnp.float32) * 0.1
    conv_b = jax.random.normal(keys[2], (num_ftrs,), dtype=jnp.float32) * 0.1

    # Classifier: Linear(num_ftrs, num_classes)
    wc = jax.random.normal(keys[3], (num_ftrs, num_classes), dtype=jnp.float32) * 0.1
    bc = jax.random.normal(keys[4], (num_classes,), dtype=jnp.float32) * 0.1

    # Discriminator: Linear(F,50) -> ReLU -> Linear(50,20) -> ReLU -> Linear(20,1)
    w1 = jax.random.normal(keys[5], (num_ftrs, 50), dtype=jnp.float32) * 0.1
    b1 = jax.random.normal(keys[6], (50,), dtype=jnp.float32) * 0.1
    w2 = jax.random.normal(keys[7], (50, 20), dtype=jnp.float32) * 0.1
    b2 = jax.random.normal(keys[8], (20,), dtype=jnp.float32) * 0.1
    w3 = jax.random.normal(keys[9], (20, 1), dtype=jnp.float32) * 0.1
    b3 = jax.random.normal(keys[10], (1,), dtype=jnp.float32) * 0.1

    head_params = (wc, bc, w1, b1, w2, b2, w3, b3)

    y, z = adversarial_forward(x, conv_w, conv_b, head_params,
                               num_classes=num_classes)
    jax.block_until_ready((y, z))

    assert y.shape == (N, num_classes), y.shape
    assert z.shape == (N, 1), z.shape
    assert bool(jnp.all(jnp.isfinite(y))) and bool(jnp.all(jnp.isfinite(z)))

    # Correctness check vs. pure-JAX f32 reference (bf16 MXU conv -> loose atol)
    y_ref, z_ref = adversarial_reference(x, conv_w, conv_b, head_params,
                                         num_classes=num_classes)
    jax.block_until_ready((y_ref, z_ref))
    assert bool(jnp.allclose(y, y_ref, atol=2e-2, rtol=2e-2)), \
        float(jnp.max(jnp.abs(y - y_ref)))
    assert bool(jnp.allclose(z, z_ref, atol=2e-2, rtol=2e-2)), \
        float(jnp.max(jnp.abs(z - z_ref)))

    print("KERNEL_OK")
</pallas_src>

<mosaic_0001>
module attributes {stable_mosaic.version = 11 : i64} {
  func.func @_fused_kernel(%arg0: i32, %arg1: i32, %arg2: memref<1x342x4xf32, #tpu.memory_space<vmem>>, %arg3: memref<9x4x32xbf16, #tpu.memory_space<vmem>>, %arg4: memref<1x32xf32, #tpu.memory_space<vmem>>, %arg5: memref<288x1xf32, #tpu.memory_space<vmem>>, %arg6: memref<32x128xf32, #tpu.memory_space<vmem>>, %arg7: memref<1x128xf32, #tpu.memory_space<vmem>>, %arg8: memref<32x128xf32, #tpu.memory_space<vmem>>, %arg9: memref<1x128xf32, #tpu.memory_space<vmem>>, %arg10: memref<128x128xf32, #tpu.memory_space<vmem>>, %arg11: memref<1x128xf32, #tpu.memory_space<vmem>>, %arg12: memref<128x128xf32, #tpu.memory_space<vmem>>, %arg13: memref<1x128xf32, #tpu.memory_space<vmem>>, %arg14: memref<1x1x128xf32, #tpu.memory_space<vmem>>, %arg15: memref<1x32xf32, #tpu.memory_space<vmem>>) attributes {dimension_semantics = [#tpu.dimension_semantics<parallel>, #tpu.dimension_semantics<arbitrary>], iteration_bounds = array<i64: 2, 1>, scalar_prefetch = 0 : i64, scratch_operands = 1 : i64, tpu.core_type = #tpu.core_type<tc>, window_params = [{transform_indices = @transform_0, window_bounds = array<i64: 1, 342, 4>}, {pipeline_mode = #tpu.pipeline_mode<synchronous>, transform_indices = @transform_1, window_bounds = array<i64: 9, 4, 32>}, {pipeline_mode = #tpu.pipeline_mode<synchronous>, transform_indices = @transform_2, window_bounds = array<i64: 1, 32>}, {pipeline_mode = #tpu.pipeline_mode<synchronous>, transform_indices = @transform_3, window_bounds = array<i64: 288, 1>}, {pipeline_mode = #tpu.pipeline_mode<synchronous>, transform_indices = @transform_4, window_bounds = array<i64: 32, 128>}, {pipeline_mode = #tpu.pipeline_mode<synchronous>, transform_indices = @transform_5, window_bounds = array<i64: 1, 128>}, {pipeline_mode = #tpu.pipeline_mode<synchronous>, transform_indices = @transform_6, window_bounds = array<i64: 32, 128>}, {pipeline_mode = #tpu.pipeline_mode<synchronous>, transform_indices = @transform_7, window_bounds = array<i64: 1, 128>}, {pipeline_mode = #tpu.pipeline_mode<synchronous>, transform_indices = @transform_8, window_bounds = array<i64: 128, 128>}, {pipeline_mode = #tpu.pipeline_mode<synchronous>, transform_indices = @transform_9, window_bounds = array<i64: 1, 128>}, {pipeline_mode = #tpu.pipeline_mode<synchronous>, transform_indices = @transform_10, window_bounds = array<i64: 128, 128>}, {pipeline_mode = #tpu.pipeline_mode<synchronous>, transform_indices = @transform_11, window_bounds = array<i64: 1, 128>}, {transform_indices = @transform_12, window_bounds = array<i64: 1, 1, 128>}]} {
    %c0_i32 = arith.constant 0 : i32
    %0 = arith.cmpi eq, %arg1, %c0_i32 : i32
    %1 = arith.extui %0 : i1 to i32
    %c0_i32_0 = arith.constant 0 : i32
    %2 = arith.cmpi ne, %1, %c0_i32_0 : i32
    scf.if %2 {
      %cst_72 = arith.constant 0.000000e+00 : f32
      %111 = vector.broadcast %cst_72 : f32 to vector<1x32xf32>
      %c0_73 = arith.constant 0 : index
      %c0_74 = arith.constant 0 : index
      %112 = vector.load %arg15[%c0_73, %c0_74] : memref<1x32xf32, #tpu.memory_space<vmem>>, vector<1x32xf32>
      tpu.vector_store %arg15[%c0_73, %c0_74], %111 {strides = array<i32>} : memref<1x32xf32, #tpu.memory_space<vmem>>, vector<1x32xf32>,
    } else {
    }
    %c288_i32 = arith.constant 288 : i32
    %3 = arith.muli %arg1, %c288_i32 : i32
    %cst = arith.constant 0.000000e+00 : f32
    %4 = vector.broadcast %cst : f32 to vector<288x32xf32>
    %c0_i32_1 = arith.constant 0 : i32
    %5 = arith.addi %3, %c0_i32_1 : i32
    %c0_i32_2 = arith.constant 0 : i32
    %6 = arith.addi %5, %c0_i32_2 : i32
    %c0 = arith.constant 0 : index
    %7 = arith.index_cast %6 : i32 to index
    %c0_3 = arith.constant 0 : index
    %8 = vector.load %arg2[%c0, %7, %c0_3] : memref<1x342x4xf32, #tpu.memory_space<vmem>>, vector<1x288x4xf32>
    %9 = vector.shape_cast %8 : vector<1x288x4xf32> to vector<288x4xf32>
    %10 = arith.truncf %9 : vector<288x4xf32> to vector<288x4xbf16>
    %c0_4 = arith.constant 0 : index
    %c0_5 = arith.constant 0 : index
    %c0_6 = arith.constant 0 : index
    %11 = vector.load %arg3[%c0_4, %c0_5, %c0_6] : memref<9x4x32xbf16, #tpu.memory_space<vmem>>, vector<1x4x32xbf16>
    %12 = vector.shape_cast %11 : vector<1x4x32xbf16> to vector<4x32xbf16>
    %cst_7 = arith.constant dense<0.000000e+00> : vector<288x32xf32>
    %13 = tpu.matmul %10, %12, %cst_7 {dimension_numbers = #tpu.dot_dimension_numbers<[1], [0], [0], [1], [0, 0, 1, 1], [], []>} : vector<288x4xbf16>, vector<4x32xbf16>, vector<288x32xf32> -> vector<288x32xf32>
    %14 = arith.addf %4, %13 : vector<288x32xf32>
    %c0_i32_8 = arith.constant 0 : i32
    %15 = arith.addi %3, %c0_i32_8 : i32
    %c1_i32 = arith.constant 1 : i32
    %16 = arith.addi %15, %c1_i32 : i32
    %c0_9 = arith.constant 0 : index
    %17 = arith.index_cast %16 : i32 to index
    %c0_10 = arith.constant 0 : index
    %18 = vector.load %arg2[%c0_9, %17, %c0_10] : memref<1x342x4xf32, #tpu.memory_space<vmem>>, vector<1x288x4xf32>
    %19 = vector.shape_cast %18 : vector<1x288x4xf32> to vector<288x4xf32>
    %20 = arith.truncf %19 : vector<288x4xf32> to vector<288x4xbf16>
    %c1 = arith.constant 1 : index
    %c0_11 = arith.constant 0 : index
    %c0_12 = arith.constant 0 : index
    %21 = vector.load %arg3[%c1, %c0_11, %c0_12] : memref<9x4x32xbf16, #tpu.memory_space<vmem>>, vector<1x4x32xbf16>
    %22 = vector.shape_cast %21 : vector<1x4x32xbf16> to vector<4x32xbf16>
    %cst_13 = arith.constant dense<0.000000e+00> : vector<288x32xf32>
    %23 = tpu.matmul %20, %22, %cst_13 {dimension_numbers = #tpu.dot_dimension_numbers<[1], [0], [0], [1], [0, 0, 1, 1], [], []>} : vector<288x4xbf16>, vector<4x32xbf16>, vector<288x32xf32> -> vector<288x32xf32>
    %24 = arith.addf %14, %23 : vector<288x32xf32>
    %c0_i32_14 = arith.constant 0 : i32
    %25 = arith.addi %3, %c0_i32_14 : i32
    %c2_i32 = arith.constant 2 : i32
    %26 = arith.addi %25, %c2_i32 : i32
    %c0_15 = arith.constant 0 : index
    %27 = arith.index_cast %26 : i32 to index
    %c0_16 = arith.constant 0 : index
    %28 = vector.load %arg2[%c0_15, %27, %c0_16] : memref<1x342x4xf32, #tpu.memory_space<vmem>>, vector<1x288x4xf32>
    %29 = vector.shape_cast %28 : vector<1x288x4xf32> to vector<288x4xf32>
    %30 = arith.truncf %29 : vector<288x4xf32> to vector<288x4xbf16>
    %c2 = arith.constant 2 : index
    %c0_17 = arith.constant 0 : index
    %c0_18 = arith.constant 0 : index
    %31 = vector.load %arg3[%c2, %c0_17, %c0_18] : memref<9x4x32xbf16, #tpu.memory_space<vmem>>, vector<1x4x32xbf16>
    %32 = vector.shape_cast %31 : vector<1x4x32xbf16> to vector<4x32xbf16>
    %cst_19 = arith.constant dense<0.000000e+00> : vector<288x32xf32>
    %33 = tpu.matmul %30, %32, %cst_19 {dimension_numbers = #tpu.dot_dimension_numbers<[1], [0], [0], [1], [0, 0, 1, 1], [], []>} : vector<288x4xbf16>, vector<4x32xbf16>, vector<288x32xf32> -> vector<288x32xf32>
    %34 = arith.addf %24, %33 : vector<288x32xf32>
    %c18_i32 = arith.constant 18 : i32
    %35 = arith.addi %3, %c18_i32 : i32
    %c0_i32_20 = arith.constant 0 : i32
    %36 = arith.addi %35, %c0_i32_20 : i32
    %c0_21 = arith.constant 0 : index
    %37 = arith.index_cast %36 : i32 to index
    %c0_22 = arith.constant 0 : index
    %38 = vector.load %arg2[%c0_21, %37, %c0_22] : memref<1x342x4xf32, #tpu.memory_space<vmem>>, vector<1x288x4xf32>
    %39 = vector.shape_cast %38 : vector<1x288x4xf32> to vector<288x4xf32>
    %40 = arith.truncf %39 : vector<288x4xf32> to vector<288x4xbf16>
    %c3 = arith.constant 3 : index
    %c0_23 = arith.constant 0 : index
    %c0_24 = arith.constant 0 : index
    %41 = vector.load %arg3[%c3, %c0_23, %c0_24] : memref<9x4x32xbf16, #tpu.memory_space<vmem>>, vector<1x4x32xbf16>
    %42 = vector.shape_cast %41 : vector<1x4x32xbf16> to vector<4x32xbf16>
    %cst_25 = arith.constant dense<0.000000e+00> : vector<288x32xf32>
    %43 = tpu.matmul %40, %42, %cst_25 {dimension_numbers = #tpu.dot_dimension_numbers<[1], [0], [0], [1], [0, 0, 1, 1], [], []>} : vector<288x4xbf16>, vector<4x32xbf16>, vector<288x32xf32> -> vector<288x32xf32>
    %44 = arith.addf %34, %43 : vector<288x32xf32>
    %c18_i32_26 = arith.constant 18 : i32
    %45 = arith.addi %3, %c18_i32_26 : i32
    %c1_i32_27 = arith.constant 1 : i32
    %46 = arith.addi %45, %c1_i32_27 : i32
    %c0_28 = arith.constant 0 : index
    %47 = arith.index_cast %46 : i32 to index
    %c0_29 = arith.constant 0 : index
    %48 = vector.load %arg2[%c0_28, %47, %c0_29] : memref<1x342x4xf32, #tpu.memory_space<vmem>>, vector<1x288x4xf32>
    %49 = vector.shape_cast %48 : vector<1x288x4xf32> to vector<288x4xf32>
    %50 = arith.truncf %49 : vector<288x4xf32> to vector<288x4xbf16>
    %c4 = arith.constant 4 : index
    %c0_30 = arith.constant 0 : index
    %c0_31 = arith.constant 0 : index
    %51 = vector.load %arg3[%c4, %c0_30, %c0_31] : memref<9x4x32xbf16, #tpu.memory_space<vmem>>, vector<1x4x32xbf16>
    %52 = vector.shape_cast %51 : vector<1x4x32xbf16> to vector<4x32xbf16>
    %cst_32 = arith.constant dense<0.000000e+00> : vector<288x32xf32>
    %53 = tpu.matmul %50, %52, %cst_32 {dimension_numbers = #tpu.dot_dimension_numbers<[1], [0], [0], [1], [0, 0, 1, 1], [], []>} : vector<288x4xbf16>, vector<4x32xbf16>, vector<288x32xf32> -> vector<288x32xf32>
    %54 = arith.addf %44, %53 : vector<288x32xf32>
    %c18_i32_33 = arith.constant 18 : i32
    %55 = arith.addi %3, %c18_i32_33 : i32
    %c2_i32_34 = arith.constant 2 : i32
    %56 = arith.addi %55, %c2_i32_34 : i32
    %c0_35 = arith.constant 0 : index
    %57 = arith.index_cast %56 : i32 to index
    %c0_36 = arith.constant 0 : index
    %58 = vector.load %arg2[%c0_35, %57, %c0_36] : memref<1x342x4xf32, #tpu.memory_space<vmem>>, vector<1x288x4xf32>
    %59 = vector.shape_cast %58 : vector<1x288x4xf32> to vector<288x4xf32>
    %60 = arith.truncf %59 : vector<288x4xf32> to vector<288x4xbf16>
    %c5 = arith.constant 5 : index
    %c0_37 = arith.constant 0 : index
    %c0_38 = arith.constant 0 : index
    %61 = vector.load %arg3[%c5, %c0_37, %c0_38] : memref<9x4x32xbf16, #tpu.memory_space<vmem>>, vector<1x4x32xbf16>
    %62 = vector.shape_cast %61 : vector<1x4x32xbf16> to vector<4x32xbf16>
    %cst_39 = arith.constant dense<0.000000e+00> : vector<288x32xf32>
    %63 = tpu.matmul %60, %62, %cst_39 {dimension_numbers = #tpu.dot_dimension_numbers<[1], [0], [0], [1], [0, 0, 1, 1], [], []>} : vector<288x4xbf16>, vector<4x32xbf16>, vector<288x32xf32> -> vector<288x32xf32>
    %64 = arith.addf %54, %63 : vector<288x32xf32>
    %c36_i32 = arith.constant 36 : i32
    %65 = arith.addi %3, %c36_i32 : i32
    %c0_i32_40 = arith.constant 0 : i32
    %66 = arith.addi %65, %c0_i32_40 : i32
    %c0_41 = arith.constant 0 : index
    %67 = arith.index_cast %66 : i32 to index
    %c0_42 = arith.constant 0 : index
    %68 = vector.load %arg2[%c0_41, %67, %c0_42] : memref<1x342x4xf32, #tpu.memory_space<vmem>>, vector<1x288x4xf32>
    %69 = vector.shape_cast %68 : vector<1x288x4xf32> to vector<288x4xf32>
    %70 = arith.truncf %69 : vector<288x4xf32> to vector<288x4xbf16>
    %c6 = arith.constant 6 : index
    %c0_43 = arith.constant 0 : index
    %c0_44 = arith.constant 0 : index
    %71 = vector.load %arg3[%c6, %c0_43, %c0_44] : memref<9x4x32xbf16, #tpu.memory_space<vmem>>, vector<1x4x32xbf16>
    %72 = vector.shape_cast %71 : vector<1x4x32xbf16> to vector<4x32xbf16>
    %cst_45 = arith.constant dense<0.000000e+00> : vector<288x32xf32>
    %73 = tpu.matmul %70, %72, %cst_45 {dimension_numbers = #tpu.dot_dimension_numbers<[1], [0], [0], [1], [0, 0, 1, 1], [], []>} : vector<288x4xbf16>, vector<4x32xbf16>, vector<288x32xf32> -> vector<288x32xf32>
    %74 = arith.addf %64, %73 : vector<288x32xf32>
    %c36_i32_46 = arith.constant 36 : i32
    %75 = arith.addi %3, %c36_i32_46 : i32
    %c1_i32_47 = arith.constant 1 : i32
    %76 = arith.addi %75, %c1_i32_47 : i32
    %c0_48 = arith.constant 0 : index
    %77 = arith.index_cast %76 : i32 to index
    %c0_49 = arith.constant 0 : index
    %78 = vector.load %arg2[%c0_48, %77, %c0_49] : memref<1x342x4xf32, #tpu.memory_space<vmem>>, vector<1x288x4xf32>
    %79 = vector.shape_cast %78 : vector<1x288x4xf32> to vector<288x4xf32>
    %80 = arith.truncf %79 : vector<288x4xf32> to vector<288x4xbf16>
    %c7 = arith.constant 7 : index
    %c0_50 = arith.constant 0 : index
    %c0_51 = arith.constant 0 : index
    %81 = vector.load %arg3[%c7, %c0_50, %c0_51] : memref<9x4x32xbf16, #tpu.memory_space<vmem>>, vector<1x4x32xbf16>
    %82 = vector.shape_cast %81 : vector<1x4x32xbf16> to vector<4x32xbf16>
    %cst_52 = arith.constant dense<0.000000e+00> : vector<288x32xf32>
    %83 = tpu.matmul %80, %82, %cst_52 {dimension_numbers = #tpu.dot_dimension_numbers<[1], [0], [0], [1], [0, 0, 1, 1], [], []>} : vector<288x4xbf16>, vector<4x32xbf16>, vector<288x32xf32> -> vector<288x32xf32>
    %84 = arith.addf %74, %83 : vector<288x32xf32>
    %c36_i32_53 = arith.constant 36 : i32
    %85 = arith.addi %3, %c36_i32_53 : i32
    %c2_i32_54 = arith.constant 2 : i32
    %86 = arith.addi %85, %c2_i32_54 : i32
    %c0_55 = arith.constant 0 : index
    %87 = arith.index_cast %86 : i32 to index
    %c0_56 = arith.constant 0 : index
    %88 = vector.load %arg2[%c0_55, %87, %c0_56] : memref<1x342x4xf32, #tpu.memory_space<vmem>>, vector<1x288x4xf32>
    %89 = vector.shape_cast %88 : vector<1x288x4xf32> to vector<288x4xf32>
    %90 = arith.truncf %89 : vector<288x4xf32> to vector<288x4xbf16>
    %c8 = arith.constant 8 : index
    %c0_57 = arith.constant 0 : index
    %c0_58 = arith.constant 0 : index
    %91 = vector.load %arg3[%c8, %c0_57, %c0_58] : memref<9x4x32xbf16, #tpu.memory_space<vmem>>, vector<1x4x32xbf16>
    %92 = vector.shape_cast %91 : vector<1x4x32xbf16> to vector<4x32xbf16>
    %cst_59 = arith.constant dense<0.000000e+00> : vector<288x32xf32>
    %93 = tpu.matmul %90, %92, %cst_59 {dimension_numbers = #tpu.dot_dimension_numbers<[1], [0], [0], [1], [0, 0, 1, 1], [], []>} : vector<288x4xbf16>, vector<4x32xbf16>, vector<288x32xf32> -> vector<288x32xf32>
    %94 = arith.addf %84, %93 : vector<288x32xf32>
    %c0_60 = arith.constant 0 : index
    %c0_61 = arith.constant 0 : index
    %95 = vector.load %arg4[%c0_60, %c0_61] : memref<1x32xf32, #tpu.memory_space<vmem>>, vector<1x32xf32>
    %96 = vector.broadcast %95 : vector<1x32xf32> to vector<288x32xf32>
    %97 = arith.addf %94, %96 : vector<288x32xf32>
    %cst_62 = arith.constant 0.000000e+00 : f32
    %98 = vector.broadcast %cst_62 : f32 to vector<288x32xf32>
    %99 = arith.maximumf %97, %98 : vector<288x32xf32>
    %c0_63 = arith.constant 0 : index
    %c0_64 = arith.constant 0 : index
    %100 = vector.load %arg5[%c0_63, %c0_64] : memref<288x1xf32, #tpu.memory_space<vmem>>, vector<288x1xf32>
    %101 = vector.broadcast %100 : vector<288x1xf32> to vector<288x32xf32>
    %102 = arith.mulf %99, %101 : vector<288x32xf32>
    %c0_65 = arith.constant 0 : index
    %c0_66 = arith.constant 0 : index
    %103 = vector.load %arg15[%c0_65, %c0_66] : memref<1x32xf32, #tpu.memory_space<vmem>>, vector<1x32xf32>
    %cst_67 = arith.constant dense<0.000000e+00> : vector<32xf32>
    %104 = vector.multi_reduction <add>, %102, %cst_67 [0] : vector<288x32xf32> to vector<32xf32>
    %105 = vector.shape_cast %104 : vector<32xf32> to vector<1x32xf32>
    %106 = arith.addf %103, %105 : vector<1x32xf32>
    %c0_68 = arith.constant 0 : index
    %c0_69 = arith.constant 0 : index
    %107 = vector.load %arg15[%c0_68, %c0_69] : memref<1x32xf32, #tpu.memory_space<vmem>>, vector<1x32xf32>
    tpu.vector_store %arg15[%c0_68, %c0_69], %106 {strides = array<i32>} : memref<1x32xf32, #tpu.memory_space<vmem>>, vector<1x32xf32>,
    %c0_i32_70 = arith.constant 0 : i32
    %108 = arith.cmpi eq, %arg1, %c0_i32_70 : i32
    %109 = arith.extui %108 : i1 to i32
    %c0_i32_71 = arith.constant 0 : i32
    %110 = arith.cmpi ne, %109, %c0_i32_71 : i32
    scf.if %110 {
      %c0_72 = arith.constant 0 : index
      %c0_73 = arith.constant 0 : index
      %111 = vector.load %arg15[%c0_72, %c0_73] : memref<1x32xf32, #tpu.memory_space<vmem>>, vector<1x32xf32>
      %cst_74 = arith.constant 3.906250e-03 : f32
      %112 = vector.broadcast %cst_74 : f32 to vector<1x32xf32>
      %113 = arith.mulf %111, %112 : vector<1x32xf32>
      %c0_75 = arith.constant 0 : index
      %c0_76 = arith.constant 0 : index
      %114 = vector.load %arg6[%c0_75, %c0_76] : memref<32x128xf32, #tpu.memory_space<vmem>>, vector<32x128xf32>
      %cst_77 = arith.constant dense<0.000000e+00> : vector<1x128xf32>
      %115 = tpu.matmul %113, %114, %cst_77 {dimension_numbers = #tpu.dot_dimension_numbers<[1], [0], [0], [1], [0, 0, 1, 1], [], []>} : vector<1x32xf32>, vector<32x128xf32>, vector<1x128xf32> -> vector<1x128xf32>
      %c0_78 = arith.constant 0 : index
      %c0_79 = arith.constant 0 : index
      %116 = vector.load %arg7[%c0_78, %c0_79] : memref<1x128xf32, #tpu.memory_space<vmem>>, vector<1x128xf32>
      %117 = arith.addf %115, %116 : vector<1x128xf32>
      %c0_80 = arith.constant 0 : index
      %c0_81 = arith.constant 0 : index
      %118 = vector.load %arg8[%c0_80, %c0_81] : memref<32x128xf32, #tpu.memory_space<vmem>>, vector<32x128xf32>
      %cst_82 = arith.constant dense<0.000000e+00> : vector<1x128xf32>
      %119 = tpu.matmul %113, %118, %cst_82 {dimension_numbers = #tpu.dot_dimension_numbers<[1], [0], [0], [1], [0, 0, 1, 1], [], []>} : vector<1x32xf32>, vector<32x128xf32>, vector<1x128xf32> -> vector<1x128xf32>
      %c0_83 = arith.constant 0 : index
      %c0_84 = arith.constant 0 : index
      %120 = vector.load %arg9[%c0_83, %c0_84] : memref<1x128xf32, #tpu.memory_space<vmem>>, vector<1x128xf32>
      %121 = arith.addf %119, %120 : vector<1x128xf32>
      %cst_85 = arith.constant 0.000000e+00 : f32
      %122 = vector.broadcast %cst_85 : f32 to vector<1x128xf32>
      %123 = arith.maximumf %121, %122 : vector<1x128xf32>
      %c0_86 = arith.constant 0 : index
      %c0_87 = arith.constant 0 : index
      %124 = vector.load %arg10[%c0_86, %c0_87] : memref<128x128xf32, #tpu.memory_space<vmem>>, vector<128x128xf32>
      %cst_88 = arith.constant dense<0.000000e+00> : vector<1x128xf32>
      %125 = tpu.matmul %123, %124, %cst_88 {dimension_numbers = #tpu.dot_dimension_numbers<[1], [0], [0], [1], [0, 0, 1, 1], [], []>} : vector<1x128xf32>, vector<128x128xf32>, vector<1x128xf32> -> vector<1x128xf32>
      %c0_89 = arith.constant 0 : index
      %c0_90 = arith.constant 0 : index
      %126 = vector.load %arg11[%c0_89, %c0_90] : memref<1x128xf32, #tpu.memory_space<vmem>>, vector<1x128xf32>
      %127 = arith.addf %125, %126 : vector<1x128xf32>
      %cst_91 = arith.constant 0.000000e+00 : f32
      %128 = vector.broadcast %cst_91 : f32 to vector<1x128xf32>
      %129 = arith.maximumf %127, %128 : vector<1x128xf32>
      %c0_92 = arith.constant 0 : index
      %c0_93 = arith.constant 0 : index
      %130 = vector.load %arg12[%c0_92, %c0_93] : memref<128x128xf32, #tpu.memory_space<vmem>>, vector<128x128xf32>
      %cst_94 = arith.constant dense<0.000000e+00> : vector<1x128xf32>
      %131 = tpu.matmul %129, %130, %cst_94 {dimension_numbers = #tpu.dot_dimension_numbers<[1], [0], [0], [1], [0, 0, 1, 1], [], []>} : vector<1x128xf32>, vector<128x128xf32>, vector<1x128xf32> -> vector<1x128xf32>
      %c0_95 = arith.constant 0 : index
      %c0_96 = arith.constant 0 : index
      %132 = vector.load %arg13[%c0_95, %c0_96] : memref<1x128xf32, #tpu.memory_space<vmem>>, vector<1x128xf32>
      %133 = arith.addf %131, %132 : vector<1x128xf32>
      %134 = arith.addf %117, %133 : vector<1x128xf32>
      %c0_97 = arith.constant 0 : index
      %c0_98 = arith.constant 0 : index
      %c0_99 = arith.constant 0 : index
      %135 = vector.load %arg14[%c0_97, %c0_98, %c0_99] : memref<1x1x128xf32, #tpu.memory_space<vmem>>, vector<1x1x128xf32>
      %136 = vector.shape_cast %135 : vector<1x1x128xf32> to vector<1x128xf32>
      %137 = vector.shape_cast %134 : vector<1x128xf32> to vector<1x1x128xf32>
      tpu.vector_store %arg14[%c0_97, %c0_98, %c0_99], %137 {strides = array<i32>} : memref<1x1x128xf32, #tpu.memory_space<vmem>>, vector<1x1x128xf32>,
    } else {
    }
    return
  }
  func.func @transform_0(%arg0: i32, %arg1: i32) -> (i32, i32, i32) {
    %c0_i32 = arith.constant 0 : i32
    %c0_i32_0 = arith.constant 0 : i32
    %c0_i32_1 = arith.constant 0 : i32
    return %arg0, %c0_i32, %c0_i32_0 : i32, i32, i32
  }
  func.func @transform_1(%arg0: i32, %arg1: i32) -> (i32, i32, i32) {
    %c0_i32 = arith.constant 0 : i32
    %c0_i32_0 = arith.constant 0 : i32
    %c0_i32_1 = arith.constant 0 : i32
    %c0_i32_2 = arith.constant 0 : i32
    return %c0_i32, %c0_i32_0, %c0_i32_1 : i32, i32, i32
  }
  func.func @transform_2(%arg0: i32, %arg1: i32) -> (i32, i32) {
    %c0_i32 = arith.constant 0 : i32
    %c0_i32_0 = arith.constant 0 : i32
    %c0_i32_1 = arith.constant 0 : i32
    return %c0_i32, %c0_i32_0 : i32, i32
  }
  func.func @transform_3(%arg0: i32, %arg1: i32) -> (i32, i32) {
    %c0_i32 = arith.constant 0 : i32
    %c0_i32_0 = arith.constant 0 : i32
    %c0_i32_1 = arith.constant 0 : i32
    return %c0_i32, %c0_i32_0 : i32, i32
  }
  func.func @transform_4(%arg0: i32, %arg1: i32) -> (i32, i32) {
    %c0_i32 = arith.constant 0 : i32
    %c0_i32_0 = arith.constant 0 : i32
    %c0_i32_1 = arith.constant 0 : i32
    return %c0_i32, %c0_i32_0 : i32, i32
  }
  func.func @transform_5(%arg0: i32, %arg1: i32) -> (i32, i32) {
    %c0_i32 = arith.constant 0 : i32
    %c0_i32_0 = arith.constant 0 : i32
    %c0_i32_1 = arith.constant 0 : i32
    return %c0_i32, %c0_i32_0 : i32, i32
  }
  func.func @transform_6(%arg0: i32, %arg1: i32) -> (i32, i32) {
    %c0_i32 = arith.constant 0 : i32
    %c0_i32_0 = arith.constant 0 : i32
    %c0_i32_1 = arith.constant 0 : i32
    return %c0_i32, %c0_i32_0 : i32, i32
  }
  func.func @transform_7(%arg0: i32, %arg1: i32) -> (i32, i32) {
    %c0_i32 = arith.constant 0 : i32
    %c0_i32_0 = arith.constant 0 : i32
    %c0_i32_1 = arith.constant 0 : i32
    return %c0_i32, %c0_i32_0 : i32, i32
  }
  func.func @transform_8(%arg0: i32, %arg1: i32) -> (i32, i32) {
    %c0_i32 = arith.constant 0 : i32
    %c0_i32_0 = arith.constant 0 : i32
    %c0_i32_1 = arith.constant 0 : i32
    return %c0_i32, %c0_i32_0 : i32, i32
  }
  func.func @transform_9(%arg0: i32, %arg1: i32) -> (i32, i32) {
    %c0_i32 = arith.constant 0 : i32
    %c0_i32_0 = arith.constant 0 : i32
    %c0_i32_1 = arith.constant 0 : i32
    return %c0_i32, %c0_i32_0 : i32, i32
  }
  func.func @transform_10(%arg0: i32, %arg1: i32) -> (i32, i32) {
    %c0_i32 = arith.constant 0 : i32
    %c0_i32_0 = arith.constant 0 : i32
    %c0_i32_1 = arith.constant 0 : i32
    return %c0_i32, %c0_i32_0 : i32, i32
  }
  func.func @transform_11(%arg0: i32, %arg1: i32) -> (i32, i32) {
    %c0_i32 = arith.constant 0 : i32
    %c0_i32_0 = arith.constant 0 : i32
    %c0_i32_1 = arith.constant 0 : i32
    return %c0_i32, %c0_i32_0 : i32, i32
  }
  func.func @transform_12(%arg0: i32, %arg1: i32) -> (i32, i32, i32) {
    %c0_i32 = arith.constant 0 : i32
    %c0_i32_0 = arith.constant 0 : i32
    %c0_i32_1 = arith.constant 0 : i32
    return %arg0, %c0_i32, %c0_i32_0 : i32, i32, i32
  }
}

</mosaic_0001>

<llo_original>
// kernel: adversarial_forward.1
$region0: #{adversarial_forward.1}
  #allocation0 [shape = 'u32[]', space=smem, size = 0x4, offset = 0x4, fixed_abs, tag = 'smem constant byte address 0x4 - core index']
  #allocation1 [shape = 'u32[72,128]{1,0:T(1,128)}', space=vmem, size = 0x9000, scoped, tag = 'internal scratch']
  #allocation2 [shape = 'f32[1,32]{1,0:T(1,128)}', space=vmem, size = 0x200, scoped, tag = 'scratch operand']
  %s0 = inlined_call_operand.vmem [shape: f32[2,342,4], index: 0, kind: input, shape index: {}]
  %s1 = inlined_call_operand.vmem [shape: bf16[9,4,32], index: 1, kind: input, shape index: {}]
  %s2 = inlined_call_operand.vmem [shape: f32[1,32], index: 2, kind: input, shape index: {}]
  %s3 = inlined_call_operand.vmem [shape: f32[288,1], index: 3, kind: input, shape index: {}]
  %s4 = inlined_call_operand.vmem [shape: f32[32,128], index: 4, kind: input, shape index: {}]
  %s5 = inlined_call_operand.vmem [shape: f32[1,128], index: 5, kind: input, shape index: {}]
  %s6 = inlined_call_operand.vmem [shape: f32[32,128], index: 6, kind: input, shape index: {}]
  %s7 = inlined_call_operand.vmem [shape: f32[1,128], index: 7, kind: input, shape index: {}]
  %s8 = inlined_call_operand.vmem [shape: f32[128,128], index: 8, kind: input, shape index: {}]
  %s9 = inlined_call_operand.vmem [shape: f32[1,128], index: 9, kind: input, shape index: {}]
  %s10 = inlined_call_operand.vmem [shape: f32[128,128], index: 10, kind: input, shape index: {}]
  %s11 = inlined_call_operand.vmem [shape: f32[1,128], index: 11, kind: input, shape index: {}]
  %s12 = inlined_call_operand.vmem [shape: f32[2,1,128], index: 12, kind: output, shape index: {}]
  %s13 = sld [smem:[#allocation0]]
  $region89: #{adversarial_forward.1} parent=0
    _
  %s15 = ssub.s32 1, %s13
  %s16 = scalar_select 0, %s15, %s13
  loop: start=0, step=1, limit=4
  $region2: #{adversarial_forward.1} parent=0 // loop_pre_header
    _
  $region3: #{adversarial_forward.1} parent=0 // loop_header
    %s18 = sphi 0, %s22
    %p19 = scmp.ge.s32.totalorder %s18, 4
    %s25 = sphi 0, %s37
    %s26 = sphi 0, %s33
    %s27 = sphi 0, %s25
    %s28 = sphi 0, %s26
    %s29 = sphi 0, %s27
    %s30 = sphi 0, %s28
    %s40 = sphi 0, %s42
    %s43 = sphi 0, %s40
    %s44 = sphi 0, %s43
    %s60 = sphi 0, %s44
    %s64 = sphi 0, %s64
    %s66 = sphi 0, %s64
    %s67 = sphi 0, %s66
    %s81 = sphi 0, %s67
    %s85 = sphi 0, %s85
    %s87 = sphi 0, %s85
    %s88 = sphi 0, %s87
    %s102 = sphi 0, %s88
    %s106 = sphi 0, %s106
    %s108 = sphi 0, %s106
    %s109 = sphi 0, %s108
    %s123 = sphi 0, %s109
    %s127 = sphi 0, %s127
    %s129 = sphi 0, %s127
    %s130 = sphi 0, %s129
    %s144 = sphi 0, %s130
    %s148 = sphi 0, %s148
    %s150 = sphi 0, %s148
    %s151 = sphi 0, %s150
    %s165 = sphi 0, %s151
    %s169 = sphi 0, %s169
    %s171 = sphi 0, %s169
    %s172 = sphi 0, %s171
    %s186 = sphi 0, %s172
    %s190 = sphi 0, %s190
    %s192 = sphi 0, %s190
    %s193 = sphi 0, %s192
    %s207 = sphi 0, %s193
    %s211 = sphi 0, %s211
    %s213 = sphi 0, %s211
    %s214 = sphi 0, %s213
    %s228 = sphi 0, %s214
    %s232 = sphi 0, %s232
    %s234 = sphi 0, %s232
    %s235 = sphi 0, %s234
    %s249 = sphi 0, %s235
    %s253 = sphi 0, %s253
    %s255 = sphi 0, %s253
    %s256 = sphi 0, %s255
    %s270 = sphi 0, %s256
    %s274 = sphi 0, %s274
    %s276 = sphi 0, %s274
    %s277 = sphi 0, %s276
    %s291 = sphi 0, %s277
    %s297 = sphi 0, %s299
    %s300 = sphi 0, %s297
    %s301 = sphi 0, %s300
    %s317 = sphi 0, %s301
  $region4: #{adversarial_forward.1} parent=0 // loop_header_branch
    %21 = sbr.rel (%p19) target = $region8
  $region5: #{adversarial_forward.1} parent=0 // loop_body
    %s23 = ssub.s32 %s18, 1
    %s24 = ssub.s32 %s18, 2
    %s31 = sadd.s32 1, %s26
    %p32 = scmp.ge.s32.totalorder %s31, 1
    %s33 = scalar_select %p32, 0, %s31
    %s34 = sadd.s32 1, %s25
    %s35 = scalar_select %p32, %s34, %s25
    %p36 = scmp.ge.s32.totalorder %s35, 2
    %s37 = scalar_select %p36, 0, %s35
    %s38 = ssub.s32 %s25, %s37
    %p39 = scmp.eq.s32.totalorder %s38, 0
    %s41 = sadd.s32 %s40, 1
    %s42 = scalar_select %p39, %s40, %s41
    %p45 = pneg %p39
    %p46 = scmp.eq.s32.totalorder %s18, 1
    %p47 = por %p45, %p46
    %p48 = scmp.ne.s32.totalorder %s40, %s43
    %p49 = scmp.eq.s32.totalorder %s18, 0
    %p50 = por %p48, %p49
    %p51 = scmp.ne.s32.totalorder %s40, %s43
    %p52 = scmp.eq.s32.totalorder %s23, 1
    %p53 = por %p51, %p52
    %p54 = scmp.ne.s32.totalorder %s43, %s44
    %p55 = scmp.eq.s32.totalorder %s23, 0
    %p56 = por %p54, %p55
    %p57 = scmp.ne.s32.totalorder %s43, %s44
    %p58 = scmp.eq.s32.totalorder %s24, 1
    %p59 = por %p57, %p58
    %p61 = scmp.ne.s32.totalorder %s44, %s60
    %p62 = scmp.eq.s32.totalorder %s24, 0
    %p63 = por %p61, %p62
    %s65 = sadd.s32 %s64, 1
    %p68 = scmp.eq.s32.totalorder %s18, 1
    %p69 = scmp.ne.s32.totalorder %s64, %s66
    %p70 = scmp.eq.s32.totalorder %s18, 0
    %p71 = por %p69, %p70
    %p72 = scmp.ne.s32.totalorder %s64, %s66
    %p73 = scmp.eq.s32.totalorder %s23, 1
    %p74 = por %p72, %p73
    %p75 = scmp.ne.s32.totalorder %s66, %s67
    %p76 = scmp.eq.s32.totalorder %s23, 0
    %p77 = por %p75, %p76
    %p78 = scmp.ne.s32.totalorder %s66, %s67
    %p79 = scmp.eq.s32.totalorder %s24, 1
    %p80 = por %p78, %p79
    %p82 = scmp.ne.s32.totalorder %s67, %s81
    %p83 = scmp.eq.s32.totalorder %s24, 0
    %p84 = por %p82, %p83
    %s86 = sadd.s32 %s85, 1
    %p89 = scmp.eq.s32.totalorder %s18, 1
    %p90 = scmp.ne.s32.totalorder %s85, %s87
    %p91 = scmp.eq.s32.totalorder %s18, 0
    %p92 = por %p90, %p91
    %p93 = scmp.ne.s32.totalorder %s85, %s87
    %p94 = scmp.eq.s32.totalorder %s23, 1
    %p95 = por %p93, %p94
    %p96 = scmp.ne.s32.totalorder %s87, %s88
    %p97 = scmp.eq.s32.totalorder %s23, 0
    %p98 = por %p96, %p97
    %p99 = scmp.ne.s32.totalorder %s87, %s88
    %p100 = scmp.eq.s32.totalorder %s24, 1
    %p101 = por %p99, %p100
    %p103 = scmp.ne.s32.totalorder %s88, %s102
    %p104 = scmp.eq.s32.totalorder %s24, 0
    %p105 = por %p103, %p104
    %s107 = sadd.s32 %s106, 1
    %p110 = scmp.eq.s32.totalorder %s18, 1
    %p111 = scmp.ne.s32.totalorder %s106, %s108
    %p112 = scmp.eq.s32.totalorder %s18, 0
    %p113 = por %p111, %p112
    %p114 = scmp.ne.s32.totalorder %s106, %s108
    %p115 = scmp.eq.s32.totalorder %s23, 1
    %p116 = por %p114, %p115
    %p117 = scmp.ne.s32.totalorder %s108, %s109
    %p118 = scmp.eq.s32.totalorder %s23, 0
    %p119 = por %p117, %p118
    %p120 = scmp.ne.s32.totalorder %s108, %s109
    %p121 = scmp.eq.s32.totalorder %s24, 1
    %p122 = por %p120, %p121
    %p124 = scmp.ne.s32.totalorder %s109, %s123
    %p125 = scmp.eq.s32.totalorder %s24, 0
    %p126 = por %p124, %p125
    %s128 = sadd.s32 %s127, 1
    %p131 = scmp.eq.s32.totalorder %s18, 1
    %p132 = scmp.ne.s32.totalorder %s127, %s129
    %p133 = scmp.eq.s32.totalorder %s18, 0
    %p134 = por %p132, %p133
    %p135 = scmp.ne.s32.totalorder %s127, %s129
    %p136 = scmp.eq.s32.totalorder %s23, 1
    %p137 = por %p135, %p136
    %p138 = scmp.ne.s32.totalorder %s129, %s130
    %p139 = scmp.eq.s32.totalorder %s23, 0
    %p140 = por %p138, %p139
    %p141 = scmp.ne.s32.totalorder %s129, %s130
    %p142 = scmp.eq.s32.totalorder %s24, 1
    %p143 = por %p141, %p142
    %p145 = scmp.ne.s32.totalorder %s130, %s144
    %p146 = scmp.eq.s32.totalorder %s24, 0
    %p147 = por %p145, %p146
    %s149 = sadd.s32 %s148, 1
    %p152 = scmp.eq.s32.totalorder %s18, 1
    %p153 = scmp.ne.s32.totalorder %s148, %s150
    %p154 = scmp.eq.s32.totalorder %s18, 0
    %p155 = por %p153, %p154
    %p156 = scmp.ne.s32.totalorder %s148, %s150
    %p157 = scmp.eq.s32.totalorder %s23, 1
    %p158 = por %p156, %p157
    %p159 = scmp.ne.s32.totalorder %s150, %s151
    %p160 = scmp.eq.s32.totalorder %s23, 0
    %p161 = por %p159, %p160
    %p162 = scmp.ne.s32.totalorder %s150, %s151
    %p163 = scmp.eq.s32.totalorder %s24, 1
    %p164 = por %p162, %p163
    %p166 = scmp.ne.s32.totalorder %s151, %s165
    %p167 = scmp.eq.s32.totalorder %s24, 0
    %p168 = por %p166, %p167
    %s170 = sadd.s32 %s169, 1
    %p173 = scmp.eq.s32.totalorder %s18, 1
    %p174 = scmp.ne.s32.totalorder %s169, %s171
    %p175 = scmp.eq.s32.totalorder %s18, 0
    %p176 = por %p174, %p175
    %p177 = scmp.ne.s32.totalorder %s169, %s171
    %p178 = scmp.eq.s32.totalorder %s23, 1
    %p179 = por %p177, %p178
    %p180 = scmp.ne.s32.totalorder %s171, %s172
    %p181 = scmp.eq.s32.totalorder %s23, 0
    %p182 = por %p180, %p181
    %p183 = scmp.ne.s32.totalorder %s171, %s172
    %p184 = scmp.eq.s32.totalorder %s24, 1
    %p185 = por %p183, %p184
    %p187 = scmp.ne.s32.totalorder %s172, %s186
    %p188 = scmp.eq.s32.totalorder %s24, 0
    %p189 = por %p187, %p188
    %s191 = sadd.s32 %s190, 1
    %p194 = scmp.eq.s32.totalorder %s18, 1
    %p195 = scmp.ne.s32.totalorder %s190, %s192
    %p196 = scmp.eq.s32.totalorder %s18, 0
    %p197 = por %p195, %p196
    %p198 = scmp.ne.s32.totalorder %s190, %s192
    %p199 = scmp.eq.s32.totalorder %s23, 1
    %p200 = por %p198, %p199
    %p201 = scmp.ne.s32.totalorder %s192, %s193
    %p202 = scmp.eq.s32.totalorder %s23, 0
    %p203 = por %p201, %p202
    %p204 = scmp.ne.s32.totalorder %s192, %s193
    %p205 = scmp.eq.s32.totalorder %s24, 1
    %p206 = por %p204, %p205
    %p208 = scmp.ne.s32.totalorder %s193, %s207
    %p209 = scmp.eq.s32.totalorder %s24, 0
    %p210 = por %p208, %p209
    %s212 = sadd.s32 %s211, 1
    %p215 = scmp.eq.s32.totalorder %s18, 1
    %p216 = scmp.ne.s32.totalorder %s211, %s213
    %p217 = scmp.eq.s32.totalorder %s18, 0
    %p218 = por %p216, %p217
    %p219 = scmp.ne.s32.totalorder %s211, %s213
    %p220 = scmp.eq.s32.totalorder %s23, 1
    %p221 = por %p219, %p220
    %p222 = scmp.ne.s32.totalorder %s213, %s214
    %p223 = scmp.eq.s32.totalorder %s23, 0
    %p224 = por %p222, %p223
    %p225 = scmp.ne.s32.totalorder %s213, %s214
    %p226 = scmp.eq.s32.totalorder %s24, 1
    %p227 = por %p225, %p226
    %p229 = scmp.ne.s32.totalorder %s214, %s228
    %p230 = scmp.eq.s32.totalorder %s24, 0
    %p231 = por %p229, %p230
    %s233 = sadd.s32 %s232, 1
    %p236 = scmp.eq.s32.totalorder %s18, 1
    %p237 = scmp.ne.s32.totalorder %s232, %s234
    %p238 = scmp.eq.s32.totalorder %s18, 0
    %p239 = por %p237, %p238
    %p240 = scmp.ne.s32.totalorder %s232, %s234
    %p241 = scmp.eq.s32.totalorder %s23, 1
    %p242 = por %p240, %p241
    %p243 = scmp.ne.s32.totalorder %s234, %s235
    %p244 = scmp.eq.s32.totalorder %s23, 0
    %p245 = por %p243, %p244
    %p246 = scmp.ne.s32.totalorder %s234, %s235
    %p247 = scmp.eq.s32.totalorder %s24, 1
    %p248 = por %p246, %p247
    %p250 = scmp.ne.s32.totalorder %s235, %s249
    %p251 = scmp.eq.s32.totalorder %s24, 0
    %p252 = por %p250, %p251
    %s254 = sadd.s32 %s253, 1
    %p257 = scmp.eq.s32.totalorder %s18, 1
    %p258 = scmp.ne.s32.totalorder %s253, %s255
    %p259 = scmp.eq.s32.totalorder %s18, 0
    %p260 = por %p258, %p259
    %p261 = scmp.ne.s32.totalorder %s253, %s255
    %p262 = scmp.eq.s32.totalorder %s23, 1
    %p263 = por %p261, %p262
    %p264 = scmp.ne.s32.totalorder %s255, %s256
    %p265 = scmp.eq.s32.totalorder %s23, 0
    %p266 = por %p264, %p265
    %p267 = scmp.ne.s32.totalorder %s255, %s256
    %p268 = scmp.eq.s32.totalorder %s24, 1
    %p269 = por %p267, %p268
    %p271 = scmp.ne.s32.totalorder %s256, %s270
    %p272 = scmp.eq.s32.totalorder %s24, 0
    %p273 = por %p271, %p272
    %s275 = sadd.s32 %s274, 1
    %p278 = scmp.eq.s32.totalorder %s18, 1
    %p279 = scmp.ne.s32.totalorder %s274, %s276
    %p280 = scmp.eq.s32.totalorder %s18, 0
    %p281 = por %p279, %p280
    %p282 = scmp.ne.s32.totalorder %s274, %s276
    %p283 = scmp.eq.s32.totalorder %s23, 1
    %p284 = por %p282, %p283
    %p285 = scmp.ne.s32.totalorder %s276, %s277
    %p286 = scmp.eq.s32.totalorder %s23, 0
    %p287 = por %p285, %p286
    %p288 = scmp.ne.s32.totalorder %s276, %s277
    %p289 = scmp.eq.s32.totalorder %s24, 1
    %p290 = por %p288, %p289
    %p292 = scmp.ne.s32.totalorder %s277, %s291
    %p293 = scmp.eq.s32.totalorder %s24, 0
    %p294 = por %p292, %p293
    %s295 = ssub.s32 %s25, %s37
    %p296 = scmp.eq.s32.totalorder %s295, 0
    %s298 = sadd.s32 %s297, 1
    %s299 = scalar_select %p296, %s297, %s298
    %p302 = pneg %p296
    %p303 = scmp.eq.s32.totalorder %s18, 1
    %p304 = por %p302, %p303
    %p305 = scmp.ne.s32.totalorder %s297, %s300
    %p306 = scmp.eq.s32.totalorder %s18, 0
    %p307 = por %p305, %p306
    %p308 = scmp.ne.s32.totalorder %s297, %s300
    %p309 = scmp.eq.s32.totalorder %s23, 1
    %p310 = por %p308, %p309
    %p311 = scmp.ne.s32.totalorder %s300, %s301
    %p312 = scmp.eq.s32.totalorder %s23, 0
    %p313 = por %p311, %p312
    %p314 = scmp.ne.s32.totalorder %s300, %s301
    %p315 = scmp.eq.s32.totalorder %s24, 1
    %p316 = por %p314, %p315
    %p318 = scmp.ne.s32.totalorder %s301, %s317
    %p319 = scmp.eq.s32.totalorder %s24, 0
    %p320 = por %p318, %p319
    %p321 = scmp.le.s32.totalorder 1, %s18
    %p322 = scmp.lt.s32.totalorder %s18, 3
    %p323 = pnand %p321, %p322
    %p324 = pneg %p323
    // Predicated region
    $region9: #{adversarial_forward.1} parent=5 // pred_check
      _
    $region10: #{adversarial_forward.1} parent=5 // pred_check_branch
      %326 = sbr.rel (%p323) target = $region12
    $region11: #{adversarial_forward.1} parent=5 // pred_region
      %s327 = ssub.s32 %s18, 1
      // Predicated region
      $region13: #{adversarial_forward.1} parent=11 // pred_check
        %p328 = pneg %p77
      $region14: #{adversarial_forward.1} parent=11 // pred_check_branch
        %330 = sbr.rel (%p328) target = $region16
      $region15: #{adversarial_forward.1} parent=11 // pred_region
        _
      $region16: #{adversarial_forward.1} parent=11 // pred_fallthru
        _
      // Predicated region
      $region17: #{adversarial_forward.1} parent=11 // pred_check
        %p331 = pneg %p98
      $region18: #{adversarial_forward.1} parent=11 // pred_check_branch
        %333 = sbr.rel (%p331) target = $region20
      $region19: #{adversarial_forward.1} parent=11 // pred_region
        _
      $region20: #{adversarial_forward.1} parent=11 // pred_fallthru
        _
      // Predicated region
      $region21: #{adversarial_forward.1} parent=11 // pred_check
        %p334 = pneg %p119
      $region22: #{adversarial_forward.1} parent=11 // pred_check_branch
        %336 = sbr.rel (%p334) target = $region24
      $region23: #{adversarial_forward.1} parent=11 // pred_region
        _
      $region24: #{adversarial_forward.1} parent=11 // pred_fallthru
        _
      // Predicated region
      $region25: #{adversarial_forward.1} parent=11 // pred_check
        %p337 = pneg %p140
      $region26: #{adversarial_forward.1} parent=11 // pred_check_branch
        %339 = sbr.rel (%p337) target = $region28
      $region27: #{adversarial_forward.1} parent=11 // pred_region
        _
      $region28: #{adversarial_forward.1} parent=11 // pred_fallthru
        _
      // Predicated region
      $region29: #{adversarial_forward.1} parent=11 // pred_check
        %p340 = pneg %p161
      $region30: #{adversarial_forward.1} parent=11 // pred_check_branch
        %342 = sbr.rel (%p340) target = $region32
      $region31: #{adversarial_forward.1} parent=11 // pred_region
        _
      $region32: #{adversarial_forward.1} parent=11 // pred_fallthru
        _
      // Predicated region
      $region33: #{adversarial_forward.1} parent=11 // pred_check
        %p343 = pneg %p182
      $region34: #{adversarial_forward.1} parent=11 // pred_check_branch
        %345 = sbr.rel (%p343) target = $region36
      $region35: #{adversarial_forward.1} parent=11 // pred_region
        _
      $region36: #{adversarial_forward.1} parent=11 // pred_fallthru
        _
      // Predicated region
      $region37: #{adversarial_forward.1} parent=11 // pred_check
        %p346 = pneg %p203
      $region38: #{adversarial_forward.1} parent=11 // pred_check_branch
        %348 = sbr.rel (%p346) target = $region40
      $region39: #{adversarial_forward.1} parent=11 // pred_region
        _
      $region40: #{adversarial_forward.1} parent=11 // pred_fallthru
        _
      // Predicated region
      $region41: #{adversarial_forward.1} parent=11 // pred_check
        %p349 = pneg %p224
      $region42: #{adversarial_forward.1} parent=11 // pred_check_branch
        %351 = sbr.rel (%p349) target = $region44
      $region43: #{adversarial_forward.1} parent=11 // pred_region
        _
      $region44: #{adversarial_forward.1} parent=11 // pred_fallthru
        _
      // Predicated region
      $region45: #{adversarial_forward.1} parent=11 // pred_check
        %p352 = pneg %p245
      $region46: #{adversarial_forward.1} parent=11 // pred_check_branch
        %354 = sbr.rel (%p352) target = $region48
      $region47: #{adversarial_forward.1} parent=11 // pred_region
        _
      $region48: #{adversarial_forward.1} parent=11 // pred_fallthru
        _
      // Predicated region
      $region49: #{adversarial_forward.1} parent=11 // pred_check
        %p355 = pneg %p266
      $region50: #{adversarial_forward.1} parent=11 // pred_check_branch
        %357 = sbr.rel (%p355) target = $region52
      $region51: #{adversarial_forward.1} parent=11 // pred_region
        _
      $region52: #{adversarial_forward.1} parent=11 // pred_fallthru
        _
      // Predicated region
      $region53: #{adversarial_forward.1} parent=11 // pred_check
        %p358 = pneg %p287
      $region54: #{adversarial_forward.1} parent=11 // pred_check_branch
        %360 = sbr.rel (%p358) target = $region56
      $region55: #{adversarial_forward.1} parent=11 // pred_region
        _
      $region56: #{adversarial_forward.1} parent=11 // pred_fallthru
        _
    $region12: #{adversarial_forward.1} parent=5 // pred_fallthru
      _
    %p361 = scmp.lt.s32.totalorder %s18, 2
    // Predicated region
    $region57: #{adversarial_forward.1} parent=5 // pred_check
      %p362 = pneg %p361
    $region58: #{adversarial_forward.1} parent=5 // pred_check_branch
      %364 = sbr.rel (%p362) target = $region60
    $region59: #{adversarial_forward.1} parent=5 // pred_region
      // Predicated region
      $region61: #{adversarial_forward.1} parent=59 // pred_check
        %p365 = pneg %p50
      $region62: #{adversarial_forward.1} parent=59 // pred_check_branch
        %367 = sbr.rel (%p365) target = $region64
      $region63: #{adversarial_forward.1} parent=59 // pred_region
        %p368 = scmp.lt.s32.totalorder %s25, 1
        %s369 = scalar_select %p368, %s25, 1
        %s370 = smul.addr %s369, 43
        %s371 = smul.addr %s370, 8
        %s372 = scalar_lea.vmem %s0, %s371
      $region64: #{adversarial_forward.1} parent=59 // pred_fallthru
        _
    $region60: #{adversarial_forward.1} parent=5 // pred_fallthru
      _
    %p373 = scmp.le.s32.totalorder 1, %s18
    %p374 = scmp.lt.s32.totalorder %s18, 3
    %p375 = pnand %p373, %p374
    %p376 = pneg %p375
    // Predicated region
    $region65: #{adversarial_forward.1} parent=5 // pred_check
      _
    $region66: #{adversarial_forward.1} parent=5 // pred_check_branch
      %378 = sbr.rel (%p375) target = $region68
    $region67: #{adversarial_forward.1} parent=5 // pred_region
      %s379 = ssub.s32 %s18, 1
      %p380 = scmp.lt.s32.totalorder %s27, 1
      %s381 = scalar_select %p380, %s27, 1
      %s382 = smul.addr %s381, 43
      %s383 = smul.addr %s382, 8
      %s384 = scalar_lea.vmem %s0, %s383
      %p385 = pneg %p56
      %p386 = pneg %p53
      %p387 = pneg %p77
      %p388 = pneg %p74
      %p389 = pneg %p98
      %p390 = pneg %p95
      %p391 = pneg %p119
      %p392 = pneg %p116
      %p393 = pneg %p140
      %p394 = pneg %p137
      %p395 = pneg %p161
      %p396 = pneg %p158
      %p397 = pneg %p182
      %p398 = pneg %p179
      %p399 = pneg %p203
      %p400 = pneg %p200
      %p401 = pneg %p224
      %p402 = pneg %p221
      %p403 = pneg %p245
      %p404 = pneg %p242
      %p405 = pneg %p266
      %p406 = pneg %p263
      %p407 = pneg %p287
      %p408 = pneg %p284
      %p409 = pneg %p313
      %p410 = pneg %p310
      %p411 = scmp.lt.s32.totalorder %s27, 1
      %s412 = scalar_select %p411, %s27, 1
      %s413 = scalar_lea.vmem %s12, %s412
      %p414 = scmp.lt.s32.totalorder %s27, 1
      %s415 = scalar_select %p414, %s27, 1
      %s416 = smul.addr %s415, 43
      %s417 = smul.addr %s416, 8
      %s418 = scalar_lea.vmem %s0, %s417
      %p419 = scmp.lt.s32.totalorder %s27, 1
      %s420 = scalar_select %p419, %s27, 1
      %s421 = scalar_lea.vmem %s12, %s420
      %p423 = scmp.eq.s32.totalorder %s28, 0
      // Predicated region
      $region69: #{adversarial_forward.1} parent=67 // pred_check
        %p424 = pneg %p423
      $region70: #{adversarial_forward.1} parent=67 // pred_check_branch
        %426 = sbr.rel (%p424) target = $region72
      $region71: #{adversarial_forward.1} parent=67 // pred_region
        %vm427 = vcmask 253952
        %428 = vst.msk [vmem:[#allocation2] sm:$0x1] %vm427, 0.0
      $region72: #{adversarial_forward.1} parent=67 // pred_fallthru
        _
      %s429 = smul.u32 %s28, 288
      %s430 = scalar_lea.vmem %s418, %s429
      %v431 = vld [vmem:[%s430] sm:$0xff]
      %v432 = vld [vmem:[%s430 + $0x8] sm:$0xff]
      %v433 = vld [vmem:[%s430 + $0x10] sm:$0xff]
      %v434 = vld [vmem:[%s430 + $0x18] sm:$0xff]
      %v435 = vld [vmem:[%s430 + $0x20] sm:$0xff]
      %v436 = vld [vmem:[%s430 + $0x28] sm:$0xff]
      %v437 = vld [vmem:[%s430 + $0x30] sm:$0xff]
      %v438 = vld [vmem:[%s430 + $0x38] sm:$0xff]
      %v439 = vld [vmem:[%s430 + $0x40] sm:$0xff]
      %v440 = vld [vmem:[%s430 + $0x48] sm:$0xff]
      %v441 = vld [vmem:[%s430 + $0x50] sm:$0xff]
      %v442 = vld [vmem:[%s430 + $0x58] sm:$0xff]
      %v443 = vld [vmem:[%s430 + $0x60] sm:$0xff]
      %v444 = vld [vmem:[%s430 + $0x68] sm:$0xff]
      %v445 = vld [vmem:[%s430 + $0x70] sm:$0xff]
      %v446 = vld [vmem:[%s430 + $0x78] sm:$0xff]
      %v447 = vld [vmem:[%s430 + $0x80] sm:$0xff]
      %v448 = vld [vmem:[%s430 + $0x88] sm:$0xff]
      %v449 = vld [vmem:[%s430 + $0x90] sm:$0xff]
      %v450 = vld [vmem:[%s430 + $0x98] sm:$0xff]
      %v451 = vld [vmem:[%s430 + $0xa0] sm:$0xff]
      %v452 = vld [vmem:[%s430 + $0xa8] sm:$0xff]
      %v453 = vld [vmem:[%s430 + $0xb0] sm:$0xff]
      %v454 = vld [vmem:[%s430 + $0xb8] sm:$0xff]
      %v455 = vld [vmem:[%s430 + $0xc0] sm:$0xff]
      %v456 = vld [vmem:[%s430 + $0xc8] sm:$0xff]
      %v457 = vld [vmem:[%s430 + $0xd0] sm:$0xff]
      %v458 = vld [vmem:[%s430 + $0xd8] sm:$0xff]
      %v459 = vld [vmem:[%s430 + $0xe0] sm:$0xff]
      %v460 = vld [vmem:[%s430 + $0xe8] sm:$0xff]
      %v461 = vld [vmem:[%s430 + $0xf0] sm:$0xff]
      %v462 = vld [vmem:[%s430 + $0xf8] sm:$0xff]
      %v463 = vld [vmem:[%s430 + $0x100] sm:$0xff]
      %v464 = vld [vmem:[%s430 + $0x108] sm:$0xff]
      %v465 = vld [vmem:[%s430 + $0x110] sm:$0xff]
      %v466 = vld [vmem:[%s430 + $0x118] sm:$0xff]
      %v467 = vpack.c.bf16 %v432, %v431
      %v468 = vpack.c.bf16 %v434, %v433
      %v469 = vpack.c.bf16 %v436, %v435
      %v470 = vpack.c.bf16 %v438, %v437
      %v471 = vpack.c.bf16 %v440, %v439
      %v472 = vpack.c.bf16 %v442, %v441
      %v473 = vpack.c.bf16 %v444, %v443
      %v474 = vpack.c.bf16 %v446, %v445
      %v475 = vpack.c.bf16 %v448, %v447
      %v476 = vpack.c.bf16 %v450, %v449
      %v477 = vpack.c.bf16 %v452, %v451
      %v478 = vpack.c.bf16 %v454, %v453
      %v479 = vpack.c.bf16 %v456, %v455
      %v480 = vpack.c.bf16 %v458, %v457
      %v481 = vpack.c.bf16 %v460, %v459
      %v482 = vpack.c.bf16 %v462, %v461
      %v483 = vpack.c.bf16 %v464, %v463
      %v484 = vpack.c.bf16 %v466, %v465
      %v485 = vld [vmem:[%s1] sm:$0x3]
      %s486 = sadd.s32 %s429, 1
      %s487 = scalar_lea.vmem %s418, %s486
      %v488 = vld [vmem:[%s487] sm:$0xff]
      %v489 = vld [vmem:[%s487 + $0x8] sm:$0xff]
      %v490 = vld [vmem:[%s487 + $0x10] sm:$0xff]
      %v491 = vld [vmem:[%s487 + $0x18] sm:$0xff]
      %v492 = vld [vmem:[%s487 + $0x20] sm:$0xff]
      %v493 = vld [vmem:[%s487 + $0x28] sm:$0xff]
      %v494 = vld [vmem:[%s487 + $0x30] sm:$0xff]
      %v495 = vld [vmem:[%s487 + $0x38] sm:$0xff]
      %v496 = vld [vmem:[%s487 + $0x40] sm:$0xff]
      %v497 = vld [vmem:[%s487 + $0x48] sm:$0xff]
      %v498 = vld [vmem:[%s487 + $0x50] sm:$0xff]
      %v499 = vld [vmem:[%s487 + $0x58] sm:$0xff]
      %v500 = vld [vmem:[%s487 + $0x60] sm:$0xff]
      %v501 = vld [vmem:[%s487 + $0x68] sm:$0xff]
      %v502 = vld [vmem:[%s487 + $0x70] sm:$0xff]
      %v503 = vld [vmem:[%s487 + $0x78] sm:$0xff]
      %v504 = vld [vmem:[%s487 + $0x80] sm:$0xff]
      %v505 = vld [vmem:[%s487 + $0x88] sm:$0xff]
      %v506 = vld [vmem:[%s487 + $0x90] sm:$0xff]
      %v507 = vld [vmem:[%s487 + $0x98] sm:$0xff]
      %v508 = vld [vmem:[%s487 + $0xa0] sm:$0xff]
      %v509 = vld [vmem:[%s487 + $0xa8] sm:$0xff]
      %v510 = vld [vmem:[%s487 + $0xb0] sm:$0xff]
      %v511 = vld [vmem:[%s487 + $0xb8] sm:$0xff]
      %v512 = vld [vmem:[%s487 + $0xc0] sm:$0xff]
      %v513 = vld [vmem:[%s487 + $0xc8] sm:$0xff]
      %v514 = vld [vmem:[%s487 + $0xd0] sm:$0xff]
      %v515 = vld [vmem:[%s487 + $0xd8] sm:$0xff]
      %v516 = vld [vmem:[%s487 + $0xe0] sm:$0xff]
      %v517 = vld [vmem:[%s487 + $0xe8] sm:$0xff]
      %v518 = vld [vmem:[%s487 + $0xf0] sm:$0xff]
      %v519 = vld [vmem:[%s487 + $0xf8] sm:$0xff]
      %v520 = vld [vmem:[%s487 + $0x100] sm:$0xff]
      %v521 = vld [vmem:[%s487 + $0x108] sm:$0xff]
      %v522 = vld [vmem:[%s487 + $0x110] sm:$0xff]
      %v523 = vld [vmem:[%s487 + $0x118] sm:$0xff]
      %v524 = vpack.c.bf16 %v489, %v488
      %v525 = vpack.c.bf16 %v491, %v490
      %v526 = vpack.c.bf16 %v493, %v492
      %v527 = vpack.c.bf16 %v495, %v494
      %v528 = vpack.c.bf16 %v497, %v496
      %v529 = vpack.c.bf16 %v499, %v498
      %v530 = vpack.c.bf16 %v501, %v500
      %v531 = vpack.c.bf16 %v503, %v502
      %v532 = vpack.c.bf16 %v505, %v504
      %v533 = vpack.c.bf16 %v507, %v506
      %v534 = vpack.c.bf16 %v509, %v508
      %v535 = vpack.c.bf16 %v511, %v510
      %v536 = vpack.c.bf16 %v513, %v512
      %v537 = vpack.c.bf16 %v515, %v514
      %v538 = vpack.c.bf16 %v517, %v516
      %v539 = vpack.c.bf16 %v519, %v518
      %v540 = vpack.c.bf16 %v521, %v520
      %v541 = vpack.c.bf16 %v523, %v522
      %s542 = scalar_lea.vmem %s1, 2
      %v543 = vld [vmem:[%s542] sm:$0x3]
      %vm544 = vcmask 31744
      %v546 = vsel %vm544, %v524, 0
      %v549 = vsel %vm544, %v525, 0
      %v552 = vsel %vm544, %v526, 0
      %v555 = vsel %vm544, %v527, 0
      %v558 = vsel %vm544, %v528, 0
      %v561 = vsel %vm544, %v529, 0
      %v564 = vsel %vm544, %v530, 0
      %v567 = vsel %vm544, %v531, 0
      %v570 = vsel %vm544, %v532, 0
      %v573 = vsel %vm544, %v533, 0
      %v576 = vsel %vm544, %v534, 0
      %v579 = vsel %vm544, %v535, 0
      %v582 = vsel %vm544, %v536, 0
      %v585 = vsel %vm544, %v537, 0
      %v588 = vsel %vm544, %v538, 0
      %v591 = vsel %vm544, %v539, 0
      %v594 = vsel %vm544, %v540, 0
      %v597 = vsel %vm544, %v541, 0
      %vm599 = vcmask 1041408
      %v601 = vsel %vm599, %v543, 0
      %603 = vmatpush.bf16.msra.mxu0 0
      %604 = vmatpush.bf16.msra.mxu0 0
      %605 = vmatpush.bf16.msra.mxu0 0
      %606 = vmatpush.bf16.msra.mxu0 0
      %607 = vmatpush.bf16.msra.mxu0 0
      %608 = vmatpush.bf16.msra.mxu0 0
      %609 = vmatpush.bf16.msra.mxu0 0
      %610 = vmatpush.bf16.msra.mxu0 %v601
      %611 = vmatmul.bf16.gmra.mxu0 %v546
      %v612 = vpop.f32.mrf.mxu0
      %v613 = vadd.f32 0.0, %v612
      %v614 = vpop.f32.mrf.mxu0
      %v615 = vadd.f32 0.0, %v614
      %616 = vmatmul.bf16.gmra.mxu0 %v549
      %v617 = vpop.f32.mrf.mxu0
      %v618 = vadd.f32 0.0, %v617
      %v619 = vpop.f32.mrf.mxu0
      %v620 = vadd.f32 0.0, %v619
      %621 = vmatmul.bf16.gmra.mxu0 %v552
      %v622 = vpop.f32.mrf.mxu0
      %v623 = vadd.f32 0.0, %v622
      %v624 = vpop.f32.mrf.mxu0
      %v625 = vadd.f32 0.0, %v624
      %626 = vmatmul.bf16.gmra.mxu0 %v555
      %v627 = vpop.f32.mrf.mxu0
      %v628 = vadd.f32 0.0, %v627
      %v629 = vpop.f32.mrf.mxu0
      %v630 = vadd.f32 0.0, %v629
      %631 = vmatmul.bf16.gmra.mxu0 %v558
      %v632 = vpop.f32.mrf.mxu0
      %v633 = vadd.f32 0.0, %v632
      %v634 = vpop.f32.mrf.mxu0
      %v635 = vadd.f32 0.0, %v634
      %636 = vmatmul.bf16.gmra.mxu0 %v561
      %v637 = vpop.f32.mrf.mxu0
      %v638 = vadd.f32 0.0, %v637
      %v639 = vpop.f32.mrf.mxu0
      %v640 = vadd.f32 0.0, %v639
      %641 = vmatmul.bf16.gmra.mxu0 %v564
      %v642 = vpop.f32.mrf.mxu0
      %v643 = vadd.f32 0.0, %v642
      %v644 = vpop.f32.mrf.mxu0
      %v645 = vadd.f32 0.0, %v644
      %646 = vmatmul.bf16.gmra.mxu0 %v567
      %v647 = vpop.f32.mrf.mxu0
      %v648 = vadd.f32 0.0, %v647
      %v649 = vpop.f32.mrf.mxu0
      %v650 = vadd.f32 0.0, %v649
      %651 = vmatmul.bf16.gmra.mxu0 %v570
      %v652 = vpop.f32.mrf.mxu0
      %v653 = vadd.f32 0.0, %v652
      %v654 = vpop.f32.mrf.mxu0
      %v655 = vadd.f32 0.0, %v654
      %656 = vmatmul.bf16.gmra.mxu0 %v573
      %v657 = vpop.f32.mrf.mxu0
      %v658 = vadd.f32 0.0, %v657
      %v659 = vpop.f32.mrf.mxu0
      %v660 = vadd.f32 0.0, %v659
      %661 = vmatmul.bf16.gmra.mxu0 %v576
      %v662 = vpop.f32.mrf.mxu0
      %v663 = vadd.f32 0.0, %v662
      %v664 = vpop.f32.mrf.mxu0
      %v665 = vadd.f32 0.0, %v664
      %666 = vmatmul.bf16.gmra.mxu0 %v579
      %v667 = vpop.f32.mrf.mxu0
      %v668 = vadd.f32 0.0, %v667
      %v669 = vpop.f32.mrf.mxu0
      %v670 = vadd.f32 0.0, %v669
      %671 = vmatmul.bf16.gmra.mxu0 %v582
      %v672 = vpop.f32.mrf.mxu0
      %v673 = vadd.f32 0.0, %v672
      %v674 = vpop.f32.mrf.mxu0
      %v675 = vadd.f32 0.0, %v674
      %676 = vmatmul.bf16.gmra.mxu0 %v585
      %v677 = vpop.f32.mrf.mxu0
      %v678 = vadd.f32 0.0, %v677
      %v679 = vpop.f32.mrf.mxu0
      %v680 = vadd.f32 0.0, %v679
      %681 = vmatmul.bf16.gmra.mxu0 %v588
      %v682 = vpop.f32.mrf.mxu0
      %v683 = vadd.f32 0.0, %v682
      %v684 = vpop.f32.mrf.mxu0
      %v685 = vadd.f32 0.0, %v684
      %686 = vmatmul.bf16.gmra.mxu0 %v591
      %v687 = vpop.f32.mrf.mxu0
      %v688 = vadd.f32 0.0, %v687
      %v689 = vpop.f32.mrf.mxu0
      %v690 = vadd.f32 0.0, %v689
      %691 = vmatmul.bf16.gmra.mxu0 %v594
      %v692 = vpop.f32.mrf.mxu0
      %v693 = vadd.f32 0.0, %v692
      %v694 = vpop.f32.mrf.mxu0
      %v695 = vadd.f32 0.0, %v694
      %696 = vmatmul.bf16.gmra.mxu0 %v597
      %v697 = vpop.f32.mrf.mxu0
      %v698 = vadd.f32 0.0, %v697
      %v699 = vpop.f32.mrf.mxu0
      %v700 = vadd.f32 0.0, %v699
      %701 = vdwg.mxu0
      %v703 = vsel %vm544, %v467, 0
      %v706 = vsel %vm544, %v468, 0
      %v709 = vsel %vm544, %v469, 0
      %v712 = vsel %vm544, %v470, 0
      %v715 = vsel %vm544, %v471, 0
      %v718 = vsel %vm544, %v472, 0
      %v721 = vsel %vm544, %v473, 0
      %v724 = vsel %vm544, %v474, 0
      %v727 = vsel %vm544, %v475, 0
      %v730 = vsel %vm544, %v476, 0
      %v733 = vsel %vm544, %v477, 0
      %v736 = vsel %vm544, %v478, 0
      %v739 = vsel %vm544, %v479, 0
      %v742 = vsel %vm544, %v480, 0
      %v745 = vsel %vm544, %v481, 0
      %v748 = vsel %vm544, %v482, 0
      %v751 = vsel %vm544, %v483, 0
      %v754 = vsel %vm544, %v484, 0
      %v757 = vsel %vm599, %v485, 0
      %759 = vmatpush.bf16.msra.mxu0 0
      %760 = vmatpush.bf16.msra.mxu0 0
      %761 = vmatpush.bf16.msra.mxu0 0
      %762 = vmatpush.bf16.msra.mxu0 0
      %763 = vmatpush.bf16.msra.mxu0 0
      %764 = vmatpush.bf16.msra.mxu0 0
      %765 = vmatpush.bf16.msra.mxu0 0
      %766 = vmatpush.bf16.msra.mxu0 %v757
      %767 = vmatmul.bf16.gmra.mxu0 %v703
      %v768 = vpop.f32.mrf.mxu0
      %v769 = vadd.f32 %v613, %v768
      %v770 = vpop.f32.mrf.mxu0
      %v771 = vadd.f32 %v615, %v770
      %772 = vmatmul.bf16.gmra.mxu0 %v706
      %v773 = vpop.f32.mrf.mxu0
      %v774 = vadd.f32 %v618, %v773
      %v775 = vpop.f32.mrf.mxu0
      %v776 = vadd.f32 %v620, %v775
      %777 = vmatmul.bf16.gmra.mxu0 %v709
      %v778 = vpop.f32.mrf.mxu0
      %v779 = vadd.f32 %v623, %v778
      %v780 = vpop.f32.mrf.mxu0
      %v781 = vadd.f32 %v625, %v780
      %782 = vmatmul.bf16.gmra.mxu0 %v712
      %v783 = vpop.f32.mrf.mxu0
      %v784 = vadd.f32 %v628, %v783
      %v785 = vpop.f32.mrf.mxu0
      %v786 = vadd.f32 %v630, %v785
      %787 = vmatmul.bf16.gmra.mxu0 %v715
      %v788 = vpop.f32.mrf.mxu0
      %v789 = vadd.f32 %v633, %v788
      %v790 = vpop.f32.mrf.mxu0
      %v791 = vadd.f32 %v635, %v790
      %792 = vmatmul.bf16.gmra.mxu0 %v718
      %v793 = vpop.f32.mrf.mxu0
      %v794 = vadd.f32 %v638, %v793
      %v795 = vpop.f32.mrf.mxu0
      %v796 = vadd.f32 %v640, %v795
      %797 = vmatmul.bf16.gmra.mxu0 %v721
      %v798 = vpop.f32.mrf.mxu0
      %v799 = vadd.f32 %v643, %v798
      %v800 = vpop.f32.mrf.mxu0
      %v801 = vadd.f32 %v645, %v800
      %802 = vmatmul.bf16.gmra.mxu0 %v724
      %v803 = vpop.f32.mrf.mxu0
      %v804 = vadd.f32 %v648, %v803
      %v805 = vpop.f32.mrf.mxu0
      %v806 = vadd.f32 %v650, %v805
      %807 = vmatmul.bf16.gmra.mxu0 %v727
      %v808 = vpop.f32.mrf.mxu0
      %v809 = vadd.f32 %v653, %v808
      %v810 = vpop.f32.mrf.mxu0
      %v811 = vadd.f32 %v655, %v810
      %812 = vmatmul.bf16.gmra.mxu0 %v730
      %v813 = vpop.f32.mrf.mxu0
      %v814 = vadd.f32 %v658, %v813
      %v815 = vpop.f32.mrf.mxu0
      %v816 = vadd.f32 %v660, %v815
      %817 = vmatmul.bf16.gmra.mxu0 %v733
      %v818 = vpop.f32.mrf.mxu0
      %v819 = vadd.f32 %v663, %v818
      %v820 = vpop.f32.mrf.mxu0
      %v821 = vadd.f32 %v665, %v820
      %822 = vmatmul.bf16.gmra.mxu0 %v736
      %v823 = vpop.f32.mrf.mxu0
      %v824 = vadd.f32 %v668, %v823
      %v825 = vpop.f32.mrf.mxu0
      %v826 = vadd.f32 %v670, %v825
      %827 = vmatmul.bf16.gmra.mxu0 %v739
      %v828 = vpop.f32.mrf.mxu0
      %v829 = vadd.f32 %v673, %v828
      %v830 = vpop.f32.mrf.mxu0
      %v831 = vadd.f32 %v675, %v830
      %832 = vmatmul.bf16.gmra.mxu0 %v742
      %v833 = vpop.f32.mrf.mxu0
      %v834 = vadd.f32 %v678, %v833
      %v835 = vpop.f32.mrf.mxu0
      %v836 = vadd.f32 %v680, %v835
      %837 = vmatmul.bf16.gmra.mxu0 %v745
      %v838 = vpop.f32.mrf.mxu0
      %v839 = vadd.f32 %v683, %v838
      %v840 = vpop.f32.mrf.mxu0
      %v841 = vadd.f32 %v685, %v840
      %842 = vmatmul.bf16.gmra.mxu0 %v748
      %v843 = vpop.f32.mrf.mxu0
      %v844 = vadd.f32 %v688, %v843
      %v845 = vpop.f32.mrf.mxu0
      %v846 = vadd.f32 %v690, %v845
      %847 = vmatmul.bf16.gmra.mxu0 %v751
      %v848 = vpop.f32.mrf.mxu0
      %v849 = vadd.f32 %v693, %v848
      %v850 = vpop.f32.mrf.mxu0
      %v851 = vadd.f32 %v695, %v850
      %852 = vmatmul.bf16.gmra.mxu0 %v754
      %v853 = vpop.f32.mrf.mxu0
      %v854 = vadd.f32 %v698, %v853
      %v855 = vpop.f32.mrf.mxu0
      %v856 = vadd.f32 %v700, %v855
      %857 = vdwg.mxu0
      %s858 = sadd.s32 %s429, 2
      %s859 = scalar_lea.vmem %s418, %s858
      %v860 = vld [vmem:[%s859] sm:$0xff]
      %v861 = vld [vmem:[%s859 + $0x8] sm:$0xff]
      %v862 = vld [vmem:[%s859 + $0x10] sm:$0xff]
      %v863 = vld [vmem:[%s859 + $0x18] sm:$0xff]
      %v864 = vld [vmem:[%s859 + $0x20] sm:$0xff]
      %v865 = vld [vmem:[%s859 + $0x28] sm:$0xff]
      %v866 = vld [vmem:[%s859 + $0x30] sm:$0xff]
      %v867 = vld [vmem:[%s859 + $0x38] sm:$0xff]
      %v868 = vld [vmem:[%s859 + $0x40] sm:$0xff]
      %v869 = vld [vmem:[%s859 + $0x48] sm:$0xff]
      %v870 = vld [vmem:[%s859 + $0x50] sm:$0xff]
      %v871 = vld [vmem:[%s859 + $0x58] sm:$0xff]
      %v872 = vld [vmem:[%s859 + $0x60] sm:$0xff]
      %v873 = vld [vmem:[%s859 + $0x68] sm:$0xff]
      %v874 = vld [vmem:[%s859 + $0x70] sm:$0xff]
      %v875 = vld [vmem:[%s859 + $0x78] sm:$0xff]
      %v876 = vld [vmem:[%s859 + $0x80] sm:$0xff]
      %v877 = vld [vmem:[%s859 + $0x88] sm:$0xff]
      %v878 = vld [vmem:[%s859 + $0x90] sm:$0xff]
      %v879 = vld [vmem:[%s859 + $0x98] sm:$0xff]
      %v880 = vld [vmem:[%s859 + $0xa0] sm:$0xff]
      %v881 = vld [vmem:[%s859 + $0xa8] sm:$0xff]
      %v882 = vld [vmem:[%s859 + $0xb0] sm:$0xff]
      %v883 = vld [vmem:[%s859 + $0xb8] sm:$0xff]
      %v884 = vld [vmem:[%s859 + $0xc0] sm:$0xff]
      %v885 = vld [vmem:[%s859 + $0xc8] sm:$0xff]
      %v886 = vld [vmem:[%s859 + $0xd0] sm:$0xff]
      %v887 = vld [vmem:[%s859 + $0xd8] sm:$0xff]
      %v888 = vld [vmem:[%s859 + $0xe0] sm:$0xff]
      %v889 = vld [vmem:[%s859 + $0xe8] sm:$0xff]
      %v890 = vld [vmem:[%s859 + $0xf0] sm:$0xff]
      %v891 = vld [vmem:[%s859 + $0xf8] sm:$0xff]
      %v892 = vld [vmem:[%s859 + $0x100] sm:$0xff]
      %v893 = vld [vmem:[%s859 + $0x108] sm:$0xff]
      %v894 = vld [vmem:[%s859 + $0x110] sm:$0xff]
      %v895 = vld [vmem:[%s859 + $0x118] sm:$0xff]
      %v896 = vpack.c.bf16 %v861, %v860
      %v897 = vpack.c.bf16 %v863, %v862
      %v898 = vpack.c.bf16 %v865, %v864
      %v899 = vpack.c.bf16 %v867, %v866
      %v900 = vpack.c.bf16 %v869, %v868
      %v901 = vpack.c.bf16 %v871, %v870
      %v902 = vpack.c.bf16 %v873, %v872
      %v903 = vpack.c.bf16 %v875, %v874
      %v904 = vpack.c.bf16 %v877, %v876
      %v905 = vpack.c.bf16 %v879, %v878
      %v906 = vpack.c.bf16 %v881, %v880
      %v907 = vpack.c.bf16 %v883, %v882
      %v908 = vpack.c.bf16 %v885, %v884
      %v909 = vpack.c.bf16 %v887, %v886
      %v910 = vpack.c.bf16 %v889, %v888
      %v911 = vpack.c.bf16 %v891, %v890
      %v912 = vpack.c.bf16 %v893, %v892
      %v913 = vpack.c.bf16 %v895, %v894
      %s914 = scalar_lea.vmem %s1, 4
      %v915 = vld [vmem:[%s914] sm:$0x3]
      %v917 = vsel %vm544, %v896, 0
      %v920 = vsel %vm544, %v897, 0
      %v923 = vsel %vm544, %v898, 0
      %v926 = vsel %vm544, %v899, 0
      %v929 = vsel %vm544, %v900, 0
      %v932 = vsel %vm544, %v901, 0
      %v935 = vsel %vm544, %v902, 0
      %v938 = vsel %vm544, %v903, 0
      %v941 = vsel %vm544, %v904, 0
      %v944 = vsel %vm544, %v905, 0
      %v947 = vsel %vm544, %v906, 0
      %v950 = vsel %vm544, %v907, 0
      %v953 = vsel %vm544, %v908, 0
      %v956 = vsel %vm544, %v909, 0
      %v959 = vsel %vm544, %v910, 0
      %v962 = vsel %vm544, %v911, 0
      %v965 = vsel %vm544, %v912, 0
      %v968 = vsel %vm544, %v913, 0
      %v971 = vsel %vm599, %v915, 0
      %973 = vmatpush.bf16.msra.mxu0 0
      %974 = vmatpush.bf16.msra.mxu0 0
      %975 = vmatpush.bf16.msra.mxu0 0
      %976 = vmatpush.bf16.msra.mxu0 0
      %977 = vmatpush.bf16.msra.mxu0 0
      %978 = vmatpush.bf16.msra.mxu0 0
      %979 = vmatpush.bf16.msra.mxu0 0
      %980 = vmatpush.bf16.msra.mxu0 %v971
      %981 = vmatmul.bf16.gmra.mxu0 %v917
      %v982 = vpop.f32.mrf.mxu0
      %v983 = vadd.f32 0.0, %v982
      %v984 = vpop.f32.mrf.mxu0
      %v985 = vadd.f32 0.0, %v984
      %986 = vmatmul.bf16.gmra.mxu0 %v920
      %v987 = vpop.f32.mrf.mxu0
      %v988 = vadd.f32 0.0, %v987
      %v989 = vpop.f32.mrf.mxu0
      %v990 = vadd.f32 0.0, %v989
      %991 = vmatmul.bf16.gmra.mxu0 %v923
      %v992 = vpop.f32.mrf.mxu0
      %v993 = vadd.f32 0.0, %v992
      %v994 = vpop.f32.mrf.mxu0
      %v995 = vadd.f32 0.0, %v994
      %996 = vmatmul.bf16.gmra.mxu0 %v926
      %v997 = vpop.f32.mrf.mxu0
      %v998 = vadd.f32 0.0, %v997
      %v999 = vpop.f32.mrf.mxu0
      %v1000 = vadd.f32 0.0, %v999
      %1001 = vmatmul.bf16.gmra.mxu0 %v929
      %v1002 = vpop.f32.mrf.mxu0
      %v1003 = vadd.f32 0.0, %v1002
      %v1004 = vpop.f32.mrf.mxu0
      %v1005 = vadd.f32 0.0, %v1004
      %1006 = vmatmul.bf16.gmra.mxu0 %v932
      %v1007 = vpop.f32.mrf.mxu0
      %v1008 = vadd.f32 0.0, %v1007
      %v1009 = vpop.f32.mrf.mxu0
      %v1010 = vadd.f32 0.0, %v1009
      %1011 = vmatmul.bf16.gmra.mxu0 %v935
      %v1012 = vpop.f32.mrf.mxu0
      %v1013 = vadd.f32 0.0, %v1012
      %v1014 = vpop.f32.mrf.mxu0
      %v1015 = vadd.f32 0.0, %v1014
      %1016 = vmatmul.bf16.gmra.mxu0 %v938
      %v1017 = vpop.f32.mrf.mxu0
      %v1018 = vadd.f32 0.0, %v1017
      %v1019 = vpop.f32.mrf.mxu0
      %v1020 = vadd.f32 0.0, %v1019
      %1021 = vmatmul.bf16.gmra.mxu0 %v941
      %v1022 = vpop.f32.mrf.mxu0
      %v1023 = vadd.f32 0.0, %v1022
      %v1024 = vpop.f32.mrf.mxu0
      %v1025 = vadd.f32 0.0, %v1024
      %1026 = vmatmul.bf16.gmra.mxu0 %v944
      %v1027 = vpop.f32.mrf.mxu0
      %v1028 = vadd.f32 0.0, %v1027
      %v1029 = vpop.f32.mrf.mxu0
      %v1030 = vadd.f32 0.0, %v1029
      %1031 = vmatmul.bf16.gmra.mxu0 %v947
      %v1032 = vpop.f32.mrf.mxu0
      %v1033 = vadd.f32 0.0, %v1032
      %v1034 = vpop.f32.mrf.mxu0
      %v1035 = vadd.f32 0.0, %v1034
      %1036 = vmatmul.bf16.gmra.mxu0 %v950
      %v1037 = vpop.f32.mrf.mxu0
      %v1038 = vadd.f32 0.0, %v1037
      %v1039 = vpop.f32.mrf.mxu0
      %v1040 = vadd.f32 0.0, %v1039
      %1041 = vmatmul.bf16.gmra.mxu0 %v953
      %v1042 = vpop.f32.mrf.mxu0
      %v1043 = vadd.f32 0.0, %v1042
      %v1044 = vpop.f32.mrf.mxu0
      %v1045 = vadd.f32 0.0, %v1044
      %1046 = vmatmul.bf16.gmra.mxu0 %v956
      %v1047 = vpop.f32.mrf.mxu0
      %v1048 = vadd.f32 0.0, %v1047
      %v1049 = vpop.f32.mrf.mxu0
      %v1050 = vadd.f32 0.0, %v1049
      %1051 = vmatmul.bf16.gmra.mxu0 %v959
      %v1052 = vpop.f32.mrf.mxu0
      %v1053 = vadd.f32 0.0, %v1052
      %v1054 = vpop.f32.mrf.mxu0
      %v1055 = vadd.f32 0.0, %v1054
      %1056 = vmatmul.bf16.gmra.mxu0 %v962
      %v1057 = vpop.f32.mrf.mxu0
      %v1058 = vadd.f32 0.0, %v1057
      %v1059 = vpop.f32.mrf.mxu0
      %v1060 = vadd.f32 0.0, %v1059
      %1061 = vmatmul.bf16.gmra.mxu0 %v965
      %v1062 = vpop.f32.mrf.mxu0
      %v1063 = vadd.f32 0.0, %v1062
      %v1064 = vpop.f32.mrf.mxu0
      %v1065 = vadd.f32 0.0, %v1064
      %1066 = vmatmul.bf16.gmra.mxu0 %v968
      %v1067 = vpop.f32.mrf.mxu0
      %v1068 = vadd.f32 0.0, %v1067
      %v1069 = vpop.f32.mrf.mxu0
      %v1070 = vadd.f32 0.0, %v1069
      %1071 = vdwg.mxu0
      %v1072 = vadd.f32 %v769, %v983
      %v1073 = vadd.f32 %v771, %v985
      %v1074 = vadd.f32 %v774, %v988
      %v1075 = vadd.f32 %v776, %v990
      %v1076 = vadd.f32 %v779, %v993
      %v1077 = vadd.f32 %v781, %v995
      %v1078 = vadd.f32 %v784, %v998
      %v1079 = vadd.f32 %v786, %v1000
      %v1080 = vadd.f32 %v789, %v1003
      %v1081 = vadd.f32 %v791, %v1005
      %v1082 = vadd.f32 %v794, %v1008
      %v1083 = vadd.f32 %v796, %v1010
      %v1084 = vadd.f32 %v799, %v1013
      %v1085 = vadd.f32 %v801, %v1015
      %v1086 = vadd.f32 %v804, %v1018
      %v1087 = vadd.f32 %v806, %v1020
      %v1088 = vadd.f32 %v809, %v1023
      %v1089 = vadd.f32 %v811, %v1025
      %v1090 = vadd.f32 %v814, %v1028
      %v1091 = vadd.f32 %v816, %v1030
      %v1092 = vadd.f32 %v819, %v1033
      %v1093 = vadd.f32 %v821, %v1035
      %v1094 = vadd.f32 %v824, %v1038
      %v1095 = vadd.f32 %v826, %v1040
      %v1096 = vadd.f32 %v829, %v1043
      %v1097 = vadd.f32 %v831, %v1045
      %v1098 = vadd.f32 %v834, %v1048
      %v1099 = vadd.f32 %v836, %v1050
      %v1100 = vadd.f32 %v839, %v1053
      %v1101 = vadd.f32 %v841, %v1055
      %v1102 = vadd.f32 %v844, %v1058
      %v1103 = vadd.f32 %v846, %v1060
      %v1104 = vadd.f32 %v849, %v1063
      %v1105 = vadd.f32 %v851, %v1065
      %v1106 = vadd.f32 %v854, %v1068
      %v1107 = vadd.f32 %v856, %v1070
      %s1108 = sadd.s32 %s429, 18
      %s1109 = scalar_lea.vmem %s418, %s1108
      %v1110 = vld [vmem:[%s1109] sm:$0xff]
      %v1111 = vld [vmem:[%s1109 + $0x8] sm:$0xff]
      %v1112 = vld [vmem:[%s1109 + $0x10] sm:$0xff]
      %v1113 = vld [vmem:[%s1109 + $0x18] sm:$0xff]
      %v1114 = vld [vmem:[%s1109 + $0x20] sm:$0xff]
      %v1115 = vld [vmem:[%s1109 + $0x28] sm:$0xff]
      %v1116 = vld [vmem:[%s1109 + $0x30] sm:$0xff]
      %v1117 = vld [vmem:[%s1109 + $0x38] sm:$0xff]
      %v1118 = vld [vmem:[%s1109 + $0x40] sm:$0xff]
      %v1119 = vld [vmem:[%s1109 + $0x48] sm:$0xff]
      %v1120 = vld [vmem:[%s1109 + $0x50] sm:$0xff]
      %v1121 = vld [vmem:[%s1109 + $0x58] sm:$0xff]
      %v1122 = vld [vmem:[%s1109 + $0x60] sm:$0xff]
      %v1123 = vld [vmem:[%s1109 + $0x68] sm:$0xff]
      %v1124 = vld [vmem:[%s1109 + $0x70] sm:$0xff]
      %v1125 = vld [vmem:[%s1109 + $0x78] sm:$0xff]
      %v1126 = vld [vmem:[%s1109 + $0x80] sm:$0xff]
      %v1127 = vld [vmem:[%s1109 + $0x88] sm:$0xff]
      %v1128 = vld [vmem:[%s1109 + $0x90] sm:$0xff]
      %v1129 = vld [vmem:[%s1109 + $0x98] sm:$0xff]
      %v1130 = vld [vmem:[%s1109 + $0xa0] sm:$0xff]
      %v1131 = vld [vmem:[%s1109 + $0xa8] sm:$0xff]
      %v1132 = vld [vmem:[%s1109 + $0xb0] sm:$0xff]
      %v1133 = vld [vmem:[%s1109 + $0xb8] sm:$0xff]
      %v1134 = vld [vmem:[%s1109 + $0xc0] sm:$0xff]
      %v1135 = vld [vmem:[%s1109 + $0xc8] sm:$0xff]
      %v1136 = vld [vmem:[%s1109 + $0xd0] sm:$0xff]
      %v1137 = vld [vmem:[%s1109 + $0xd8] sm:$0xff]
      %v1138 = vld [vmem:[%s1109 + $0xe0] sm:$0xff]
      %v1139 = vld [vmem:[%s1109 + $0xe8] sm:$0xff]
      %v1140 = vld [vmem:[%s1109 + $0xf0] sm:$0xff]
      %v1141 = vld [vmem:[%s1109 + $0xf8] sm:$0xff]
      %v1142 = vld [vmem:[%s1109 + $0x100] sm:$0xff]
      %v1143 = vld [vmem:[%s1109 + $0x108] sm:$0xff]
      %v1144 = vld [vmem:[%s1109 + $0x110] sm:$0xff]
      %v1145 = vld [vmem:[%s1109 + $0x118] sm:$0xff]
      %v1146 = vpack.c.bf16 %v1111, %v1110
      %v1147 = vpack.c.bf16 %v1113, %v1112
      %v1148 = vpack.c.bf16 %v1115, %v1114
      %v1149 = vpack.c.bf16 %v1117, %v1116
      %v1150 = vpack.c.bf16 %v1119, %v1118
      %v1151 = vpack.c.bf16 %v1121, %v1120
      %v1152 = vpack.c.bf16 %v1123, %v1122
      %v1153 = vpack.c.bf16 %v1125, %v1124
      %v1154 = vpack.c.bf16 %v1127, %v1126
      %v1155 = vpack.c.bf16 %v1129, %v1128
      %v1156 = vpack.c.bf16 %v1131, %v1130
      %v1157 = vpack.c.bf16 %v1133, %v1132
      %v1158 = vpack.c.bf16 %v1135, %v1134
      %v1159 = vpack.c.bf16 %v1137, %v1136
      %v1160 = vpack.c.bf16 %v1139, %v1138
      %v1161 = vpack.c.bf16 %v1141, %v1140
      %v1162 = vpack.c.bf16 %v1143, %v1142
      %v1163 = vpack.c.bf16 %v1145, %v1144
      %s1164 = scalar_lea.vmem %s1, 6
      %v1165 = vld [vmem:[%s1164] sm:$0x3]
      %v1167 = vsel %vm544, %v1146, 0
      %v1170 = vsel %vm544, %v1147, 0
      %v1173 = vsel %vm544, %v1148, 0
      %v1176 = vsel %vm544, %v1149, 0
      %v1179 = vsel %vm544, %v1150, 0
      %v1182 = vsel %vm544, %v1151, 0
      %v1185 = vsel %vm544, %v1152, 0
      %v1188 = vsel %vm544, %v1153, 0
      %v1191 = vsel %vm544, %v1154, 0
      %v1194 = vsel %vm544, %v1155, 0
      %v1197 = vsel %vm544, %v1156, 0
      %v1200 = vsel %vm544, %v1157, 0
      %v1203 = vsel %vm544, %v1158, 0
      %v1206 = vsel %vm544, %v1159, 0
      %v1209 = vsel %vm544, %v1160, 0
      %v1212 = vsel %vm544, %v1161, 0
      %v1215 = vsel %vm544, %v1162, 0
      %v1218 = vsel %vm544, %v1163, 0
      %v1221 = vsel %vm599, %v1165, 0
      %1223 = vmatpush.bf16.msra.mxu0 0
      %1224 = vmatpush.bf16.msra.mxu0 0
      %1225 = vmatpush.bf16.msra.mxu0 0
      %1226 = vmatpush.bf16.msra.mxu0 0
      %1227 = vmatpush.bf16.msra.mxu0 0
      %1228 = vmatpush.bf16.msra.mxu0 0
      %1229 = vmatpush.bf16.msra.mxu0 0
      %1230 = vmatpush.bf16.msra.mxu0 %v1221
      %1231 = vmatmul.bf16.gmra.mxu0 %v1167
      %v1232 = vpop.f32.mrf.mxu0
      %v1233 = vadd.f32 0.0, %v1232
      %v1234 = vpop.f32.mrf.mxu0
      %v1235 = vadd.f32 0.0, %v1234
      %1236 = vmatmul.bf16.gmra.mxu0 %v1170
      %v1237 = vpop.f32.mrf.mxu0
      %v1238 = vadd.f32 0.0, %v1237
      %v1239 = vpop.f32.mrf.mxu0
      %v1240 = vadd.f32 0.0, %v1239
      %1241 = vmatmul.bf16.gmra.mxu0 %v1173
      %v1242 = vpop.f32.mrf.mxu0
      %v1243 = vadd.f32 0.0, %v1242
      %v1244 = vpop.f32.mrf.mxu0
      %v1245 = vadd.f32 0.0, %v1244
      %1246 = vmatmul.bf16.gmra.mxu0 %v1176
      %v1247 = vpop.f32.mrf.mxu0
      %v1248 = vadd.f32 0.0, %v1247
      %v1249 = vpop.f32.mrf.mxu0
      %v1250 = vadd.f32 0.0, %v1249
      %1251 = vmatmul.bf16.gmra.mxu0 %v1179
      %v1252 = vpop.f32.mrf.mxu0
      %v1253 = vadd.f32 0.0, %v1252
      %v1254 = vpop.f32.mrf.mxu0
      %v1255 = vadd.f32 0.0, %v1254
      %1256 = vmatmul.bf16.gmra.mxu0 %v1182
      %v1257 = vpop.f32.mrf.mxu0
      %v1258 = vadd.f32 0.0, %v1257
      %v1259 = vpop.f32.mrf.mxu0
      %v1260 = vadd.f32 0.0, %v1259
      %1261 = vmatmul.bf16.gmra.mxu0 %v1185
      %v1262 = vpop.f32.mrf.mxu0
      %v1263 = vadd.f32 0.0, %v1262
      %v1264 = vpop.f32.mrf.mxu0
      %v1265 = vadd.f32 0.0, %v1264
      %1266 = vmatmul.bf16.gmra.mxu0 %v1188
      %v1267 = vpop.f32.mrf.mxu0
      %v1268 = vadd.f32 0.0, %v1267
      %v1269 = vpop.f32.mrf.mxu0
      %v1270 = vadd.f32 0.0, %v1269
      %1271 = vmatmul.bf16.gmra.mxu0 %v1191
      %v1272 = vpop.f32.mrf.mxu0
      %v1273 = vadd.f32 0.0, %v1272
      %v1274 = vpop.f32.mrf.mxu0
      %v1275 = vadd.f32 0.0, %v1274
      %1276 = vmatmul.bf16.gmra.mxu0 %v1194
      %v1277 = vpop.f32.mrf.mxu0
      %v1278 = vadd.f32 0.0, %v1277
      %v1279 = vpop.f32.mrf.mxu0
      %v1280 = vadd.f32 0.0, %v1279
      %1281 = vmatmul.bf16.gmra.mxu0 %v1197
      %v1282 = vpop.f32.mrf.mxu0
      %v1283 = vadd.f32 0.0, %v1282
      %v1284 = vpop.f32.mrf.mxu0
      %v1285 = vadd.f32 0.0, %v1284
      %1286 = vmatmul.bf16.gmra.mxu0 %v1200
      %v1287 = vpop.f32.mrf.mxu0
      %v1288 = vadd.f32 0.0, %v1287
      %v1289 = vpop.f32.mrf.mxu0
      %v1290 = vadd.f32 0.0, %v1289
      %1291 = vmatmul.bf16.gmra.mxu0 %v1203
      %v1292 = vpop.f32.mrf.mxu0
      %v1293 = vadd.f32 0.0, %v1292
      %v1294 = vpop.f32.mrf.mxu0
      %v1295 = vadd.f32 0.0, %v1294
      %1296 = vmatmul.bf16.gmra.mxu0 %v1206
      %v1297 = vpop.f32.mrf.mxu0
      %v1298 = vadd.f32 0.0, %v1297
      %v1299 = vpop.f32.mrf.mxu0
      %v1300 = vadd.f32 0.0, %v1299
      %1301 = vmatmul.bf16.gmra.mxu0 %v1209
      %v1302 = vpop.f32.mrf.mxu0
      %v1303 = vadd.f32 0.0, %v1302
      %v1304 = vpop.f32.mrf.mxu0
      %v1305 = vadd.f32 0.0, %v1304
      %1306 = vmatmul.bf16.gmra.mxu0 %v1212
      %v1307 = vpop.f32.mrf.mxu0
      %v1308 = vadd.f32 0.0, %v1307
      %v1309 = vpop.f32.mrf.mxu0
      %v1310 = vadd.f32 0.0, %v1309
      %1311 = vmatmul.bf16.gmra.mxu0 %v1215
      %v1312 = vpop.f32.mrf.mxu0
      %v1313 = vadd.f32 0.0, %v1312
      %v1314 = vpop.f32.mrf.mxu0
      %v1315 = vadd.f32 0.0, %v1314
      %1316 = vmatmul.bf16.gmra.mxu0 %v1218
      %v1317 = vpop.f32.mrf.mxu0
      %v1318 = vadd.f32 0.0, %v1317
      %v1319 = vpop.f32.mrf.mxu0
      %v1320 = vadd.f32 0.0, %v1319
      %1321 = vdwg.mxu0
      %v1322 = vadd.f32 %v1072, %v1233
      %v1323 = vadd.f32 %v1073, %v1235
      %v1324 = vadd.f32 %v1074, %v1238
      %v1325 = vadd.f32 %v1075, %v1240
      %v1326 = vadd.f32 %v1076, %v1243
      %v1327 = vadd.f32 %v1077, %v1245
      %v1328 = vadd.f32 %v1078, %v1248
      %v1329 = vadd.f32 %v1079, %v1250
      %v1330 = vadd.f32 %v1080, %v1253
      %v1331 = vadd.f32 %v1081, %v1255
      %v1332 = vadd.f32 %v1082, %v1258
      %v1333 = vadd.f32 %v1083, %v1260
      %v1334 = vadd.f32 %v1084, %v1263
      %v1335 = vadd.f32 %v1085, %v1265
      %v1336 = vadd.f32 %v1086, %v1268
      %v1337 = vadd.f32 %v1087, %v1270
      %v1338 = vadd.f32 %v1088, %v1273
      %v1339 = vadd.f32 %v1089, %v1275
      %v1340 = vadd.f32 %v1090, %v1278
      %v1341 = vadd.f32 %v1091, %v1280
      %v1342 = vadd.f32 %v1092, %v1283
      %v1343 = vadd.f32 %v1093, %v1285
      %v1344 = vadd.f32 %v1094, %v1288
      %v1345 = vadd.f32 %v1095, %v1290
      %v1346 = vadd.f32 %v1096, %v1293
      %v1347 = vadd.f32 %v1097, %v1295
      %v1348 = vadd.f32 %v1098, %v1298
      %v1349 = vadd.f32 %v1099, %v1300
      %v1350 = vadd.f32 %v1100, %v1303
      %v1351 = vadd.f32 %v1101, %v1305
      %v1352 = vadd.f32 %v1102, %v1308
      %v1353 = vadd.f32 %v1103, %v1310
      %v1354 = vadd.f32 %v1104, %v1313
      %v1355 = vadd.f32 %v1105, %v1315
      %v1356 = vadd.f32 %v1106, %v1318
      %v1357 = vadd.f32 %v1107, %v1320
      %s1358 = sadd.s32 %s429, 19
      %s1359 = scalar_lea.vmem %s418, %s1358
      %v1360 = vld [vmem:[%s1359] sm:$0xff]
      %v1361 = vld [vmem:[%s1359 + $0x8] sm:$0xff]
      %v1362 = vld [vmem:[%s1359 + $0x10] sm:$0xff]
      %v1363 = vld [vmem:[%s1359 + $0x18] sm:$0xff]
      %v1364 = vld [vmem:[%s1359 + $0x20] sm:$0xff]
      %v1365 = vld [vmem:[%s1359 + $0x28] sm:$0xff]
      %v1366 = vld [vmem:[%s1359 + $0x30] sm:$0xff]
      %v1367 = vld [vmem:[%s1359 + $0x38] sm:$0xff]
      %v1368 = vld [vmem:[%s1359 + $0x40] sm:$0xff]
      %v1369 = vld [vmem:[%s1359 + $0x48] sm:$0xff]
      %v1370 = vld [vmem:[%s1359 + $0x50] sm:$0xff]
      %v1371 = vld [vmem:[%s1359 + $0x58] sm:$0xff]
      %v1372 = vld [vmem:[%s1359 + $0x60] sm:$0xff]
      %v1373 = vld [vmem:[%s1359 + $0x68] sm:$0xff]
      %v1374 = vld [vmem:[%s1359 + $0x70] sm:$0xff]
      %v1375 = vld [vmem:[%s1359 + $0x78] sm:$0xff]
      %v1376 = vld [vmem:[%s1359 + $0x80] sm:$0xff]
      %v1377 = vld [vmem:[%s1359 + $0x88] sm:$0xff]
      %v1378 = vld [vmem:[%s1359 + $0x90] sm:$0xff]
      %v1379 = vld [vmem:[%s1359 + $0x98] sm:$0xff]
      %v1380 = vld [vmem:[%s1359 + $0xa0] sm:$0xff]
      %v1381 = vld [vmem:[%s1359 + $0xa8] sm:$0xff]
      %v1382 = vld [vmem:[%s1359 + $0xb0] sm:$0xff]
      %v1383 = vld [vmem:[%s1359 + $0xb8] sm:$0xff]
      %v1384 = vld [vmem:[%s1359 + $0xc0] sm:$0xff]
      %v1385 = vld [vmem:[%s1359 + $0xc8] sm:$0xff]
      %v1386 = vld [vmem:[%s1359 + $0xd0] sm:$0xff]
      %v1387 = vld [vmem:[%s1359 + $0xd8] sm:$0xff]
      %v1388 = vld [vmem:[%s1359 + $0xe0] sm:$0xff]
      %v1389 = vld [vmem:[%s1359 + $0xe8] sm:$0xff]
      %v1390 = vld [vmem:[%s1359 + $0xf0] sm:$0xff]
      %v1391 = vld [vmem:[%s1359 + $0xf8] sm:$0xff]
      %v1392 = vld [vmem:[%s1359 + $0x100] sm:$0xff]
      %v1393 = vld [vmem:[%s1359 + $0x108] sm:$0xff]
      %v1394 = vld [vmem:[%s1359 + $0x110] sm:$0xff]
      %v1395 = vld [vmem:[%s1359 + $0x118] sm:$0xff]
      %v1396 = vpack.c.bf16 %v1361, %v1360
      %v1397 = vpack.c.bf16 %v1363, %v1362
      %v1398 = vpack.c.bf16 %v1365, %v1364
      %v1399 = vpack.c.bf16 %v1367, %v1366
      %v1400 = vpack.c.bf16 %v1369, %v1368
      %v1401 = vpack.c.bf16 %v1371, %v1370
      %v1402 = vpack.c.bf16 %v1373, %v1372
      %v1403 = vpack.c.bf16 %v1375, %v1374
      %v1404 = vpack.c.bf16 %v1377, %v1376
      %v1405 = vpack.c.bf16 %v1379, %v1378
      %v1406 = vpack.c.bf16 %v1381, %v1380
      %v1407 = vpack.c.bf16 %v1383, %v1382
      %v1408 = vpack.c.bf16 %v1385, %v1384
      %v1409 = vpack.c.bf16 %v1387, %v1386
      %v1410 = vpack.c.bf16 %v1389, %v1388
      %v1411 = vpack.c.bf16 %v1391, %v1390
      %v1412 = vpack.c.bf16 %v1393, %v1392
      %v1413 = vpack.c.bf16 %v1395, %v1394
      %s1414 = scalar_lea.vmem %s1, 8
      %v1415 = vld [vmem:[%s1414] sm:$0x3]
      %v1417 = vsel %vm544, %v1396, 0
      %v1420 = vsel %vm544, %v1397, 0
      %v1423 = vsel %vm544, %v1398, 0
      %v1426 = vsel %vm544, %v1399, 0
      %v1429 = vsel %vm544, %v1400, 0
      %v1432 = vsel %vm544, %v1401, 0
      %v1435 = vsel %vm544, %v1402, 0
      %v1438 = vsel %vm544, %v1403, 0
      %v1441 = vsel %vm544, %v1404, 0
      %v1444 = vsel %vm544, %v1405, 0
      %v1447 = vsel %vm544, %v1406, 0
      %v1450 = vsel %vm544, %v1407, 0
      %v1453 = vsel %vm544, %v1408, 0
      %v1456 = vsel %vm544, %v1409, 0
      %v1459 = vsel %vm544, %v1410, 0
      %v1462 = vsel %vm544, %v1411, 0
      %v1465 = vsel %vm544, %v1412, 0
      %v1468 = vsel %vm544, %v1413, 0
      %v1471 = vsel %vm599, %v1415, 0
      %1473 = vmatpush.bf16.msra.mxu0 0
      %1474 = vmatpush.bf16.msra.mxu0 0
      %1475 = vmatpush.bf16.msra.mxu0 0
      %1476 = vmatpush.bf16.msra.mxu0 0
      %1477 = vmatpush.bf16.msra.mxu0 0
      %1478 = vmatpush.bf16.msra.mxu0 0
      %1479 = vmatpush.bf16.msra.mxu0 0
      %1480 = vmatpush.bf16.msra.mxu0 %v1471
      %1481 = vmatmul.bf16.gmra.mxu0 %v1417
      %v1482 = vpop.f32.mrf.mxu0
      %v1483 = vadd.f32 0.0, %v1482
      %v1484 = vpop.f32.mrf.mxu0
      %v1485 = vadd.f32 0.0, %v1484
      %1486 = vmatmul.bf16.gmra.mxu0 %v1420
      %v1487 = vpop.f32.mrf.mxu0
      %v1488 = vadd.f32 0.0, %v1487
      %v1489 = vpop.f32.mrf.mxu0
      %v1490 = vadd.f32 0.0, %v1489
      %1491 = vmatmul.bf16.gmra.mxu0 %v1423
      %v1492 = vpop.f32.mrf.mxu0
      %v1493 = vadd.f32 0.0, %v1492
      %v1494 = vpop.f32.mrf.mxu0
      %v1495 = vadd.f32 0.0, %v1494
      %1496 = vmatmul.bf16.gmra.mxu0 %v1426
      %v1497 = vpop.f32.mrf.mxu0
      %v1498 = vadd.f32 0.0, %v1497
      %v1499 = vpop.f32.mrf.mxu0
      %v1500 = vadd.f32 0.0, %v1499
      %1501 = vmatmul.bf16.gmra.mxu0 %v1429
      %v1502 = vpop.f32.mrf.mxu0
      %v1503 = vadd.f32 0.0, %v1502
      %v1504 = vpop.f32.mrf.mxu0
      %v1505 = vadd.f32 0.0, %v1504
      %1506 = vmatmul.bf16.gmra.mxu0 %v1432
      %v1507 = vpop.f32.mrf.mxu0
      %v1508 = vadd.f32 0.0, %v1507
      %v1509 = vpop.f32.mrf.mxu0
      %v1510 = vadd.f32 0.0, %v1509
      %1511 = vmatmul.bf16.gmra.mxu0 %v1435
      %v1512 = vpop.f32.mrf.mxu0
      %v1513 = vadd.f32 0.0, %v1512
      %v1514 = vpop.f32.mrf.mxu0
      %v1515 = vadd.f32 0.0, %v1514
      %1516 = vmatmul.bf16.gmra.mxu0 %v1438
      %v1517 = vpop.f32.mrf.mxu0
      %v1518 = vadd.f32 0.0, %v1517
      %v1519 = vpop.f32.mrf.mxu0
      %v1520 = vadd.f32 0.0, %v1519
      %1521 = vmatmul.bf16.gmra.mxu0 %v1441
      %v1522 = vpop.f32.mrf.mxu0
      %v1523 = vadd.f32 0.0, %v1522
      %v1524 = vpop.f32.mrf.mxu0
      %v1525 = vadd.f32 0.0, %v1524
      %1526 = vmatmul.bf16.gmra.mxu0 %v1444
      %v1527 = vpop.f32.mrf.mxu0
      %v1528 = vadd.f32 0.0, %v1527
      %v1529 = vpop.f32.mrf.mxu0
      %v1530 = vadd.f32 0.0, %v1529
      %1531 = vmatmul.bf16.gmra.mxu0 %v1447
      %v1532 = vpop.f32.mrf.mxu0
      %v1533 = vadd.f32 0.0, %v1532
      %v1534 = vpop.f32.mrf.mxu0
      %v1535 = vadd.f32 0.0, %v1534
      %1536 = vmatmul.bf16.gmra.mxu0 %v1450
      %v1537 = vpop.f32.mrf.mxu0
      %v1538 = vadd.f32 0.0, %v1537
      %v1539 = vpop.f32.mrf.mxu0
      %v1540 = vadd.f32 0.0, %v1539
      %1541 = vmatmul.bf16.gmra.mxu0 %v1453
      %v1542 = vpop.f32.mrf.mxu0
      %v1543 = vadd.f32 0.0, %v1542
      %v1544 = vpop.f32.mrf.mxu0
      %v1545 = vadd.f32 0.0, %v1544
      %1546 = vmatmul.bf16.gmra.mxu0 %v1456
      %v1547 = vpop.f32.mrf.mxu0
      %v1548 = vadd.f32 0.0, %v1547
      %v1549 = vpop.f32.mrf.mxu0
      %v1550 = vadd.f32 0.0, %v1549
      %1551 = vmatmul.bf16.gmra.mxu0 %v1459
      %v1552 = vpop.f32.mrf.mxu0
      %v1553 = vadd.f32 0.0, %v1552
      %v1554 = vpop.f32.mrf.mxu0
      %v1555 = vadd.f32 0.0, %v1554
      %1556 = vmatmul.bf16.gmra.mxu0 %v1462
      %v1557 = vpop.f32.mrf.mxu0
      %v1558 = vadd.f32 0.0, %v1557
      %v1559 = vpop.f32.mrf.mxu0
      %v1560 = vadd.f32 0.0, %v1559
      %1561 = vmatmul.bf16.gmra.mxu0 %v1465
      %v1562 = vpop.f32.mrf.mxu0
      %v1563 = vadd.f32 0.0, %v1562
      %v1564 = vpop.f32.mrf.mxu0
      %v1565 = vadd.f32 0.0, %v1564
      %1566 = vmatmul.bf16.gmra.mxu0 %v1468
      %v1567 = vpop.f32.mrf.mxu0
      %v1568 = vadd.f32 0.0, %v1567
      %v1569 = vpop.f32.mrf.mxu0
      %v1570 = vadd.f32 0.0, %v1569
      %1571 = vdwg.mxu0
      %v1572 = vadd.f32 %v1322, %v1483
      %v1573 = vadd.f32 %v1323, %v1485
      %v1574 = vadd.f32 %v1324, %v1488
      %v1575 = vadd.f32 %v1325, %v1490
      %v1576 = vadd.f32 %v1326, %v1493
      %v1577 = vadd.f32 %v1327, %v1495
      %v1578 = vadd.f32 %v1328, %v1498
      %v1579 = vadd.f32 %v1329, %v1500
      %v1580 = vadd.f32 %v1330, %v1503
      %v1581 = vadd.f32 %v1331, %v1505
      %v1582 = vadd.f32 %v1332, %v1508
      %v1583 = vadd.f32 %v1333, %v1510
      %v1584 = vadd.f32 %v1334, %v1513
      %v1585 = vadd.f32 %v1335, %v1515
      %v1586 = vadd.f32 %v1336, %v1518
      %v1587 = vadd.f32 %v1337, %v1520
      %v1588 = vadd.f32 %v1338, %v1523
      %v1589 = vadd.f32 %v1339, %v1525
      %v1590 = vadd.f32 %v1340, %v1528
      %v1591 = vadd.f32 %v1341, %v1530
      %v1592 = vadd.f32 %v1342, %v1533
      %v1593 = vadd.f32 %v1343, %v1535
      %v1594 = vadd.f32 %v1344, %v1538
      %v1595 = vadd.f32 %v1345, %v1540
      %v1596 = vadd.f32 %v1346, %v1543
      %v1597 = vadd.f32 %v1347, %v1545
      %v1598 = vadd.f32 %v1348, %v1548
      %v1599 = vadd.f32 %v1349, %v1550
      %v1600 = vadd.f32 %v1350, %v1553
      %v1601 = vadd.f32 %v1351, %v1555
      %v1602 = vadd.f32 %v1352, %v1558
      %v1603 = vadd.f32 %v1353, %v1560
      %v1604 = vadd.f32 %v1354, %v1563
      %v1605 = vadd.f32 %v1355, %v1565
      %v1606 = vadd.f32 %v1356, %v1568
      %v1607 = vadd.f32 %v1357, %v1570
      %s1608 = sadd.s32 %s429, 20
      %s1609 = scalar_lea.vmem %s418, %s1608
      %v1610 = vld [vmem:[%s1609] sm:$0xff]
      %v1611 = vld [vmem:[%s1609 + $0x8] sm:$0xff]
      %v1612 = vld [vmem:[%s1609 + $0x10] sm:$0xff]
      %v1613 = vld [vmem:[%s1609 + $0x18] sm:$0xff]
      %v1614 = vld [vmem:[%s1609 + $0x20] sm:$0xff]
      %v1615 = vld [vmem:[%s1609 + $0x28] sm:$0xff]
      %v1616 = vld [vmem:[%s1609 + $0x30] sm:$0xff]
      %v1617 = vld [vmem:[%s1609 + $0x38] sm:$0xff]
      %v1618 = vld [vmem:[%s1609 + $0x40] sm:$0xff]
      %v1619 = vld [vmem:[%s1609 + $0x48] sm:$0xff]
      %v1620 = vld [vmem:[%s1609 + $0x50] sm:$0xff]
      %v1621 = vld [vmem:[%s1609 + $0x58] sm:$0xff]
      %v1622 = vld [vmem:[%s1609 + $0x60] sm:$0xff]
      %v1623 = vld [vmem:[%s1609 + $0x68] sm:$0xff]
      %v1624 = vld [vmem:[%s1609 + $0x70] sm:$0xff]
      %v1625 = vld [vmem:[%s1609 + $0x78] sm:$0xff]
      %v1626 = vld [vmem:[%s1609 + $0x80] sm:$0xff]
      %v1627 = vld [vmem:[%s1609 + $0x88] sm:$0xff]
      %v1628 = vld [vmem:[%s1609 + $0x90] sm:$0xff]
      %v1629 = vld [vmem:[%s1609 + $0x98] sm:$0xff]
      %v1630 = vld [vmem:[%s1609 + $0xa0] sm:$0xff]
      %v1631 = vld [vmem:[%s1609 + $0xa8] sm:$0xff]
      %v1632 = vld [vmem:[%s1609 + $0xb0] sm:$0xff]
      %v1633 = vld [vmem:[%s1609 + $0xb8] sm:$0xff]
      %v1634 = vld [vmem:[%s1609 + $0xc0] sm:$0xff]
      %v1635 = vld [vmem:[%s1609 + $0xc8] sm:$0xff]
      %v1636 = vld [vmem:[%s1609 + $0xd0] sm:$0xff]
      %v1637 = vld [vmem:[%s1609 + $0xd8] sm:$0xff]
      %v1638 = vld [vmem:[%s1609 + $0xe0] sm:$0xff]
      %v1639 = vld [vmem:[%s1609 + $0xe8] sm:$0xff]
      %v1640 = vld [vmem:[%s1609 + $0xf0] sm:$0xff]
      %v1641 = vld [vmem:[%s1609 + $0xf8] sm:$0xff]
      %v1642 = vld [vmem:[%s1609 + $0x100] sm:$0xff]
      %v1643 = vld [vmem:[%s1609 + $0x108] sm:$0xff]
      %v1644 = vld [vmem:[%s1609 + $0x110] sm:$0xff]
      %v1645 = vld [vmem:[%s1609 + $0x118] sm:$0xff]
      %v1646 = vpack.c.bf16 %v1611, %v1610
      %v1647 = vpack.c.bf16 %v1613, %v1612
      %v1648 = vpack.c.bf16 %v1615, %v1614
      %v1649 = vpack.c.bf16 %v1617, %v1616
      %v1650 = vpack.c.bf16 %v1619, %v1618
      %v1651 = vpack.c.bf16 %v1621, %v1620
      %v1652 = vpack.c.bf16 %v1623, %v1622
      %v1653 = vpack.c.bf16 %v1625, %v1624
      %v1654 = vpack.c.bf16 %v1627, %v1626
      %v1655 = vpack.c.bf16 %v1629, %v1628
      %v1656 = vpack.c.bf16 %v1631, %v1630
      %v1657 = vpack.c.bf16 %v1633, %v1632
      %v1658 = vpack.c.bf16 %v1635, %v1634
      %v1659 = vpack.c.bf16 %v1637, %v1636
      %v1660 = vpack.c.bf16 %v1639, %v1638
      %v1661 = vpack.c.bf16 %v1641, %v1640
      %v1662 = vpack.c.bf16 %v1643, %v1642
      %v1663 = vpack.c.bf16 %v1645, %v1644
      %s1664 = scalar_lea.vmem %s1, 10
      %v1665 = vld [vmem:[%s1664] sm:$0x3]
      %v1667 = vsel %vm544, %v1646, 0
      %v1670 = vsel %vm544, %v1647, 0
      %v1673 = vsel %vm544, %v1648, 0
      %v1676 = vsel %vm544, %v1649, 0
      %v1679 = vsel %vm544, %v1650, 0
      %v1682 = vsel %vm544, %v1651, 0
      %v1685 = vsel %vm544, %v1652, 0
      %v1688 = vsel %vm544, %v1653, 0
      %v1691 = vsel %vm544, %v1654, 0
      %v1694 = vsel %vm544, %v1655, 0
      %v1697 = vsel %vm544, %v1656, 0
      %v1700 = vsel %vm544, %v1657, 0
      %v1703 = vsel %vm544, %v1658, 0
      %v1706 = vsel %vm544, %v1659, 0
      %v1709 = vsel %vm544, %v1660, 0
      %v1712 = vsel %vm544, %v1661, 0
      %v1715 = vsel %vm544, %v1662, 0
      %v1718 = vsel %vm544, %v1663, 0
      %v1721 = vsel %vm599, %v1665, 0
      %1723 = vmatpush.bf16.msra.mxu0 0
      %1724 = vmatpush.bf16.msra.mxu0 0
      %1725 = vmatpush.bf16.msra.mxu0 0
      %1726 = vmatpush.bf16.msra.mxu0 0
      %1727 = vmatpush.bf16.msra.mxu0 0
      %1728 = vmatpush.bf16.msra.mxu0 0
      %1729 = vmatpush.bf16.msra.mxu0 0
      %1730 = vmatpush.bf16.msra.mxu0 %v1721
      %1731 = vmatmul.bf16.gmra.mxu0 %v1667
      %v1732 = vpop.f32.mrf.mxu0
      %v1733 = vadd.f32 0.0, %v1732
      %v1734 = vpop.f32.mrf.mxu0
      %v1735 = vadd.f32 0.0, %v1734
      %1736 = vmatmul.bf16.gmra.mxu0 %v1670
      %v1737 = vpop.f32.mrf.mxu0
      %v1738 = vadd.f32 0.0, %v1737
      %v1739 = vpop.f32.mrf.mxu0
      %v1740 = vadd.f32 0.0, %v1739
      %1741 = vmatmul.bf16.gmra.mxu0 %v1673
      %v1742 = vpop.f32.mrf.mxu0
      %v1743 = vadd.f32 0.0, %v1742
      %v1744 = vpop.f32.mrf.mxu0
      %v1745 = vadd.f32 0.0, %v1744
      %1746 = vmatmul.bf16.gmra.mxu0 %v1676
      %v1747 = vpop.f32.mrf.mxu0
      %v1748 = vadd.f32 0.0, %v1747
      %v1749 = vpop.f32.mrf.mxu0
      %v1750 = vadd.f32 0.0, %v1749
      %1751 = vmatmul.bf16.gmra.mxu0 %v1679
      %v1752 = vpop.f32.mrf.mxu0
      %v1753 = vadd.f32 0.0, %v1752
      %v1754 = vpop.f32.mrf.mxu0
      %v1755 = vadd.f32 0.0, %v1754
      %1756 = vmatmul.bf16.gmra.mxu0 %v1682
      %v1757 = vpop.f32.mrf.mxu0
      %v1758 = vadd.f32 0.0, %v1757
      %v1759 = vpop.f32.mrf.mxu0
      %v1760 = vadd.f32 0.0, %v1759
      %1761 = vmatmul.bf16.gmra.mxu0 %v1685
      %v1762 = vpop.f32.mrf.mxu0
      %v1763 = vadd.f32 0.0, %v1762
      %v1764 = vpop.f32.mrf.mxu0
      %v1765 = vadd.f32 0.0, %v1764
      %1766 = vmatmul.bf16.gmra.mxu0 %v1688
      %v1767 = vpop.f32.mrf.mxu0
      %v1768 = vadd.f32 0.0, %v1767
      %v1769 = vpop.f32.mrf.mxu0
      %v1770 = vadd.f32 0.0, %v1769
      %1771 = vmatmul.bf16.gmra.mxu0 %v1691
      %v1772 = vpop.f32.mrf.mxu0
      %v1773 = vadd.f32 0.0, %v1772
      %v1774 = vpop.f32.mrf.mxu0
      %v1775 = vadd.f32 0.0, %v1774
      %1776 = vmatmul.bf16.gmra.mxu0 %v1694
      %v1777 = vpop.f32.mrf.mxu0
      %v1778 = vadd.f32 0.0, %v1777
      %v1779 = vpop.f32.mrf.mxu0
      %v1780 = vadd.f32 0.0, %v1779
      %1781 = vmatmul.bf16.gmra.mxu0 %v1697
      %v1782 = vpop.f32.mrf.mxu0
      %v1783 = vadd.f32 0.0, %v1782
      %v1784 = vpop.f32.mrf.mxu0
      %v1785 = vadd.f32 0.0, %v1784
      %1786 = vmatmul.bf16.gmra.mxu0 %v1700
      %v1787 = vpop.f32.mrf.mxu0
      %v1788 = vadd.f32 0.0, %v1787
      %v1789 = vpop.f32.mrf.mxu0
      %v1790 = vadd.f32 0.0, %v1789
      %1791 = vmatmul.bf16.gmra.mxu0 %v1703
      %v1792 = vpop.f32.mrf.mxu0
      %v1793 = vadd.f32 0.0, %v1792
      %v1794 = vpop.f32.mrf.mxu0
      %v1795 = vadd.f32 0.0, %v1794
      %1796 = vmatmul.bf16.gmra.mxu0 %v1706
      %v1797 = vpop.f32.mrf.mxu0
      %v1798 = vadd.f32 0.0, %v1797
      %v1799 = vpop.f32.mrf.mxu0
      %v1800 = vadd.f32 0.0, %v1799
      %1801 = vmatmul.bf16.gmra.mxu0 %v1709
      %v1802 = vpop.f32.mrf.mxu0
      %v1803 = vadd.f32 0.0, %v1802
      %v1804 = vpop.f32.mrf.mxu0
      %v1805 = vadd.f32 0.0, %v1804
      %1806 = vmatmul.bf16.gmra.mxu0 %v1712
      %v1807 = vpop.f32.mrf.mxu0
      %v1808 = vadd.f32 0.0, %v1807
      %v1809 = vpop.f32.mrf.mxu0
      %v1810 = vadd.f32 0.0, %v1809
      %1811 = vmatmul.bf16.gmra.mxu0 %v1715
      %v1812 = vpop.f32.mrf.mxu0
      %v1813 = vadd.f32 0.0, %v1812
      %v1814 = vpop.f32.mrf.mxu0
      %v1815 = vadd.f32 0.0, %v1814
      %1816 = vmatmul.bf16.gmra.mxu0 %v1718
      %v1817 = vpop.f32.mrf.mxu0
      %v1818 = vadd.f32 0.0, %v1817
      %v1819 = vpop.f32.mrf.mxu0
      %v1820 = vadd.f32 0.0, %v1819
      %1821 = vdwg.mxu0
      %v1822 = vadd.f32 %v1572, %v1733
      %v1823 = vadd.f32 %v1573, %v1735
      %v1824 = vadd.f32 %v1574, %v1738
      %v1825 = vadd.f32 %v1575, %v1740
      %v1826 = vadd.f32 %v1576, %v1743
      %v1827 = vadd.f32 %v1577, %v1745
      %v1828 = vadd.f32 %v1578, %v1748
      %v1829 = vadd.f32 %v1579, %v1750
      %v1830 = vadd.f32 %v1580, %v1753
      %v1831 = vadd.f32 %v1581, %v1755
      %v1832 = vadd.f32 %v1582, %v1758
      %v1833 = vadd.f32 %v1583, %v1760
      %v1834 = vadd.f32 %v1584, %v1763
      %v1835 = vadd.f32 %v1585, %v1765
      %v1836 = vadd.f32 %v1586, %v1768
      %v1837 = vadd.f32 %v1587, %v1770
      %v1838 = vadd.f32 %v1588, %v1773
      %v1839 = vadd.f32 %v1589, %v1775
      %v1840 = vadd.f32 %v1590, %v1778
      %v1841 = vadd.f32 %v1591, %v1780
      %v1842 = vadd.f32 %v1592, %v1783
      %v1843 = vadd.f32 %v1593, %v1785
      %v1844 = vadd.f32 %v1594, %v1788
      %v1845 = vadd.f32 %v1595, %v1790
      %v1846 = vadd.f32 %v1596, %v1793
      %v1847 = vadd.f32 %v1597, %v1795
      %v1848 = vadd.f32 %v1598, %v1798
      %v1849 = vadd.f32 %v1599, %v1800
      %v1850 = vadd.f32 %v1600, %v1803
      %v1851 = vadd.f32 %v1601, %v1805
      %v1852 = vadd.f32 %v1602, %v1808
      %v1853 = vadd.f32 %v1603, %v1810
      %v1854 = vadd.f32 %v1604, %v1813
      %v1855 = vadd.f32 %v1605, %v1815
      %v1856 = vadd.f32 %v1606, %v1818
      %v1857 = vadd.f32 %v1607, %v1820
      %s1858 = sadd.s32 %s429, 36
      %s1859 = scalar_lea.vmem %s418, %s1858
      %v1860 = vld [vmem:[%s1859] sm:$0xff]
      %v1861 = vld [vmem:[%s1859 + $0x8] sm:$0xff]
      %v1862 = vld [vmem:[%s1859 + $0x10] sm:$0xff]
      %v1863 = vld [vmem:[%s1859 + $0x18] sm:$0xff]
      %v1864 = vld [vmem:[%s1859 + $0x20] sm:$0xff]
      %v1865 = vld [vmem:[%s1859 + $0x28] sm:$0xff]
      %v1866 = vld [vmem:[%s1859 + $0x30] sm:$0xff]
      %v1867 = vld [vmem:[%s1859 + $0x38] sm:$0xff]
      %v1868 = vld [vmem:[%s1859 + $0x40] sm:$0xff]
      %v1869 = vld [vmem:[%s1859 + $0x48] sm:$0xff]
      %v1870 = vld [vmem:[%s1859 + $0x50] sm:$0xff]
      %v1871 = vld [vmem:[%s1859 + $0x58] sm:$0xff]
      %v1872 = vld [vmem:[%s1859 + $0x60] sm:$0xff]
      %v1873 = vld [vmem:[%s1859 + $0x68] sm:$0xff]
      %v1874 = vld [vmem:[%s1859 + $0x70] sm:$0xff]
      %v1875 = vld [vmem:[%s1859 + $0x78] sm:$0xff]
      %v1876 = vld [vmem:[%s1859 + $0x80] sm:$0xff]
      %v1877 = vld [vmem:[%s1859 + $0x88] sm:$0xff]
      %v1878 = vld [vmem:[%s1859 + $0x90] sm:$0xff]
      %v1879 = vld [vmem:[%s1859 + $0x98] sm:$0xff]
      %v1880 = vld [vmem:[%s1859 + $0xa0] sm:$0xff]
      %v1881 = vld [vmem:[%s1859 + $0xa8] sm:$0xff]
      %v1882 = vld [vmem:[%s1859 + $0xb0] sm:$0xff]
      %v1883 = vld [vmem:[%s1859 + $0xb8] sm:$0xff]
      %v1884 = vld [vmem:[%s1859 + $0xc0] sm:$0xff]
      %v1885 = vld [vmem:[%s1859 + $0xc8] sm:$0xff]
      %v1886 = vld [vmem:[%s1859 + $0xd0] sm:$0xff]
      %v1887 = vld [vmem:[%s1859 + $0xd8] sm:$0xff]
      %v1888 = vld [vmem:[%s1859 + $0xe0] sm:$0xff]
      %v1889 = vld [vmem:[%s1859 + $0xe8] sm:$0xff]
      %v1890 = vld [vmem:[%s1859 + $0xf0] sm:$0xff]
      %v1891 = vld [vmem:[%s1859 + $0xf8] sm:$0xff]
      %v1892 = vld [vmem:[%s1859 + $0x100] sm:$0xff]
      %v1893 = vld [vmem:[%s1859 + $0x108] sm:$0xff]
      %v1894 = vld [vmem:[%s1859 + $0x110] sm:$0xff]
      %v1895 = vld [vmem:[%s1859 + $0x118] sm:$0xff]
      %v1896 = vpack.c.bf16 %v1861, %v1860
      %v1897 = vpack.c.bf16 %v1863, %v1862
      %v1898 = vpack.c.bf16 %v1865, %v1864
      %v1899 = vpack.c.bf16 %v1867, %v1866
      %v1900 = vpack.c.bf16 %v1869, %v1868
      %v1901 = vpack.c.bf16 %v1871, %v1870
      %v1902 = vpack.c.bf16 %v1873, %v1872
      %v1903 = vpack.c.bf16 %v1875, %v1874
      %v1904 = vpack.c.bf16 %v1877, %v1876
      %v1905 = vpack.c.bf16 %v1879, %v1878
      %v1906 = vpack.c.bf16 %v1881, %v1880
      %v1907 = vpack.c.bf16 %v1883, %v1882
      %v1908 = vpack.c.bf16 %v1885, %v1884
      %v1909 = vpack.c.bf16 %v1887, %v1886
      %v1910 = vpack.c.bf16 %v1889, %v1888
      %v1911 = vpack.c.bf16 %v1891, %v1890
      %v1912 = vpack.c.bf16 %v1893, %v1892
      %v1913 = vpack.c.bf16 %v1895, %v1894
      %s1914 = scalar_lea.vmem %s1, 12
      %v1915 = vld [vmem:[%s1914] sm:$0x3]
      %v1917 = vsel %vm544, %v1896, 0
      %v1920 = vsel %vm544, %v1897, 0
      %v1923 = vsel %vm544, %v1898, 0
      %v1926 = vsel %vm544, %v1899, 0
      %v1929 = vsel %vm544, %v1900, 0
      %v1932 = vsel %vm544, %v1901, 0
      %v1935 = vsel %vm544, %v1902, 0
      %v1938 = vsel %vm544, %v1903, 0
      %v1941 = vsel %vm544, %v1904, 0
      %v1944 = vsel %vm544, %v1905, 0
      %v1947 = vsel %vm544, %v1906, 0
      %v1950 = vsel %vm544, %v1907, 0
      %v1953 = vsel %vm544, %v1908, 0
      %v1956 = vsel %vm544, %v1909, 0
      %v1959 = vsel %vm544, %v1910, 0
      %v1962 = vsel %vm544, %v1911, 0
      %v1965 = vsel %vm544, %v1912, 0
      %v1968 = vsel %vm544, %v1913, 0
      %v1971 = vsel %vm599, %v1915, 0
      %1973 = vmatpush.bf16.msra.mxu0 0
      %1974 = vmatpush.bf16.msra.mxu0 0
      %1975 = vmatpush.bf16.msra.mxu0 0
      %1976 = vmatpush.bf16.msra.mxu0 0
      %1977 = vmatpush.bf16.msra.mxu0 0
      %1978 = vmatpush.bf16.msra.mxu0 0
      %1979 = vmatpush.bf16.msra.mxu0 0
      %1980 = vmatpush.bf16.msra.mxu0 %v1971
      %1981 = vmatmul.bf16.gmra.mxu0 %v1917
      %v1982 = vpop.f32.mrf.mxu0
      %v1983 = vadd.f32 0.0, %v1982
      %v1984 = vpop.f32.mrf.mxu0
      %v1985 = vadd.f32 0.0, %v1984
      %1986 = vmatmul.bf16.gmra.mxu0 %v1920
      %v1987 = vpop.f32.mrf.mxu0
      %v1988 = vadd.f32 0.0, %v1987
      %v1989 = vpop.f32.mrf.mxu0
      %v1990 = vadd.f32 0.0, %v1989
      %1991 = vmatmul.bf16.gmra.mxu0 %v1923
      %v1992 = vpop.f32.mrf.mxu0
      %v1993 = vadd.f32 0.0, %v1992
      %v1994 = vpop.f32.mrf.mxu0
      %v1995 = vadd.f32 0.0, %v1994
      %1996 = vmatmul.bf16.gmra.mxu0 %v1926
      %v1997 = vpop.f32.mrf.mxu0
      %v1998 = vadd.f32 0.0, %v1997
      %v1999 = vpop.f32.mrf.mxu0
      %v2000 = vadd.f32 0.0, %v1999
      %2001 = vmatmul.bf16.gmra.mxu0 %v1929
      %v2002 = vpop.f32.mrf.mxu0
      %v2003 = vadd.f32 0.0, %v2002
      %v2004 = vpop.f32.mrf.mxu0
      %v2005 = vadd.f32 0.0, %v2004
      %2006 = vmatmul.bf16.gmra.mxu0 %v1932
      %v2007 = vpop.f32.mrf.mxu0
      %v2008 = vadd.f32 0.0, %v2007
      %v2009 = vpop.f32.mrf.mxu0
      %v2010 = vadd.f32 0.0, %v2009
      %2011 = vmatmul.bf16.gmra.mxu0 %v1935
      %v2012 = vpop.f32.mrf.mxu0
      %v2013 = vadd.f32 0.0, %v2012
      %v2014 = vpop.f32.mrf.mxu0
      %v2015 = vadd.f32 0.0, %v2014
      %2016 = vmatmul.bf16.gmra.mxu0 %v1938
      %v2017 = vpop.f32.mrf.mxu0
      %v2018 = vadd.f32 0.0, %v2017
      %v2019 = vpop.f32.mrf.mxu0
      %v2020 = vadd.f32 0.0, %v2019
      %2021 = vmatmul.bf16.gmra.mxu0 %v1941
      %v2022 = vpop.f32.mrf.mxu0
      %v2023 = vadd.f32 0.0, %v2022
      %v2024 = vpop.f32.mrf.mxu0
      %v2025 = vadd.f32 0.0, %v2024
      %2026 = vmatmul.bf16.gmra.mxu0 %v1944
      %v2027 = vpop.f32.mrf.mxu0
      %v2028 = vadd.f32 0.0, %v2027
      %v2029 = vpop.f32.mrf.mxu0
      %v2030 = vadd.f32 0.0, %v2029
      %2031 = vmatmul.bf16.gmra.mxu0 %v1947
      %v2032 = vpop.f32.mrf.mxu0
      %v2033 = vadd.f32 0.0, %v2032
      %v2034 = vpop.f32.mrf.mxu0
      %v2035 = vadd.f32 0.0, %v2034
      %2036 = vmatmul.bf16.gmra.mxu0 %v1950
      %v2037 = vpop.f32.mrf.mxu0
      %v2038 = vadd.f32 0.0, %v2037
      %v2039 = vpop.f32.mrf.mxu0
      %v2040 = vadd.f32 0.0, %v2039
      %2041 = vmatmul.bf16.gmra.mxu0 %v1953
      %v2042 = vpop.f32.mrf.mxu0
      %v2043 = vadd.f32 0.0, %v2042
      %v2044 = vpop.f32.mrf.mxu0
      %v2045 = vadd.f32 0.0, %v2044
      %2046 = vmatmul.bf16.gmra.mxu0 %v1956
      %v2047 = vpop.f32.mrf.mxu0
      %v2048 = vadd.f32 0.0, %v2047
      %v2049 = vpop.f32.mrf.mxu0
      %v2050 = vadd.f32 0.0, %v2049
      %2051 = vmatmul.bf16.gmra.mxu0 %v1959
      %v2052 = vpop.f32.mrf.mxu0
      %v2053 = vadd.f32 0.0, %v2052
      %v2054 = vpop.f32.mrf.mxu0
      %v2055 = vadd.f32 0.0, %v2054
      %2056 = vmatmul.bf16.gmra.mxu0 %v1962
      %v2057 = vpop.f32.mrf.mxu0
      %v2058 = vadd.f32 0.0, %v2057
      %v2059 = vpop.f32.mrf.mxu0
      %v2060 = vadd.f32 0.0, %v2059
      %2061 = vmatmul.bf16.gmra.mxu0 %v1965
      %v2062 = vpop.f32.mrf.mxu0
      %v2063 = vadd.f32 0.0, %v2062
      %v2064 = vpop.f32.mrf.mxu0
      %v2065 = vadd.f32 0.0, %v2064
      %2066 = vmatmul.bf16.gmra.mxu0 %v1968
      %v2067 = vpop.f32.mrf.mxu0
      %v2068 = vadd.f32 0.0, %v2067
      %v2069 = vpop.f32.mrf.mxu0
      %v2070 = vadd.f32 0.0, %v2069
      %2071 = vdwg.mxu0
      %v2072 = vadd.f32 %v1822, %v1983
      %v2073 = vadd.f32 %v1823, %v1985
      %v2074 = vadd.f32 %v1824, %v1988
      %v2075 = vadd.f32 %v1825, %v1990
      %v2076 = vadd.f32 %v1826, %v1993
      %v2077 = vadd.f32 %v1827, %v1995
      %v2078 = vadd.f32 %v1828, %v1998
      %v2079 = vadd.f32 %v1829, %v2000
      %v2080 = vadd.f32 %v1830, %v2003
      %v2081 = vadd.f32 %v1831, %v2005
      %v2082 = vadd.f32 %v1832, %v2008
      %v2083 = vadd.f32 %v1833, %v2010
      %v2084 = vadd.f32 %v1834, %v2013
      %v2085 = vadd.f32 %v1835, %v2015
      %v2086 = vadd.f32 %v1836, %v2018
      %v2087 = vadd.f32 %v1837, %v2020
      %v2088 = vadd.f32 %v1838, %v2023
      %v2089 = vadd.f32 %v1839, %v2025
      %v2090 = vadd.f32 %v1840, %v2028
      %v2091 = vadd.f32 %v1841, %v2030
      %v2092 = vadd.f32 %v1842, %v2033
      %v2093 = vadd.f32 %v1843, %v2035
      %v2094 = vadd.f32 %v1844, %v2038
      %v2095 = vadd.f32 %v1845, %v2040
      %v2096 = vadd.f32 %v1846, %v2043
      %v2097 = vadd.f32 %v1847, %v2045
      %v2098 = vadd.f32 %v1848, %v2048
      %v2099 = vadd.f32 %v1849, %v2050
      %v2100 = vadd.f32 %v1850, %v2053
      %v2101 = vadd.f32 %v1851, %v2055
      %v2102 = vadd.f32 %v1852, %v2058
      %v2103 = vadd.f32 %v1853, %v2060
      %v2104 = vadd.f32 %v1854, %v2063
      %v2105 = vadd.f32 %v1855, %v2065
      %v2106 = vadd.f32 %v1856, %v2068
      %v2107 = vadd.f32 %v1857, %v2070
      %s2108 = sadd.s32 %s429, 37
      %s2109 = scalar_lea.vmem %s418, %s2108
      %v2110 = vld [vmem:[%s2109] sm:$0xff]
      %v2111 = vld [vmem:[%s2109 + $0x8] sm:$0xff]
      %v2112 = vld [vmem:[%s2109 + $0x10] sm:$0xff]
      %v2113 = vld [vmem:[%s2109 + $0x18] sm:$0xff]
      %v2114 = vld [vmem:[%s2109 + $0x20] sm:$0xff]
      %v2115 = vld [vmem:[%s2109 + $0x28] sm:$0xff]
      %v2116 = vld [vmem:[%s2109 + $0x30] sm:$0xff]
      %v2117 = vld [vmem:[%s2109 + $0x38] sm:$0xff]
      %v2118 = vld [vmem:[%s2109 + $0x40] sm:$0xff]
      %v2119 = vld [vmem:[%s2109 + $0x48] sm:$0xff]
      %v2120 = vld [vmem:[%s2109 + $0x50] sm:$0xff]
      %v2121 = vld [vmem:[%s2109 + $0x58] sm:$0xff]
      %v2122 = vld [vmem:[%s2109 + $0x60] sm:$0xff]
      %v2123 = vld [vmem:[%s2109 + $0x68] sm:$0xff]
      %v2124 = vld [vmem:[%s2109 + $0x70] sm:$0xff]
      %v2125 = vld [vmem:[%s2109 + $0x78] sm:$0xff]
      %v2126 = vld [vmem:[%s2109 + $0x80] sm:$0xff]
      %v2127 = vld [vmem:[%s2109 + $0x88] sm:$0xff]
      %v2128 = vld [vmem:[%s2109 + $0x90] sm:$0xff]
      %v2129 = vld [vmem:[%s2109 + $0x98] sm:$0xff]
      %v2130 = vld [vmem:[%s2109 + $0xa0] sm:$0xff]
      %v2131 = vld [vmem:[%s2109 + $0xa8] sm:$0xff]
      %v2132 = vld [vmem:[%s2109 + $0xb0] sm:$0xff]
      %v2133 = vld [vmem:[%s2109 + $0xb8] sm:$0xff]
      %v2134 = vld [vmem:[%s2109 + $0xc0] sm:$0xff]
      %v2135 = vld [vmem:[%s2109 + $0xc8] sm:$0xff]
      %v2136 = vld [vmem:[%s2109 + $0xd0] sm:$0xff]
      %v2137 = vld [vmem:[%s2109 + $0xd8] sm:$0xff]
      %v2138 = vld [vmem:[%s2109 + $0xe0] sm:$0xff]
      %v2139 = vld [vmem:[%s2109 + $0xe8] sm:$0xff]
      %v2140 = vld [vmem:[%s2109 + $0xf0] sm:$0xff]
      %v2141 = vld [vmem:[%s2109 + $0xf8] sm:$0xff]
      %v2142 = vld [vmem:[%s2109 + $0x100] sm:$0xff]
      %v2143 = vld [vmem:[%s2109 + $0x108] sm:$0xff]
      %v2144 = vld [vmem:[%s2109 + $0x110] sm:$0xff]
      %v2145 = vld [vmem:[%s2109 + $0x118] sm:$0xff]
      %v2146 = vpack.c.bf16 %v2111, %v2110
      %v2147 = vpack.c.bf16 %v2113, %v2112
      %v2148 = vpack.c.bf16 %v2115, %v2114
      %v2149 = vpack.c.bf16 %v2117, %v2116
      %v2150 = vpack.c.bf16 %v2119, %v2118
      %v2151 = vpack.c.bf16 %v2121, %v2120
      %v2152 = vpack.c.bf16 %v2123, %v2122
      %v2153 = vpack.c.bf16 %v2125, %v2124
      %v2154 = vpack.c.bf16 %v2127, %v2126
      %v2155 = vpack.c.bf16 %v2129, %v2128
      %v2156 = vpack.c.bf16 %v2131, %v2130
      %v2157 = vpack.c.bf16 %v2133, %v2132
      %v2158 = vpack.c.bf16 %v2135, %v2134
      %v2159 = vpack.c.bf16 %v2137, %v2136
      %v2160 = vpack.c.bf16 %v2139, %v2138
      %v2161 = vpack.c.bf16 %v2141, %v2140
      %v2162 = vpack.c.bf16 %v2143, %v2142
      %v2163 = vpack.c.bf16 %v2145, %v2144
      %s2164 = scalar_lea.vmem %s1, 14
      %v2165 = vld [vmem:[%s2164] sm:$0x3]
      %v2167 = vsel %vm544, %v2146, 0
      %v2170 = vsel %vm544, %v2147, 0
      %v2173 = vsel %vm544, %v2148, 0
      %v2176 = vsel %vm544, %v2149, 0
      %v2179 = vsel %vm544, %v2150, 0
      %v2182 = vsel %vm544, %v2151, 0
      %v2185 = vsel %vm544, %v2152, 0
      %v2188 = vsel %vm544, %v2153, 0
      %v2191 = vsel %vm544, %v2154, 0
      %v2194 = vsel %vm544, %v2155, 0
      %v2197 = vsel %vm544, %v2156, 0
      %v2200 = vsel %vm544, %v2157, 0
      %v2203 = vsel %vm544, %v2158, 0
      %v2206 = vsel %vm544, %v2159, 0
      %v2209 = vsel %vm544, %v2160, 0
      %v2212 = vsel %vm544, %v2161, 0
      %v2215 = vsel %vm544, %v2162, 0
      %v2218 = vsel %vm544, %v2163, 0
      %v2221 = vsel %vm599, %v2165, 0
      %2223 = vmatpush.bf16.msra.mxu0 0
      %2224 = vmatpush.bf16.msra.mxu0 0
      %2225 = vmatpush.bf16.msra.mxu0 0
      %2226 = vmatpush.bf16.msra.mxu0 0
      %2227 = vmatpush.bf16.msra.mxu0 0
      %2228 = vmatpush.bf16.msra.mxu0 0
      %2229 = vmatpush.bf16.msra.mxu0 0
      %2230 = vmatpush.bf16.msra.mxu0 %v2221
      %2231 = vmatmul.bf16.gmra.mxu0 %v2167
      %v2232 = vpop.f32.mrf.mxu0
      %v2233 = vadd.f32 0.0, %v2232
      %v2234 = vpop.f32.mrf.mxu0
      %v2235 = vadd.f32 0.0, %v2234
      %2236 = vmatmul.bf16.gmra.mxu0 %v2170
      %v2237 = vpop.f32.mrf.mxu0
      %v2238 = vadd.f32 0.0, %v2237
      %v2239 = vpop.f32.mrf.mxu0
      %v2240 = vadd.f32 0.0, %v2239
      %2241 = vmatmul.bf16.gmra.mxu0 %v2173
      %v2242 = vpop.f32.mrf.mxu0
      %v2243 = vadd.f32 0.0, %v2242
      %v2244 = vpop.f32.mrf.mxu0
      %v2245 = vadd.f32 0.0, %v2244
      %2246 = vmatmul.bf16.gmra.mxu0 %v2176
      %v2247 = vpop.f32.mrf.mxu0
      %v2248 = vadd.f32 0.0, %v2247
      %v2249 = vpop.f32.mrf.mxu0
      %v2250 = vadd.f32 0.0, %v2249
      %2251 = vmatmul.bf16.gmra.mxu0 %v2179
      %v2252 = vpop.f32.mrf.mxu0
      %v2253 = vadd.f32 0.0, %v2252
      %v2254 = vpop.f32.mrf.mxu0
      %v2255 = vadd.f32 0.0, %v2254
      %2256 = vmatmul.bf16.gmra.mxu0 %v2182
      %v2257 = vpop.f32.mrf.mxu0
      %v2258 = vadd.f32 0.0, %v2257
      %v2259 = vpop.f32.mrf.mxu0
      %v2260 = vadd.f32 0.0, %v2259
      %2261 = vmatmul.bf16.gmra.mxu0 %v2185
      %v2262 = vpop.f32.mrf.mxu0
      %v2263 = vadd.f32 0.0, %v2262
      %v2264 = vpop.f32.mrf.mxu0
      %v2265 = vadd.f32 0.0, %v2264
      %2266 = vmatmul.bf16.gmra.mxu0 %v2188
      %v2267 = vpop.f32.mrf.mxu0
      %v2268 = vadd.f32 0.0, %v2267
      %v2269 = vpop.f32.mrf.mxu0
      %v2270 = vadd.f32 0.0, %v2269
      %2271 = vmatmul.bf16.gmra.mxu0 %v2191
      %v2272 = vpop.f32.mrf.mxu0
      %v2273 = vadd.f32 0.0, %v2272
      %v2274 = vpop.f32.mrf.mxu0
      %v2275 = vadd.f32 0.0, %v2274
      %2276 = vmatmul.bf16.gmra.mxu0 %v2194
      %v2277 = vpop.f32.mrf.mxu0
      %v2278 = vadd.f32 0.0, %v2277
      %v2279 = vpop.f32.mrf.mxu0
      %v2280 = vadd.f32 0.0, %v2279
      %2281 = vmatmul.bf16.gmra.mxu0 %v2197
      %v2282 = vpop.f32.mrf.mxu0
      %v2283 = vadd.f32 0.0, %v2282
      %v2284 = vpop.f32.mrf.mxu0
      %v2285 = vadd.f32 0.0, %v2284
      %2286 = vmatmul.bf16.gmra.mxu0 %v2200
      %v2287 = vpop.f32.mrf.mxu0
      %v2288 = vadd.f32 0.0, %v2287
      %v2289 = vpop.f32.mrf.mxu0
      %v2290 = vadd.f32 0.0, %v2289
      %2291 = vmatmul.bf16.gmra.mxu0 %v2203
      %v2292 = vpop.f32.mrf.mxu0
      %v2293 = vadd.f32 0.0, %v2292
      %v2294 = vpop.f32.mrf.mxu0
      %v2295 = vadd.f32 0.0, %v2294
      %2296 = vmatmul.bf16.gmra.mxu0 %v2206
      %v2297 = vpop.f32.mrf.mxu0
      %v2298 = vadd.f32 0.0, %v2297
      %v2299 = vpop.f32.mrf.mxu0
      %v2300 = vadd.f32 0.0, %v2299
      %2301 = vmatmul.bf16.gmra.mxu0 %v2209
      %v2302 = vpop.f32.mrf.mxu0
      %v2303 = vadd.f32 0.0, %v2302
      %v2304 = vpop.f32.mrf.mxu0
      %v2305 = vadd.f32 0.0, %v2304
      %2306 = vmatmul.bf16.gmra.mxu0 %v2212
      %v2307 = vpop.f32.mrf.mxu0
      %v2308 = vadd.f32 0.0, %v2307
      %v2309 = vpop.f32.mrf.mxu0
      %v2310 = vadd.f32 0.0, %v2309
      %2311 = vmatmul.bf16.gmra.mxu0 %v2215
      %v2312 = vpop.f32.mrf.mxu0
      %v2313 = vadd.f32 0.0, %v2312
      %v2314 = vpop.f32.mrf.mxu0
      %v2315 = vadd.f32 0.0, %v2314
      %2316 = vmatmul.bf16.gmra.mxu0 %v2218
      %v2317 = vpop.f32.mrf.mxu0
      %v2318 = vadd.f32 0.0, %v2317
      %v2319 = vpop.f32.mrf.mxu0
      %v2320 = vadd.f32 0.0, %v2319
      %2321 = vdwg.mxu0
      %v2322 = vadd.f32 %v2072, %v2233
      %v2323 = vadd.f32 %v2073, %v2235
      %v2324 = vadd.f32 %v2074, %v2238
      %v2325 = vadd.f32 %v2075, %v2240
      %v2326 = vadd.f32 %v2076, %v2243
      %v2327 = vadd.f32 %v2077, %v2245
      %v2328 = vadd.f32 %v2078, %v2248
      %v2329 = vadd.f32 %v2079, %v2250
      %v2330 = vadd.f32 %v2080, %v2253
      %v2331 = vadd.f32 %v2081, %v2255
      %v2332 = vadd.f32 %v2082, %v2258
      %v2333 = vadd.f32 %v2083, %v2260
      %v2334 = vadd.f32 %v2084, %v2263
      %v2335 = vadd.f32 %v2085, %v2265
      %v2336 = vadd.f32 %v2086, %v2268
      %v2337 = vadd.f32 %v2087, %v2270
      %v2338 = vadd.f32 %v2088, %v2273
      %v2339 = vadd.f32 %v2089, %v2275
      %v2340 = vadd.f32 %v2090, %v2278
      %v2341 = vadd.f32 %v2091, %v2280
      %v2342 = vadd.f32 %v2092, %v2283
      %v2343 = vadd.f32 %v2093, %v2285
      %v2344 = vadd.f32 %v2094, %v2288
      %v2345 = vadd.f32 %v2095, %v2290
      %v2346 = vadd.f32 %v2096, %v2293
      %v2347 = vadd.f32 %v2097, %v2295
      %v2348 = vadd.f32 %v2098, %v2298
      %v2349 = vadd.f32 %v2099, %v2300
      %v2350 = vadd.f32 %v2100, %v2303
      %v2351 = vadd.f32 %v2101, %v2305
      %v2352 = vadd.f32 %v2102, %v2308
      %v2353 = vadd.f32 %v2103, %v2310
      %v2354 = vadd.f32 %v2104, %v2313
      %v2355 = vadd.f32 %v2105, %v2315
      %v2356 = vadd.f32 %v2106, %v2318
      %v2357 = vadd.f32 %v2107, %v2320
      %s2358 = sadd.s32 %s429, 38
      %s2359 = scalar_lea.vmem %s418, %s2358
      %v2360 = vld [vmem:[%s2359] sm:$0xff]
      %v2361 = vld [vmem:[%s2359 + $0x8] sm:$0xff]
      %v2362 = vld [vmem:[%s2359 + $0x10] sm:$0xff]
      %v2363 = vld [vmem:[%s2359 + $0x18] sm:$0xff]
      %v2364 = vld [vmem:[%s2359 + $0x20] sm:$0xff]
      %v2365 = vld [vmem:[%s2359 + $0x28] sm:$0xff]
      %v2366 = vld [vmem:[%s2359 + $0x30] sm:$0xff]
      %v2367 = vld [vmem:[%s2359 + $0x38] sm:$0xff]
      %v2368 = vld [vmem:[%s2359 + $0x40] sm:$0xff]
      %v2369 = vld [vmem:[%s2359 + $0x48] sm:$0xff]
      %v2370 = vld [vmem:[%s2359 + $0x50] sm:$0xff]
      %v2371 = vld [vmem:[%s2359 + $0x58] sm:$0xff]
      %v2372 = vld [vmem:[%s2359 + $0x60] sm:$0xff]
      %v2373 = vld [vmem:[%s2359 + $0x68] sm:$0xff]
      %v2374 = vld [vmem:[%s2359 + $0x70] sm:$0xff]
      %v2375 = vld [vmem:[%s2359 + $0x78] sm:$0xff]
      %v2376 = vld [vmem:[%s2359 + $0x80] sm:$0xff]
      %v2377 = vld [vmem:[%s2359 + $0x88] sm:$0xff]
      %v2378 = vld [vmem:[%s2359 + $0x90] sm:$0xff]
      %v2379 = vld [vmem:[%s2359 + $0x98] sm:$0xff]
      %v2380 = vld [vmem:[%s2359 + $0xa0] sm:$0xff]
      %v2381 = vld [vmem:[%s2359 + $0xa8] sm:$0xff]
      %v2382 = vld [vmem:[%s2359 + $0xb0] sm:$0xff]
      %v2383 = vld [vmem:[%s2359 + $0xb8] sm:$0xff]
      %v2384 = vld [vmem:[%s2359 + $0xc0] sm:$0xff]
      %v2385 = vld [vmem:[%s2359 + $0xc8] sm:$0xff]
      %v2386 = vld [vmem:[%s2359 + $0xd0] sm:$0xff]
      %v2387 = vld [vmem:[%s2359 + $0xd8] sm:$0xff]
      %v2388 = vld [vmem:[%s2359 + $0xe0] sm:$0xff]
      %v2389 = vld [vmem:[%s2359 + $0xe8] sm:$0xff]
      %v2390 = vld [vmem:[%s2359 + $0xf0] sm:$0xff]
      %v2391 = vld [vmem:[%s2359 + $0xf8] sm:$0xff]
      %v2392 = vld [vmem:[%s2359 + $0x100] sm:$0xff]
      %v2393 = vld [vmem:[%s2359 + $0x108] sm:$0xff]
      %v2394 = vld [vmem:[%s2359 + $0x110] sm:$0xff]
      %v2395 = vld [vmem:[%s2359 + $0x118] sm:$0xff]
      %v2396 = vpack.c.bf16 %v2361, %v2360
      %v2397 = vpack.c.bf16 %v2363, %v2362
      %v2398 = vpack.c.bf16 %v2365, %v2364
      %v2399 = vpack.c.bf16 %v2367, %v2366
      %v2400 = vpack.c.bf16 %v2369, %v2368
      %v2401 = vpack.c.bf16 %v2371, %v2370
      %v2402 = vpack.c.bf16 %v2373, %v2372
      %v2403 = vpack.c.bf16 %v2375, %v2374
      %v2404 = vpack.c.bf16 %v2377, %v2376
      %v2405 = vpack.c.bf16 %v2379, %v2378
      %v2406 = vpack.c.bf16 %v2381, %v2380
      %v2407 = vpack.c.bf16 %v2383, %v2382
      %v2408 = vpack.c.bf16 %v2385, %v2384
      %v2409 = vpack.c.bf16 %v2387, %v2386
      %v2410 = vpack.c.bf16 %v2389, %v2388
      %v2411 = vpack.c.bf16 %v2391, %v2390
      %v2412 = vpack.c.bf16 %v2393, %v2392
      %v2413 = vpack.c.bf16 %v2395, %v2394
      %s2414 = scalar_lea.vmem %s1, 16
      %v2415 = vld [vmem:[%s2414] sm:$0x3]
      %v2417 = vsel %vm544, %v2396, 0
      %v2420 = vsel %vm544, %v2397, 0
      %v2423 = vsel %vm544, %v2398, 0
      %v2426 = vsel %vm544, %v2399, 0
      %v2429 = vsel %vm544, %v2400, 0
      %v2432 = vsel %vm544, %v2401, 0
      %v2435 = vsel %vm544, %v2402, 0
      %v2438 = vsel %vm544, %v2403, 0
      %v2441 = vsel %vm544, %v2404, 0
      %v2444 = vsel %vm544, %v2405, 0
      %v2447 = vsel %vm544, %v2406, 0
      %v2450 = vsel %vm544, %v2407, 0
      %v2453 = vsel %vm544, %v2408, 0
      %v2456 = vsel %vm544, %v2409, 0
      %v2459 = vsel %vm544, %v2410, 0
      %v2462 = vsel %vm544, %v2411, 0
      %v2465 = vsel %vm544, %v2412, 0
      %v2468 = vsel %vm544, %v2413, 0
      %v2471 = vsel %vm599, %v2415, 0
      %2473 = vmatpush.bf16.msra.mxu0 0
      %2474 = vmatpush.bf16.msra.mxu0 0
      %2475 = vmatpush.bf16.msra.mxu0 0
      %2476 = vmatpush.bf16.msra.mxu0 0
      %2477 = vmatpush.bf16.msra.mxu0 0
      %2478 = vmatpush.bf16.msra.mxu0 0
      %2479 = vmatpush.bf16.msra.mxu0 0
      %2480 = vmatpush.bf16.msra.mxu0 %v2471
      %2481 = vmatmul.bf16.gmra.mxu0 %v2417
      %v2482 = vpop.f32.mrf.mxu0
      %v2483 = vadd.f32 0.0, %v2482
      %v2484 = vpop.f32.mrf.mxu0
      %v2485 = vadd.f32 0.0, %v2484
      %2486 = vmatmul.bf16.gmra.mxu0 %v2420
      %v2487 = vpop.f32.mrf.mxu0
      %v2488 = vadd.f32 0.0, %v2487
      %v2489 = vpop.f32.mrf.mxu0
      %v2490 = vadd.f32 0.0, %v2489
      %2491 = vmatmul.bf16.gmra.mxu0 %v2423
      %v2492 = vpop.f32.mrf.mxu0
      %v2493 = vadd.f32 0.0, %v2492
      %v2494 = vpop.f32.mrf.mxu0
      %v2495 = vadd.f32 0.0, %v2494
      %2496 = vmatmul.bf16.gmra.mxu0 %v2426
      %v2497 = vpop.f32.mrf.mxu0
      %v2498 = vadd.f32 0.0, %v2497
      %v2499 = vpop.f32.mrf.mxu0
      %v2500 = vadd.f32 0.0, %v2499
      %2501 = vmatmul.bf16.gmra.mxu0 %v2429
      %v2502 = vpop.f32.mrf.mxu0
      %v2503 = vadd.f32 0.0, %v2502
      %v2504 = vpop.f32.mrf.mxu0
      %v2505 = vadd.f32 0.0, %v2504
      %2506 = vmatmul.bf16.gmra.mxu0 %v2432
      %v2507 = vpop.f32.mrf.mxu0
      %v2508 = vadd.f32 0.0, %v2507
      %v2509 = vpop.f32.mrf.mxu0
      %v2510 = vadd.f32 0.0, %v2509
      %2511 = vmatmul.bf16.gmra.mxu0 %v2435
      %v2512 = vpop.f32.mrf.mxu0
      %v2513 = vadd.f32 0.0, %v2512
      %v2514 = vpop.f32.mrf.mxu0
      %v2515 = vadd.f32 0.0, %v2514
      %2516 = vmatmul.bf16.gmra.mxu0 %v2438
      %v2517 = vpop.f32.mrf.mxu0
      %v2518 = vadd.f32 0.0, %v2517
      %v2519 = vpop.f32.mrf.mxu0
      %v2520 = vadd.f32 0.0, %v2519
      %2521 = vmatmul.bf16.gmra.mxu0 %v2441
      %v2522 = vpop.f32.mrf.mxu0
      %v2523 = vadd.f32 0.0, %v2522
      %v2524 = vpop.f32.mrf.mxu0
      %v2525 = vadd.f32 0.0, %v2524
      %2526 = vmatmul.bf16.gmra.mxu0 %v2444
      %v2527 = vpop.f32.mrf.mxu0
      %v2528 = vadd.f32 0.0, %v2527
      %v2529 = vpop.f32.mrf.mxu0
      %v2530 = vadd.f32 0.0, %v2529
      %2531 = vmatmul.bf16.gmra.mxu0 %v2447
      %v2532 = vpop.f32.mrf.mxu0
      %v2533 = vadd.f32 0.0, %v2532
      %v2534 = vpop.f32.mrf.mxu0
      %v2535 = vadd.f32 0.0, %v2534
      %2536 = vmatmul.bf16.gmra.mxu0 %v2450
      %v2537 = vpop.f32.mrf.mxu0
      %v2538 = vadd.f32 0.0, %v2537
      %v2539 = vpop.f32.mrf.mxu0
      %v2540 = vadd.f32 0.0, %v2539
      %2541 = vmatmul.bf16.gmra.mxu0 %v2453
      %v2542 = vpop.f32.mrf.mxu0
      %v2543 = vadd.f32 0.0, %v2542
      %v2544 = vpop.f32.mrf.mxu0
      %v2545 = vadd.f32 0.0, %v2544
      %2546 = vmatmul.bf16.gmra.mxu0 %v2456
      %v2547 = vpop.f32.mrf.mxu0
      %v2548 = vadd.f32 0.0, %v2547
      %v2549 = vpop.f32.mrf.mxu0
      %v2550 = vadd.f32 0.0, %v2549
      %2551 = vmatmul.bf16.gmra.mxu0 %v2459
      %v2552 = vpop.f32.mrf.mxu0
      %v2553 = vadd.f32 0.0, %v2552
      %v2554 = vpop.f32.mrf.mxu0
      %v2555 = vadd.f32 0.0, %v2554
      %2556 = vmatmul.bf16.gmra.mxu0 %v2462
      %v2557 = vpop.f32.mrf.mxu0
      %v2558 = vadd.f32 0.0, %v2557
      %v2559 = vpop.f32.mrf.mxu0
      %v2560 = vadd.f32 0.0, %v2559
      %2561 = vmatmul.bf16.gmra.mxu0 %v2465
      %v2562 = vpop.f32.mrf.mxu0
      %v2563 = vadd.f32 0.0, %v2562
      %v2564 = vpop.f32.mrf.mxu0
      %v2565 = vadd.f32 0.0, %v2564
      %2566 = vmatmul.bf16.gmra.mxu0 %v2468
      %v2567 = vpop.f32.mrf.mxu0
      %v2568 = vadd.f32 0.0, %v2567
      %v2569 = vpop.f32.mrf.mxu0
      %v2570 = vadd.f32 0.0, %v2569
      %2571 = vdwg.mxu0
      %v2572 = vadd.f32 %v2322, %v2483
      %v2573 = vadd.f32 %v2323, %v2485
      %v2574 = vadd.f32 %v2324, %v2488
      %v2575 = vadd.f32 %v2325, %v2490
      %v2576 = vadd.f32 %v2326, %v2493
      %v2577 = vadd.f32 %v2327, %v2495
      %v2578 = vadd.f32 %v2328, %v2498
      %v2579 = vadd.f32 %v2329, %v2500
      %v2580 = vadd.f32 %v2330, %v2503
      %v2581 = vadd.f32 %v2331, %v2505
      %v2582 = vadd.f32 %v2332, %v2508
      %v2583 = vadd.f32 %v2333, %v2510
      %v2584 = vadd.f32 %v2334, %v2513
      %v2585 = vadd.f32 %v2335, %v2515
      %v2586 = vadd.f32 %v2336, %v2518
      %v2587 = vadd.f32 %v2337, %v2520
      %v2588 = vadd.f32 %v2338, %v2523
      %v2589 = vadd.f32 %v2339, %v2525
      %v2590 = vadd.f32 %v2340, %v2528
      %v2591 = vadd.f32 %v2341, %v2530
      %v2592 = vadd.f32 %v2342, %v2533
      %v2593 = vadd.f32 %v2343, %v2535
      %v2594 = vadd.f32 %v2344, %v2538
      %v2595 = vadd.f32 %v2345, %v2540
      %v2596 = vadd.f32 %v2346, %v2543
      %v2597 = vadd.f32 %v2347, %v2545
      %v2598 = vadd.f32 %v2348, %v2548
      %v2599 = vadd.f32 %v2349, %v2550
      %v2600 = vadd.f32 %v2350, %v2553
      %v2601 = vadd.f32 %v2351, %v2555
      %v2602 = vadd.f32 %v2352, %v2558
      %v2603 = vadd.f32 %v2353, %v2560
      %v2604 = vadd.f32 %v2354, %v2563
      %v2605 = vadd.f32 %v2355, %v2565
      %v2606 = vadd.f32 %v2356, %v2568
      %v2607 = vadd.f32 %v2357, %v2570
      %v2608 = vld [vmem:[%s2] sm:$0x1]
      %v2610 = vperm.slane %v2608, 0
      %v2612 = vadd.f32 %v2572, %v2610
      %v2613 = vadd.f32 %v2573, %v2610
      %v2614 = vadd.f32 %v2574, %v2610
      %v2615 = vadd.f32 %v2575, %v2610
      %v2616 = vadd.f32 %v2576, %v2610
      %v2617 = vadd.f32 %v2577, %v2610
      %v2618 = vadd.f32 %v2578, %v2610
      %v2619 = vadd.f32 %v2579, %v2610
      %v2620 = vadd.f32 %v2580, %v2610
      %v2621 = vadd.f32 %v2581, %v2610
      %v2622 = vadd.f32 %v2582, %v2610
      %v2623 = vadd.f32 %v2583, %v2610
      %v2624 = vadd.f32 %v2584, %v2610
      %v2625 = vadd.f32 %v2585, %v2610
      %v2626 = vadd.f32 %v2586, %v2610
      %v2627 = vadd.f32 %v2587, %v2610
      %v2628 = vadd.f32 %v2588, %v2610
      %v2629 = vadd.f32 %v2589, %v2610
      %v2630 = vadd.f32 %v2590, %v2610
      %v2631 = vadd.f32 %v2591, %v2610
      %v2632 = vadd.f32 %v2592, %v2610
      %v2633 = vadd.f32 %v2593, %v2610
      %v2634 = vadd.f32 %v2594, %v2610
      %v2635 = vadd.f32 %v2595, %v2610
      %v2636 = vadd.f32 %v2596, %v2610
      %v2637 = vadd.f32 %v2597, %v2610
      %v2638 = vadd.f32 %v2598, %v2610
      %v2639 = vadd.f32 %v2599, %v2610
      %v2640 = vadd.f32 %v2600, %v2610
      %v2641 = vadd.f32 %v2601, %v2610
      %v2642 = vadd.f32 %v2602, %v2610
      %v2643 = vadd.f32 %v2603, %v2610
      %v2644 = vadd.f32 %v2604, %v2610
      %v2645 = vadd.f32 %v2605, %v2610
      %v2646 = vadd.f32 %v2606, %v2610
      %v2647 = vadd.f32 %v2607, %v2610
      %v2648 = vmax.f32 %v2612, 0.0
      %v2649 = vmax.f32 %v2613, 0.0
      %v2650 = vmax.f32 %v2614, 0.0
      %v2651 = vmax.f32 %v2615, 0.0
      %v2652 = vmax.f32 %v2616, 0.0
      %v2653 = vmax.f32 %v2617, 0.0
      %v2654 = vmax.f32 %v2618, 0.0
      %v2655 = vmax.f32 %v2619, 0.0
      %v2656 = vmax.f32 %v2620, 0.0
      %v2657 = vmax.f32 %v2621, 0.0
      %v2658 = vmax.f32 %v2622, 0.0
      %v2659 = vmax.f32 %v2623, 0.0
      %v2660 = vmax.f32 %v2624, 0.0
      %v2661 = vmax.f32 %v2625, 0.0
      %v2662 = vmax.f32 %v2626, 0.0
      %v2663 = vmax.f32 %v2627, 0.0
      %v2664 = vmax.f32 %v2628, 0.0
      %v2665 = vmax.f32 %v2629, 0.0
      %v2666 = vmax.f32 %v2630, 0.0
      %v2667 = vmax.f32 %v2631, 0.0
      %v2668 = vmax.f32 %v2632, 0.0
      %v2669 = vmax.f32 %v2633, 0.0
      %v2670 = vmax.f32 %v2634, 0.0
      %v2671 = vmax.f32 %v2635, 0.0
      %v2672 = vmax.f32 %v2636, 0.0
      %v2673 = vmax.f32 %v2637, 0.0
      %v2674 = vmax.f32 %v2638, 0.0
      %v2675 = vmax.f32 %v2639, 0.0
      %v2676 = vmax.f32 %v2640, 0.0
      %v2677 = vmax.f32 %v2641, 0.0
      %v2678 = vmax.f32 %v2642, 0.0
      %v2679 = vmax.f32 %v2643, 0.0
      %v2680 = vmax.f32 %v2644, 0.0
      %v2681 = vmax.f32 %v2645, 0.0
      %v2682 = vmax.f32 %v2646, 0.0
      %v2683 = vmax.f32 %v2647, 0.0
      %v2684 = vld [vmem:[%s3] sm:$0xff]
      %v2685 = vld [vmem:[%s3 + $0x8] sm:$0xff]
      %v2686 = vld [vmem:[%s3 + $0x10] sm:$0xff]
      %v2687 = vld [vmem:[%s3 + $0x18] sm:$0xff]
      %v2688 = vld [vmem:[%s3 + $0x20] sm:$0xff]
      %v2689 = vld [vmem:[%s3 + $0x28] sm:$0xff]
      %v2690 = vld [vmem:[%s3 + $0x30] sm:$0xff]
      %v2691 = vld [vmem:[%s3 + $0x38] sm:$0xff]
      %v2692 = vld [vmem:[%s3 + $0x40] sm:$0xff]
      %v2693 = vld [vmem:[%s3 + $0x48] sm:$0xff]
      %v2694 = vld [vmem:[%s3 + $0x50] sm:$0xff]
      %v2695 = vld [vmem:[%s3 + $0x58] sm:$0xff]
      %v2696 = vld [vmem:[%s3 + $0x60] sm:$0xff]
      %v2697 = vld [vmem:[%s3 + $0x68] sm:$0xff]
      %v2698 = vld [vmem:[%s3 + $0x70] sm:$0xff]
      %v2699 = vld [vmem:[%s3 + $0x78] sm:$0xff]
      %v2700 = vld [vmem:[%s3 + $0x80] sm:$0xff]
      %v2701 = vld [vmem:[%s3 + $0x88] sm:$0xff]
      %v2702 = vld [vmem:[%s3 + $0x90] sm:$0xff]
      %v2703 = vld [vmem:[%s3 + $0x98] sm:$0xff]
      %v2704 = vld [vmem:[%s3 + $0xa0] sm:$0xff]
      %v2705 = vld [vmem:[%s3 + $0xa8] sm:$0xff]
      %v2706 = vld [vmem:[%s3 + $0xb0] sm:$0xff]
      %v2707 = vld [vmem:[%s3 + $0xb8] sm:$0xff]
      %v2708 = vld [vmem:[%s3 + $0xc0] sm:$0xff]
      %v2709 = vld [vmem:[%s3 + $0xc8] sm:$0xff]
      %v2710 = vld [vmem:[%s3 + $0xd0] sm:$0xff]
      %v2711 = vld [vmem:[%s3 + $0xd8] sm:$0xff]
      %v2712 = vld [vmem:[%s3 + $0xe0] sm:$0xff]
      %v2713 = vld [vmem:[%s3 + $0xe8] sm:$0xff]
      %v2714 = vld [vmem:[%s3 + $0xf0] sm:$0xff]
      %v2715 = vld [vmem:[%s3 + $0xf8] sm:$0xff]
      %v2716 = vld [vmem:[%s3 + $0x100] sm:$0xff]
      %v2717 = vld [vmem:[%s3 + $0x108] sm:$0xff]
      %v2718 = vld [vmem:[%s3 + $0x110] sm:$0xff]
      %v2719 = vld [vmem:[%s3 + $0x118] sm:$0xff]
      %2721 = vset.pattern.permute.xlu0 0
      %2722 = vperm.xlu0 %2721, %v2684
      %v2723 = vpop.permute.xlu0 %2722
      %2726 = vset.pattern.permute.xlu0 0
      %2727 = vperm.xlu0 %2726, %v2685
      %v2728 = vpop.permute.xlu0 %2727
      %2731 = vset.pattern.permute.xlu0 0
      %2732 = vperm.xlu0 %2731, %v2686
      %v2733 = vpop.permute.xlu0 %2732
      %2736 = vset.pattern.permute.xlu0 0
      %2737 = vperm.xlu0 %2736, %v2687
      %v2738 = vpop.permute.xlu0 %2737
      %2741 = vset.pattern.permute.xlu0 0
      %2742 = vperm.xlu0 %2741, %v2688
      %v2743 = vpop.permute.xlu0 %2742
      %2746 = vset.pattern.permute.xlu0 0
      %2747 = vperm.xlu0 %2746, %v2689
      %v2748 = vpop.permute.xlu0 %2747
      %2751 = vset.pattern.permute.xlu0 0
      %2752 = vperm.xlu0 %2751, %v2690
      %v2753 = vpop.permute.xlu0 %2752
      %2756 = vset.pattern.permute.xlu0 0
      %2757 = vperm.xlu0 %2756, %v2691
      %v2758 = vpop.permute.xlu0 %2757
      %2761 = vset.pattern.permute.xlu0 0
      %2762 = vperm.xlu0 %2761, %v2692
      %v2763 = vpop.permute.xlu0 %2762
      %2766 = vset.pattern.permute.xlu0 0
      %2767 = vperm.xlu0 %2766, %v2693
      %v2768 = vpop.permute.xlu0 %2767
      %2771 = vset.pattern.permute.xlu0 0
      %2772 = vperm.xlu0 %2771, %v2694
      %v2773 = vpop.permute.xlu0 %2772
      %2776 = vset.pattern.permute.xlu0 0
      %2777 = vperm.xlu0 %2776, %v2695
      %v2778 = vpop.permute.xlu0 %2777
      %2781 = vset.pattern.permute.xlu0 0
      %2782 = vperm.xlu0 %2781, %v2696
      %v2783 = vpop.permute.xlu0 %2782
      %2786 = vset.pattern.permute.xlu0 0
      %2787 = vperm.xlu0 %2786, %v2697
      %v2788 = vpop.permute.xlu0 %2787
      %2791 = vset.pattern.permute.xlu0 0
      %2792 = vperm.xlu0 %2791, %v2698
      %v2793 = vpop.permute.xlu0 %2792
      %2796 = vset.pattern.permute.xlu0 0
      %2797 = vperm.xlu0 %2796, %v2699
      %v2798 = vpop.permute.xlu0 %2797
      %2801 = vset.pattern.permute.xlu0 0
      %2802 = vperm.xlu0 %2801, %v2700
      %v2803 = vpop.permute.xlu0 %2802
      %2806 = vset.pattern.permute.xlu0 0
      %2807 = vperm.xlu0 %2806, %v2701
      %v2808 = vpop.permute.xlu0 %2807
      %2811 = vset.pattern.permute.xlu0 0
      %2812 = vperm.xlu0 %2811, %v2702
      %v2813 = vpop.permute.xlu0 %2812
      %2816 = vset.pattern.permute.xlu0 0
      %2817 = vperm.xlu0 %2816, %v2703
      %v2818 = vpop.permute.xlu0 %2817
      %2821 = vset.pattern.permute.xlu0 0
      %2822 = vperm.xlu0 %2821, %v2704
      %v2823 = vpop.permute.xlu0 %2822
      %2826 = vset.pattern.permute.xlu0 0
      %2827 = vperm.xlu0 %2826, %v2705
      %v2828 = vpop.permute.xlu0 %2827
      %2831 = vset.pattern.permute.xlu0 0
      %2832 = vperm.xlu0 %2831, %v2706
      %v2833 = vpop.permute.xlu0 %2832
      %2836 = vset.pattern.permute.xlu0 0
      %2837 = vperm.xlu0 %2836, %v2707
      %v2838 = vpop.permute.xlu0 %2837
      %2841 = vset.pattern.permute.xlu0 0
      %2842 = vperm.xlu0 %2841, %v2708
      %v2843 = vpop.permute.xlu0 %2842
      %2846 = vset.pattern.permute.xlu0 0
      %2847 = vperm.xlu0 %2846, %v2709
      %v2848 = vpop.permute.xlu0 %2847
      %2851 = vset.pattern.permute.xlu0 0
      %2852 = vperm.xlu0 %2851, %v2710
      %v2853 = vpop.permute.xlu0 %2852
      %2856 = vset.pattern.permute.xlu0 0
      %2857 = vperm.xlu0 %2856, %v2711
      %v2858 = vpop.permute.xlu0 %2857
      %2861 = vset.pattern.permute.xlu0 0
      %2862 = vperm.xlu0 %2861, %v2712
      %v2863 = vpop.permute.xlu0 %2862
      %2866 = vset.pattern.permute.xlu0 0
      %2867 = vperm.xlu0 %2866, %v2713
      %v2868 = vpop.permute.xlu0 %2867
      %2871 = vset.pattern.permute.xlu0 0
      %2872 = vperm.xlu0 %2871, %v2714
      %v2873 = vpop.permute.xlu0 %2872
      %2876 = vset.pattern.permute.xlu0 0
      %2877 = vperm.xlu0 %2876, %v2715
      %v2878 = vpop.permute.xlu0 %2877
      %2881 = vset.pattern.permute.xlu0 0
      %2882 = vperm.xlu0 %2881, %v2716
      %v2883 = vpop.permute.xlu0 %2882
      %2886 = vset.pattern.permute.xlu0 0
      %2887 = vperm.xlu0 %2886, %v2717
      %v2888 = vpop.permute.xlu0 %2887
      %2891 = vset.pattern.permute.xlu0 0
      %2892 = vperm.xlu0 %2891, %v2718
      %v2893 = vpop.permute.xlu0 %2892
      %2896 = vset.pattern.permute.xlu0 0
      %2897 = vperm.xlu0 %2896, %v2719
      %v2898 = vpop.permute.xlu0 %2897
      %v2900 = vmul.f32 %v2648, %v2723
      %v2901 = vmul.f32 %v2649, %v2728
      %v2902 = vmul.f32 %v2650, %v2733
      %v2903 = vmul.f32 %v2651, %v2738
      %v2904 = vmul.f32 %v2652, %v2743
      %v2905 = vmul.f32 %v2653, %v2748
      %v2906 = vmul.f32 %v2654, %v2753
      %v2907 = vmul.f32 %v2655, %v2758
      %v2908 = vmul.f32 %v2656, %v2763
      %v2909 = vmul.f32 %v2657, %v2768
      %v2910 = vmul.f32 %v2658, %v2773
      %v2911 = vmul.f32 %v2659, %v2778
      %v2912 = vmul.f32 %v2660, %v2783
      %v2913 = vmul.f32 %v2661, %v2788
      %v2914 = vmul.f32 %v2662, %v2793
      %v2915 = vmul.f32 %v2663, %v2798
      %v2916 = vmul.f32 %v2664, %v2803
      %v2917 = vmul.f32 %v2665, %v2808
      %v2918 = vmul.f32 %v2666, %v2813
      %v2919 = vmul.f32 %v2667, %v2818
      %v2920 = vmul.f32 %v2668, %v2823
      %v2921 = vmul.f32 %v2669, %v2828
      %v2922 = vmul.f32 %v2670, %v2833
      %v2923 = vmul.f32 %v2671, %v2838
      %v2924 = vmul.f32 %v2672, %v2843
      %v2925 = vmul.f32 %v2673, %v2848
      %v2926 = vmul.f32 %v2674, %v2853
      %v2927 = vmul.f32 %v2675, %v2858
      %v2928 = vmul.f32 %v2676, %v2863
      %v2929 = vmul.f32 %v2677, %v2868
      %v2930 = vmul.f32 %v2678, %v2873
      %v2931 = vmul.f32 %v2679, %v2878
      %v2932 = vmul.f32 %v2680, %v2883
      %v2933 = vmul.f32 %v2681, %v2888
      %v2934 = vmul.f32 %v2682, %v2893
      %v2935 = vmul.f32 %v2683, %v2898
      %v2936 = vld [vmem:[#allocation2] sm:$0x1]
      %vm2937 = vcmask 261120
      %v2938 = vsel %vm2937, %v2900, 0.0
      %v2939 = vsel %vm2937, %v2901, 0.0
      %v2940 = vadd.f32 %v2938, %v2939
      %v2941 = vsel %vm2937, %v2902, 0.0
      %v2942 = vadd.f32 %v2940, %v2941
      %v2943 = vsel %vm2937, %v2903, 0.0
      %v2944 = vadd.f32 %v2942, %v2943
      %v2945 = vsel %vm2937, %v2904, 0.0
      %v2946 = vadd.f32 %v2944, %v2945
      %v2947 = vsel %vm2937, %v2905, 0.0
      %v2948 = vadd.f32 %v2946, %v2947
      %v2949 = vsel %vm2937, %v2906, 0.0
      %v2950 = vadd.f32 %v2948, %v2949
      %v2951 = vsel %vm2937, %v2907, 0.0
      %v2952 = vadd.f32 %v2950, %v2951
      %v2953 = vsel %vm2937, %v2908, 0.0
      %v2954 = vadd.f32 %v2952, %v2953
      %v2955 = vsel %vm2937, %v2909, 0.0
      %v2956 = vadd.f32 %v2954, %v2955
      %v2957 = vsel %vm2937, %v2910, 0.0
      %v2958 = vadd.f32 %v2956, %v2957
      %v2959 = vsel %vm2937, %v2911, 0.0
      %v2960 = vadd.f32 %v2958, %v2959
      %v2961 = vsel %vm2937, %v2912, 0.0
      %v2962 = vadd.f32 %v2960, %v2961
      %v2963 = vsel %vm2937, %v2913, 0.0
      %v2964 = vadd.f32 %v2962, %v2963
      %v2965 = vsel %vm2937, %v2914, 0.0
      %v2966 = vadd.f32 %v2964, %v2965
      %v2967 = vsel %vm2937, %v2915, 0.0
      %v2968 = vadd.f32 %v2966, %v2967
      %v2969 = vsel %vm2937, %v2916, 0.0
      %v2970 = vadd.f32 %v2968, %v2969
      %v2971 = vsel %vm2937, %v2917, 0.0
      %v2972 = vadd.f32 %v2970, %v2971
      %v2973 = vsel %vm2937, %v2918, 0.0
      %v2974 = vadd.f32 %v2972, %v2973
      %v2975 = vsel %vm2937, %v2919, 0.0
      %v2976 = vadd.f32 %v2974, %v2975
      %v2977 = vsel %vm2937, %v2920, 0.0
      %v2978 = vadd.f32 %v2976, %v2977
      %v2979 = vsel %vm2937, %v2921, 0.0
      %v2980 = vadd.f32 %v2978, %v2979
      %v2981 = vsel %vm2937, %v2922, 0.0
      %v2982 = vadd.f32 %v2980, %v2981
      %v2983 = vsel %vm2937, %v2923, 0.0
      %v2984 = vadd.f32 %v2982, %v2983
      %v2985 = vsel %vm2937, %v2924, 0.0
      %v2986 = vadd.f32 %v2984, %v2985
      %v2987 = vsel %vm2937, %v2925, 0.0
      %v2988 = vadd.f32 %v2986, %v2987
      %v2989 = vsel %vm2937, %v2926, 0.0
      %v2990 = vadd.f32 %v2988, %v2989
      %v2991 = vsel %vm2937, %v2927, 0.0
      %v2992 = vadd.f32 %v2990, %v2991
      %v2993 = vsel %vm2937, %v2928, 0.0
      %v2994 = vadd.f32 %v2992, %v2993
      %v2995 = vsel %vm2937, %v2929, 0.0
      %v2996 = vadd.f32 %v2994, %v2995
      %v2997 = vsel %vm2937, %v2930, 0.0
      %v2998 = vadd.f32 %v2996, %v2997
      %v2999 = vsel %vm2937, %v2931, 0.0
      %v3000 = vadd.f32 %v2998, %v2999
      %v3001 = vsel %vm2937, %v2932, 0.0
      %v3002 = vadd.f32 %v3000, %v3001
      %v3003 = vsel %vm2937, %v2933, 0.0
      %v3004 = vadd.f32 %v3002, %v3003
      %v3005 = vsel %vm2937, %v2934, 0.0
      %v3006 = vadd.f32 %v3004, %v3005
      %v3007 = vsel %vm2937, %v2935, 0.0
      %v3008 = vadd.f32 %v3006, %v3007
      %v3009 = vrot.slane %v3008, 4
      %v3010 = vadd.f32 %v3008, %v3009
      %v3011 = vrot.slane %v3010, 2
      %v3012 = vadd.f32 %v3010, %v3011
      %v3013 = vrot.slane %v3012, 1
      %v3014 = vadd.f32 %v3012, %v3013
      %v3015 = vadd.f32 %v2936, %v3014
      %vm3016 = vcmask 253952
      %3017 = vst.msk [vmem:[#allocation2] sm:$0x1] %vm3016, %v3015
      // Predicated region
      $region73: #{adversarial_forward.1} parent=67 // pred_check
        %p3018 = pneg %p423
      $region74: #{adversarial_forward.1} parent=67 // pred_check_branch
        %3020 = sbr.rel (%p3018) target = $region76
      $region75: #{adversarial_forward.1} parent=67 // pred_region
        %v3021 = vld [vmem:[#allocation2] sm:$0x1]
        %v3022 = vmul.f32 %v3021, 0.00390625
        %v3023 = vld [vmem:[%s4] sm:$0xff]
        %v3024 = vld [vmem:[%s4 + $0x8] sm:$0xff]
        %v3025 = vld [vmem:[%s4 + $0x10] sm:$0xff]
        %v3026 = vld [vmem:[%s4 + $0x18] sm:$0xff]
        %v3027 = vld [vmem:[%s5] sm:$0x1]
        %v3029 = vsel %vm2937, %v3022, 0
        %3031 = vmatpush.msra.mxu0 0.0
        %3032 = vmatpush.msra.mxu0 0.0
        %3033 = vmatpush.msra.mxu0 0.0
        %3034 = vmatpush.msra.mxu0 0.0
        %3035 = vmatpush.msra.mxu0 0.0
        %3036 = vmatpush.msra.mxu0 0.0
        %3037 = vmatpush.msra.mxu0 0.0
        %3038 = vmatpush.msra.mxu0 0.0
        %3039 = vmatpush.msra.mxu0 0.0
        %3040 = vmatpush.msra.mxu0 0.0
        %3041 = vmatpush.msra.mxu0 0.0
        %3042 = vmatpush.msra.mxu0 0.0
        %3043 = vmatpush.msra.mxu0 %v3026
        %3044 = vmatpush.msra.mxu0 %v3025
        %3045 = vmatpush.msra.mxu0 %v3024
        %3046 = vmatpush.msra.mxu0 %v3023
        %3047 = vmatmul.f32.gmra.mxu0 %v3029
        %v3048 = vpop.f32.mrf.mxu0
        %v3049 = vadd.f32 %v3027, %v3048
        %3050 = vdwg.mxu0
        %v3051 = vld [vmem:[%s6] sm:$0xff]
        %v3052 = vld [vmem:[%s6 + $0x8] sm:$0xff]
        %v3053 = vld [vmem:[%s6 + $0x10] sm:$0xff]
        %v3054 = vld [vmem:[%s6 + $0x18] sm:$0xff]
        %v3055 = vld [vmem:[%s7] sm:$0x1]
        %3056 = vmatpush.msra.mxu0 0.0
        %3057 = vmatpush.msra.mxu0 0.0
        %3058 = vmatpush.msra.mxu0 0.0
        %3059 = vmatpush.msra.mxu0 0.0
        %3060 = vmatpush.msra.mxu0 0.0
        %3061 = vmatpush.msra.mxu0 0.0
        %3062 = vmatpush.msra.mxu0 0.0
        %3063 = vmatpush.msra.mxu0 0.0
        %3064 = vmatpush.msra.mxu0 0.0
        %3065 = vmatpush.msra.mxu0 0.0
        %3066 = vmatpush.msra.mxu0 0.0
        %3067 = vmatpush.msra.mxu0 0.0
        %3068 = vmatpush.msra.mxu0 %v3054
        %3069 = vmatpush.msra.mxu0 %v3053
        %3070 = vmatpush.msra.mxu0 %v3052
        %3071 = vmatpush.msra.mxu0 %v3051
        %3072 = vmatmul.f32.gmra.mxu0 %v3029
        %v3073 = vpop.f32.mrf.mxu0
        %v3074 = vadd.f32 %v3055, %v3073
        %3075 = vdwg.mxu0
        %v3076 = vmax.f32 %v3074, 0.0
        %v3077 = vld [vmem:[%s8] sm:$0xff]
        %v3078 = vld [vmem:[%s8 + $0x8] sm:$0xff]
        %v3079 = vld [vmem:[%s8 + $0x10] sm:$0xff]
        %v3080 = vld [vmem:[%s8 + $0x18] sm:$0xff]
        %v3081 = vld [vmem:[%s8 + $0x20] sm:$0xff]
        %v3082 = vld [vmem:[%s8 + $0x28] sm:$0xff]
        %v3083 = vld [vmem:[%s8 + $0x30] sm:$0xff]
        %v3084 = vld [vmem:[%s8 + $0x38] sm:$0xff]
        %v3085 = vld [vmem:[%s8 + $0x40] sm:$0xff]
        %v3086 = vld [vmem:[%s8 + $0x48] sm:$0xff]
        %v3087 = vld [vmem:[%s8 + $0x50] sm:$0xff]
        %v3088 = vld [vmem:[%s8 + $0x58] sm:$0xff]
        %v3089 = vld [vmem:[%s8 + $0x60] sm:$0xff]
        %v3090 = vld [vmem:[%s8 + $0x68] sm:$0xff]
        %v3091 = vld [vmem:[%s8 + $0x70] sm:$0xff]
        %v3092 = vld [vmem:[%s8 + $0x78] sm:$0xff]
        %v3093 = vld [vmem:[%s9] sm:$0x1]
        %3094 = vmatpush.msra.mxu0 %v3092
        %3095 = vmatpush.msra.mxu0 %v3091
        %3096 = vmatpush.msra.mxu0 %v3090
        %3097 = vmatpush.msra.mxu0 %v3089
        %3098 = vmatpush.msra.mxu0 %v3088
        %3099 = vmatpush.msra.mxu0 %v3087
        %3100 = vmatpush.msra.mxu0 %v3086
        %3101 = vmatpush.msra.mxu0 %v3085
        %3102 = vmatpush.msra.mxu0 %v3084
        %3103 = vmatpush.msra.mxu0 %v3083
        %3104 = vmatpush.msra.mxu0 %v3082
        %3105 = vmatpush.msra.mxu0 %v3081
        %3106 = vmatpush.msra.mxu0 %v3080
        %3107 = vmatpush.msra.mxu0 %v3079
        %3108 = vmatpush.msra.mxu0 %v3078
        %3109 = vmatpush.msra.mxu0 %v3077
        %3110 = vmatmul.f32.gmra.mxu0 %v3076
        %v3111 = vpop.f32.mrf.mxu0
        %v3112 = vadd.f32 %v3093, %v3111
        %3113 = vdwg.mxu0
        %v3114 = vmax.f32 %v3112, 0.0
        %v3115 = vld [vmem:[%s10] sm:$0xff]
        %v3116 = vld [vmem:[%s10 + $0x8] sm:$0xff]
        %v3117 = vld [vmem:[%s10 + $0x10] sm:$0xff]
        %v3118 = vld [vmem:[%s10 + $0x18] sm:$0xff]
        %v3119 = vld [vmem:[%s10 + $0x20] sm:$0xff]
        %v3120 = vld [vmem:[%s10 + $0x28] sm:$0xff]
        %v3121 = vld [vmem:[%s10 + $0x30] sm:$0xff]
        %v3122 = vld [vmem:[%s10 + $0x38] sm:$0xff]
        %v3123 = vld [vmem:[%s10 + $0x40] sm:$0xff]
        %v3124 = vld [vmem:[%s10 + $0x48] sm:$0xff]
        %v3125 = vld [vmem:[%s10 + $0x50] sm:$0xff]
        %v3126 = vld [vmem:[%s10 + $0x58] sm:$0xff]
        %v3127 = vld [vmem:[%s10 + $0x60] sm:$0xff]
        %v3128 = vld [vmem:[%s10 + $0x68] sm:$0xff]
        %v3129 = vld [vmem:[%s10 + $0x70] sm:$0xff]
        %v3130 = vld [vmem:[%s10 + $0x78] sm:$0xff]
        %v3131 = vld [vmem:[%s11] sm:$0x1]
        %3132 = vmatpush.msra.mxu0 %v3130
        %3133 = vmatpush.msra.mxu0 %v3129
        %3134 = vmatpush.msra.mxu0 %v3128
        %3135 = vmatpush.msra.mxu0 %v3127
        %3136 = vmatpush.msra.mxu0 %v3126
        %3137 = vmatpush.msra.mxu0 %v3125
        %3138 = vmatpush.msra.mxu0 %v3124
        %3139 = vmatpush.msra.mxu0 %v3123
        %3140 = vmatpush.msra.mxu0 %v3122
        %3141 = vmatpush.msra.mxu0 %v3121
        %3142 = vmatpush.msra.mxu0 %v3120
        %3143 = vmatpush.msra.mxu0 %v3119
        %3144 = vmatpush.msra.mxu0 %v3118
        %3145 = vmatpush.msra.mxu0 %v3117
        %3146 = vmatpush.msra.mxu0 %v3116
        %3147 = vmatpush.msra.mxu0 %v3115
        %3148 = vmatmul.f32.gmra.mxu0 %v3114
        %v3149 = vpop.f32.mrf.mxu0
        %v3150 = vadd.f32 %v3131, %v3149
        %3151 = vdwg.mxu0
        %v3152 = vadd.f32 %v3049, %v3150
        %3153 = vst [vmem:[%s421] sm:$0x1] %v3152
      $region76: #{adversarial_forward.1} parent=67 // pred_fallthru
        _
      %p3154 = scmp.lt.s32.totalorder %s27, 1
      %s3155 = scalar_select %p3154, %s27, 1
      %s3156 = scalar_lea.vmem %s12, %s3155
      // Predicated region
      $region77: #{adversarial_forward.1} parent=67 // pred_check
        %p3157 = pneg %p310
      $region78: #{adversarial_forward.1} parent=67 // pred_check_branch
        %3159 = sbr.rel (%p3157) target = $region80
      $region79: #{adversarial_forward.1} parent=67 // pred_region
        _
      $region80: #{adversarial_forward.1} parent=67 // pred_fallthru
        _
    $region68: #{adversarial_forward.1} parent=5 // pred_fallthru
      _
    %p3160 = scmp.le.s32.totalorder 2, %s18
    // Predicated region
    $region81: #{adversarial_forward.1} parent=5 // pred_check
      %p3161 = pneg %p3160
    $region82: #{adversarial_forward.1} parent=5 // pred_check_branch
      %3163 = sbr.rel (%p3161) target = $region84
    $region83: #{adversarial_forward.1} parent=5 // pred_region
      %s3164 = ssub.s32 %s18, 2
      // Predicated region
      $region85: #{adversarial_forward.1} parent=83 // pred_check
        %p3165 = pneg %p316
      $region86: #{adversarial_forward.1} parent=83 // pred_check_branch
        %3167 = sbr.rel (%p3165) target = $region88
      $region87: #{adversarial_forward.1} parent=83 // pred_region
        %p3168 = scmp.lt.s32.totalorder %s29, 1
        %s3169 = scalar_select %p3168, %s29, 1
        %s3170 = scalar_lea.vmem %s12, %s3169
      $region88: #{adversarial_forward.1} parent=83 // pred_fallthru
        _
    $region84: #{adversarial_forward.1} parent=5 // pred_fallthru
      _
  $region6: #{adversarial_forward.1} parent=0 // loop_footer
    %s22 = sadd.s32 1, %s18
  $region7: #{adversarial_forward.1} parent=0 // loop_footer_branch
    %17 = sbr.rel target = $region3
  $region8: #{adversarial_forward.1} parent=0 // loop_exit
    _

</llo_original>
